<compile_context>
chip_gen: v7x
topology: tpu7x:2x2x1
jax: 0.10.0
libtpu: 0.0.40
codegen_flags: <defaults>
</compile_context>

<pallas_src>
import math

import jax
import jax.numpy as jnp
from jax.experimental import pallas as pl
from jax.experimental.pallas import tpu as pltpu

LANE = 128          # per-action lane tile (atoms padded up to this)
BODY_HIDDEN = 128   # SimpleBody feature_size()
HIDDEN = 256        # CategoricalDQN.hidden_size


def categorical_dqn_kernel(x_ref, w0_ref, b0_ref, w1_ref, b1_ref,
                           w2_ref, b2_ref, out_ref):
    # SimpleBody: Linear(input_dim -> 128) + ReLU   (bf16 operands, f32 accumulate)
    h0 = jnp.dot(x_ref[...], w0_ref[...],
                 preferred_element_type=jnp.float32) + b0_ref[...]
    h0 = jnp.maximum(h0, 0.0)

    # fc1: Linear(128 -> 256) + ReLU
    h1 = jnp.dot(h0.astype(w1_ref.dtype), w1_ref[...],
                 preferred_element_type=jnp.float32) + b1_ref[...]
    h1 = jnp.maximum(h1, 0.0)

    # fc2: Linear(256 -> A*128), lane-padded per action.
    # Padded weight columns are 0 and padded bias is -1e30, so padded lanes carry
    # exactly zero probability mass after the softmax.
    logits = jnp.dot(h1.astype(w2_ref.dtype), w2_ref[...],
                     preferred_element_type=jnp.float32) + b2_ref[...]

    # Softmax within each 128-lane action tile.  (TB, A*128) -> (TB, A, 128) is a
    # lane-tile-aligned split: no cross-lane shuffle, and the store is a full-lane vst.
    tb, num_act, lane = out_ref.shape
    l3 = logits.reshape(tb, num_act, lane)
    m = jnp.max(l3, axis=2, keepdims=True)
    e = jnp.exp(l3 - m)
    s = jnp.sum(e, axis=2, keepdims=True)
    out_ref[...] = (e * pl.reciprocal(s, approx=True)).astype(out_ref.dtype)


def categorical_dqn_forward(x, params, num_actions, atoms, *, tb=256):
    """x: [B, input_dim] float32; params: (w0, b0, w1, b1, w2, b2) with weights [in, out]."""
    w0, b0, w1, b1, w2, b2 = params
    B, input_dim = x.shape
    A = num_actions

    # Lane-pad fc2 so each action owns a full 128-lane tile.
    w2p = jnp.pad(w2.reshape(HIDDEN, A, atoms),
                  ((0, 0), (0, 0), (0, LANE - atoms))).reshape(HIDDEN, A * LANE)
    b2p = jnp.pad(b2.reshape(1, A, atoms),
                  ((0, 0), (0, 0), (0, LANE - atoms)),
                  constant_values=-1e30).reshape(1, A * LANE)

    # bf16 operands for the MXU; biases / accumulation / softmax stay f32.
    xb = x.astype(jnp.bfloat16)
    w0b = w0.astype(jnp.bfloat16)
    w1b = w1.astype(jnp.bfloat16)
    w2b = w2p.astype(jnp.bfloat16)

    # Pad the batch up to a multiple of the batch tile (grid over batch).
    Bp = ((B + tb - 1) // tb) * tb
    if Bp != B:
        xb = jnp.pad(xb, ((0, Bp - B), (0, 0)))
    grid = (Bp // tb,)

    resident = lambda i: (0, 0)  # weights/biases: same block every grid step

    flops = 2 * Bp * (input_dim * BODY_HIDDEN + BODY_HIDDEN * HIDDEN + HIDDEN * A * LANE)
    bytes_accessed = (xb.size * 2 + w0b.size * 2 + w1b.size * 2 + w2b.size * 2
                      + (b0.size + b1.size + b2p.size) * 4 + Bp * A * LANE * 4)

    out = pl.pallas_call(
        categorical_dqn_kernel,
        out_shape=jax.ShapeDtypeStruct((Bp, A, LANE), jnp.float32),
        grid=grid,
        in_specs=[
            pl.BlockSpec((tb, input_dim), lambda i: (i, 0)),       # x tile
            pl.BlockSpec((input_dim, BODY_HIDDEN), resident),      # w0
            pl.BlockSpec((1, BODY_HIDDEN), resident),              # b0
            pl.BlockSpec((BODY_HIDDEN, HIDDEN), resident),         # w1
            pl.BlockSpec((1, HIDDEN), resident),                   # b1
            pl.BlockSpec((HIDDEN, A * LANE), resident),            # w2 (lane-padded)
            pl.BlockSpec((1, A * LANE), resident),                 # b2 (lane-padded)
        ],
        out_specs=pl.BlockSpec((tb, A, LANE), lambda i: (i, 0, 0)),
        compiler_params=pltpu.CompilerParams(
            dimension_semantics=("parallel",)),
        cost_estimate=pl.CostEstimate(
            flops=flops,
            transcendentals=Bp * A * LANE,
            bytes_accessed=bytes_accessed),
    )(xb, w0b, b0, w1b, b1, w2b, b2p)

    # Drop batch padding and the per-action lane padding.
    return out[:B, :, :atoms]


def init_linear(key, fan_in, fan_out):
    """Deterministic init matching PyTorch nn.Linear default bounds U(-1/sqrt(in), 1/sqrt(in)).
    Weight is returned already transposed to [in, out]."""
    kw, kb = jax.random.split(key)
    bound = 1.0 / math.sqrt(fan_in)
    w = jax.random.uniform(kw, (fan_in, fan_out), jnp.float32, -bound, bound)
    b = jax.random.uniform(kb, (1, fan_out), jnp.float32, -bound, bound)
    return w, b


if __name__ == "__main__":
    # Small shapes consistent with the module: SimpleBody is an MLP body,
    # so the observation is a flat vector.
    batch = 2
    input_dim = 16          # input_shape = (16,)
    num_actions = 4
    atoms = 51

    root = jax.random.PRNGKey(0)
    k_x, k0, k1, k2 = jax.random.split(root, 4)

    x = jax.random.normal(k_x, (batch, input_dim), jnp.float32)

    w0, b0 = init_linear(k0, input_dim, BODY_HIDDEN)            # SimpleBody.fc1
    w1, b1 = init_linear(k1, BODY_HIDDEN, HIDDEN)               # fc1
    w2, b2 = init_linear(k2, HIDDEN, num_actions * atoms)       # fc2

    params = (w0, b0, w1, b1, w2, b2)

    out = categorical_dqn_forward(x, params, num_actions, atoms)
    out = jax.block_until_ready(out)

    # pure-JAX f32 reference for correctness
    def reference(x):
        h0 = jnp.maximum(x @ w0 + b0, 0.0)
        h1 = jnp.maximum(h0 @ w1 + b1, 0.0)
        logits = (h1 @ w2 + b2).reshape(batch, num_actions, atoms)
        return jax.nn.softmax(logits, axis=2)

    ref = reference(x)

    assert out.shape == (batch, num_actions, atoms)
    assert jnp.allclose(jnp.sum(out, axis=2), 1.0, atol=1e-2)      # approx-recip normalization
    assert jnp.allclose(out, ref, atol=3e-2)                       # bf16 matmul tolerance

    print("KERNEL_OK")
</pallas_src>

<mosaic_0001>
module attributes {stable_mosaic.version = 11 : i64} {
  func.func @categorical_dqn_kernel(%arg0: i32, %arg1: memref<256x16xbf16, #tpu.memory_space<vmem>>, %arg2: memref<16x128xbf16, #tpu.memory_space<vmem>>, %arg3: memref<1x128xf32, #tpu.memory_space<vmem>>, %arg4: memref<128x256xbf16, #tpu.memory_space<vmem>>, %arg5: memref<1x256xf32, #tpu.memory_space<vmem>>, %arg6: memref<256x512xbf16, #tpu.memory_space<vmem>>, %arg7: memref<1x512xf32, #tpu.memory_space<vmem>>, %arg8: memref<256x4x128xf32, #tpu.memory_space<vmem>>) attributes {dimension_semantics = [#tpu.dimension_semantics<parallel>], iteration_bounds = array<i64: 1>, scalar_prefetch = 0 : i64, scratch_operands = 0 : i64, tpu.core_type = #tpu.core_type<tc>, window_params = [{transform_indices = @transform_0, window_bounds = array<i64: 256, 16>}, {pipeline_mode = #tpu.pipeline_mode<synchronous>, transform_indices = @transform_1, window_bounds = array<i64: 16, 128>}, {pipeline_mode = #tpu.pipeline_mode<synchronous>, transform_indices = @transform_2, window_bounds = array<i64: 1, 128>}, {pipeline_mode = #tpu.pipeline_mode<synchronous>, transform_indices = @transform_3, window_bounds = array<i64: 128, 256>}, {pipeline_mode = #tpu.pipeline_mode<synchronous>, transform_indices = @transform_4, window_bounds = array<i64: 1, 256>}, {pipeline_mode = #tpu.pipeline_mode<synchronous>, transform_indices = @transform_5, window_bounds = array<i64: 256, 512>}, {pipeline_mode = #tpu.pipeline_mode<synchronous>, transform_indices = @transform_6, window_bounds = array<i64: 1, 512>}, {transform_indices = @transform_7, window_bounds = array<i64: 256, 4, 128>}]} {
    %c0 = arith.constant 0 : index
    %c0_0 = arith.constant 0 : index
    %0 = vector.load %arg1[%c0, %c0_0] : memref<256x16xbf16, #tpu.memory_space<vmem>>, vector<256x16xbf16>
    %c0_1 = arith.constant 0 : index
    %c0_2 = arith.constant 0 : index
    %1 = vector.load %arg2[%c0_1, %c0_2] : memref<16x128xbf16, #tpu.memory_space<vmem>>, vector<16x128xbf16>
    %cst = arith.constant dense<0.000000e+00> : vector<256x128xf32>
    %2 = tpu.matmul %0, %1, %cst {dimension_numbers = #tpu.dot_dimension_numbers<[1], [0], [0], [1], [0, 0, 1, 1], [], []>} : vector<256x16xbf16>, vector<16x128xbf16>, vector<256x128xf32> -> vector<256x128xf32>
    %c0_3 = arith.constant 0 : index
    %c0_4 = arith.constant 0 : index
    %3 = vector.load %arg3[%c0_3, %c0_4] : memref<1x128xf32, #tpu.memory_space<vmem>>, vector<1x128xf32>
    %4 = vector.broadcast %3 : vector<1x128xf32> to vector<256x128xf32>
    %5 = arith.addf %2, %4 : vector<256x128xf32>
    %cst_5 = arith.constant 0.000000e+00 : f32
    %6 = vector.broadcast %cst_5 : f32 to vector<256x128xf32>
    %7 = arith.maximumf %5, %6 : vector<256x128xf32>
    %8 = arith.truncf %7 : vector<256x128xf32> to vector<256x128xbf16>
    %c0_6 = arith.constant 0 : index
    %c0_7 = arith.constant 0 : index
    %9 = vector.load %arg4[%c0_6, %c0_7] : memref<128x256xbf16, #tpu.memory_space<vmem>>, vector<128x256xbf16>
    %cst_8 = arith.constant dense<0.000000e+00> : vector<256x256xf32>
    %10 = tpu.matmul %8, %9, %cst_8 {dimension_numbers = #tpu.dot_dimension_numbers<[1], [0], [0], [1], [0, 0, 1, 1], [], []>} : vector<256x128xbf16>, vector<128x256xbf16>, vector<256x256xf32> -> vector<256x256xf32>
    %c0_9 = arith.constant 0 : index
    %c0_10 = arith.constant 0 : index
    %11 = vector.load %arg5[%c0_9, %c0_10] : memref<1x256xf32, #tpu.memory_space<vmem>>, vector<1x256xf32>
    %12 = vector.broadcast %11 : vector<1x256xf32> to vector<256x256xf32>
    %13 = arith.addf %10, %12 : vector<256x256xf32>
    %cst_11 = arith.constant 0.000000e+00 : f32
    %14 = vector.broadcast %cst_11 : f32 to vector<256x256xf32>
    %15 = arith.maximumf %13, %14 : vector<256x256xf32>
    %16 = arith.truncf %15 : vector<256x256xf32> to vector<256x256xbf16>
    %c0_12 = arith.constant 0 : index
    %c0_13 = arith.constant 0 : index
    %17 = vector.load %arg6[%c0_12, %c0_13] : memref<256x512xbf16, #tpu.memory_space<vmem>>, vector<256x512xbf16>
    %cst_14 = arith.constant dense<0.000000e+00> : vector<256x512xf32>
    %18 = tpu.matmul %16, %17, %cst_14 {dimension_numbers = #tpu.dot_dimension_numbers<[1], [0], [0], [1], [0, 0, 1, 1], [], []>} : vector<256x256xbf16>, vector<256x512xbf16>, vector<256x512xf32> -> vector<256x512xf32>
    %c0_15 = arith.constant 0 : index
    %c0_16 = arith.constant 0 : index
    %19 = vector.load %arg7[%c0_15, %c0_16] : memref<1x512xf32, #tpu.memory_space<vmem>>, vector<1x512xf32>
    %20 = vector.broadcast %19 : vector<1x512xf32> to vector<256x512xf32>
    %21 = arith.addf %18, %20 : vector<256x512xf32>
    %22 = vector.shape_cast %21 : vector<256x512xf32> to vector<256x4x128xf32>
    %cst_17 = arith.constant dense<0xFF800000> : vector<256x4xf32>
    %23 = vector.multi_reduction <maximumf>, %22, %cst_17 [2] : vector<256x4x128xf32> to vector<256x4xf32>
    %24 = vector.shape_cast %23 : vector<256x4xf32> to vector<256x4x1xf32>
    %25 = vector.broadcast %24 : vector<256x4x1xf32> to vector<256x4x128xf32>
    %26 = arith.subf %22, %25 : vector<256x4x128xf32>
    %27 = math.exp %26 : vector<256x4x128xf32>
    %cst_18 = arith.constant dense<0.000000e+00> : vector<256x4xf32>
    %28 = vector.multi_reduction <add>, %27, %cst_18 [2] : vector<256x4x128xf32> to vector<256x4xf32>
    %29 = vector.shape_cast %28 : vector<256x4xf32> to vector<256x4x1xf32>
    %30 = tpu.reciprocal %29 {approx = true} : vector<256x4x1xf32> -> vector<256x4x1xf32>
    %31 = vector.broadcast %30 : vector<256x4x1xf32> to vector<256x4x128xf32>
    %32 = arith.mulf %27, %31 : vector<256x4x128xf32>
    %c0_19 = arith.constant 0 : index
    %c0_20 = arith.constant 0 : index
    %c0_21 = arith.constant 0 : index
    %33 = vector.load %arg8[%c0_19, %c0_20, %c0_21] : memref<256x4x128xf32, #tpu.memory_space<vmem>>, vector<256x4x128xf32>
    tpu.vector_store %arg8[%c0_19, %c0_20, %c0_21], %32 {strides = array<i32>} : memref<256x4x128xf32, #tpu.memory_space<vmem>>, vector<256x4x128xf32>,
    return
  }
  func.func @transform_0(%arg0: i32) -> (i32, i32) {
    %c0_i32 = arith.constant 0 : i32
    %c0_i32_0 = arith.constant 0 : i32
    return %arg0, %c0_i32 : i32, i32
  }
  func.func @transform_1(%arg0: i32) -> (i32, i32) {
    %c0_i32 = arith.constant 0 : i32
    %c0_i32_0 = arith.constant 0 : i32
    %c0_i32_1 = arith.constant 0 : i32
    return %c0_i32, %c0_i32_0 : i32, i32
  }
  func.func @transform_2(%arg0: i32) -> (i32, i32) {
    %c0_i32 = arith.constant 0 : i32
    %c0_i32_0 = arith.constant 0 : i32
    %c0_i32_1 = arith.constant 0 : i32
    return %c0_i32, %c0_i32_0 : i32, i32
  }
  func.func @transform_3(%arg0: i32) -> (i32, i32) {
    %c0_i32 = arith.constant 0 : i32
    %c0_i32_0 = arith.constant 0 : i32
    %c0_i32_1 = arith.constant 0 : i32
    return %c0_i32, %c0_i32_0 : i32, i32
  }
  func.func @transform_4(%arg0: i32) -> (i32, i32) {
    %c0_i32 = arith.constant 0 : i32
    %c0_i32_0 = arith.constant 0 : i32
    %c0_i32_1 = arith.constant 0 : i32
    return %c0_i32, %c0_i32_0 : i32, i32
  }
  func.func @transform_5(%arg0: i32) -> (i32, i32) {
    %c0_i32 = arith.constant 0 : i32
    %c0_i32_0 = arith.constant 0 : i32
    %c0_i32_1 = arith.constant 0 : i32
    return %c0_i32, %c0_i32_0 : i32, i32
  }
  func.func @transform_6(%arg0: i32) -> (i32, i32) {
    %c0_i32 = arith.constant 0 : i32
    %c0_i32_0 = arith.constant 0 : i32
    %c0_i32_1 = arith.constant 0 : i32
    return %c0_i32, %c0_i32_0 : i32, i32
  }
  func.func @transform_7(%arg0: i32) -> (i32, i32, i32) {
    %c0_i32 = arith.constant 0 : i32
    %c0_i32_0 = arith.constant 0 : i32
    %c0_i32_1 = arith.constant 0 : i32
    return %arg0, %c0_i32, %c0_i32_0 : i32, i32, i32
  }
}

</mosaic_0001>

<llo_original>
// kernel: tpu_custom_call.1
$region0: #{tpu_custom_call.1}
  #allocation0 [shape = 'u32[]', space=smem, size = 0x4, offset = 0x4, fixed_abs, tag = 'smem constant byte address 0x4 - core index']
  #allocation1 [shape = 'u32[144,128]{1,0:T(1,128)}', space=vmem, size = 0x12000, scoped, tag = 'internal scratch']
  %s0 = inlined_call_operand.vmem [shape: bf16[256,16], index: 0, kind: input, shape index: {}]
  %s1 = inlined_call_operand.vmem [shape: bf16[16,128], index: 1, kind: input, shape index: {}]
  %s2 = inlined_call_operand.vmem [shape: f32[1,128], index: 2, kind: input, shape index: {}]
  %s3 = inlined_call_operand.vmem [shape: bf16[128,256], index: 3, kind: input, shape index: {}]
  %s4 = inlined_call_operand.vmem [shape: f32[1,256], index: 4, kind: input, shape index: {}]
  %s5 = inlined_call_operand.hbm [shape: bf16[256,512], index: 5, kind: input, shape index: {}]
  %s6 = inlined_call_operand.vmem [shape: f32[1,512], index: 6, kind: input, shape index: {}]
  %s7 = inlined_call_operand.hbm [shape: f32[256,4,128], index: 7, kind: output, shape index: {}]
  %s8 = sld [smem:[#allocation0]]
  $region42: #{tpu_custom_call.1} parent=0
    _
  %s10 = ssub.s32 1, %s8
  %s11 = scalar_select 0, %s10, %s8
  $region1: #{tpu_custom_call.1} parent=0
    #allocation2 [shape = 'u8[262144]{0}', space=vmem, size = 0x40000, scoped, tag = 'input window, operand 5, single buffered']
    #allocation3 [shape = 's32[1]{0}', space=sflag, size = 0x4, scoped, tag = 'scoped memory for tpu_custom_call.1']
    #allocation4 [shape = 's32[1]{0}', space=sflag, size = 0x4, scoped, tag = 'scoped memory for tpu_custom_call.1']
    #allocation5 [shape = 'u8[524288]{0}', space=vmem, size = 0x80000, scoped, tag = 'output window, operand 0, single buffered']
    %12 = vsyncpa [#allocation3], 0
    %13 = vsyncpa [#allocation4], 0
    // Predicated region
    $region2: #{tpu_custom_call.1} parent=1 // pred_check
      _
    $region3: #{tpu_custom_call.1} parent=1 // pred_check_branch
      %15 = sbr.rel (0) target = $region5
    $region4: #{tpu_custom_call.1} parent=1 // pred_region
      _
    $region5: #{tpu_custom_call.1} parent=1 // pred_fallthru
      _
    // Predicated region
    $region6: #{tpu_custom_call.1} parent=1 // pred_check
      _
    $region7: #{tpu_custom_call.1} parent=1 // pred_check_branch
      %17 = sbr.rel (0) target = $region9
    $region8: #{tpu_custom_call.1} parent=1 // pred_region
      _
    $region9: #{tpu_custom_call.1} parent=1 // pred_fallthru
      _
    // Predicated region
    $region10: #{tpu_custom_call.1} parent=1 // pred_check
      _
    $region11: #{tpu_custom_call.1} parent=1 // pred_check_branch
      %19 = sbr.rel (0) target = $region13
    $region12: #{tpu_custom_call.1} parent=1 // pred_region
      _
    $region13: #{tpu_custom_call.1} parent=1 // pred_fallthru
      _
    // Predicated region
    $region14: #{tpu_custom_call.1} parent=1 // pred_check
      _
    $region15: #{tpu_custom_call.1} parent=1 // pred_check_branch
      %21 = sbr.rel (0) target = $region17
    $region16: #{tpu_custom_call.1} parent=1 // pred_region
      _
    $region17: #{tpu_custom_call.1} parent=1 // pred_fallthru
      _
    // Predicated region
    $region18: #{tpu_custom_call.1} parent=1 // pred_check
      _
    $region19: #{tpu_custom_call.1} parent=1 // pred_check_branch
      %23 = sbr.rel (0) target = $region21
    $region20: #{tpu_custom_call.1} parent=1 // pred_region
      _
    $region21: #{tpu_custom_call.1} parent=1 // pred_fallthru
      _
    // Predicated region
    $region22: #{tpu_custom_call.1} parent=1 // pred_check
      _
    $region23: #{tpu_custom_call.1} parent=1 // pred_check_branch
      %25 = sbr.rel (0) target = $region25
    $region24: #{tpu_custom_call.1} parent=1 // pred_region
      %s27 = ssub.s32 8192, 8192
      %28 = vsyncadd [#allocation3], %s27
      %s29 = sshll.u32 [#allocation2], 4
      %s30 = int_to_ptr.vmem [resolvable:$true] %s29
      %35 = dma.hbm_to_vmem [thread:$0]  %s5, 8192, %s30, [#allocation3], 256, 256, 16
    $region25: #{tpu_custom_call.1} parent=1 // pred_fallthru
      _
    // Predicated region
    $region26: #{tpu_custom_call.1} parent=1 // pred_check
      _
    $region27: #{tpu_custom_call.1} parent=1 // pred_check_branch
      %37 = sbr.rel (0) target = $region29
    $region28: #{tpu_custom_call.1} parent=1 // pred_region
      _
    $region29: #{tpu_custom_call.1} parent=1 // pred_fallthru
      _
    // Predicated region
    $region30: #{tpu_custom_call.1} parent=1 // pred_check
      _
    $region31: #{tpu_custom_call.1} parent=1 // pred_check_branch
      %39 = sbr.rel (0) target = $region33
    $region32: #{tpu_custom_call.1} parent=1 // pred_region
      %40 = dma.done [#allocation3], 8192
    $region33: #{tpu_custom_call.1} parent=1 // pred_fallthru
      _
    %v42 = vld [vmem:[%s0] sm:$0xf]
    %v43 = vld [vmem:[%s0 + $0x4] sm:$0xf]
    %v44 = vld [vmem:[%s0 + $0x8] sm:$0xf]
    %v45 = vld [vmem:[%s0 + $0xc] sm:$0xf]
    %v46 = vld [vmem:[%s0 + $0x10] sm:$0xf]
    %v47 = vld [vmem:[%s0 + $0x14] sm:$0xf]
    %v48 = vld [vmem:[%s0 + $0x18] sm:$0xf]
    %v49 = vld [vmem:[%s0 + $0x1c] sm:$0xf]
    %v50 = vld [vmem:[%s0 + $0x20] sm:$0xf]
    %v51 = vld [vmem:[%s0 + $0x24] sm:$0xf]
    %v52 = vld [vmem:[%s0 + $0x28] sm:$0xf]
    %v53 = vld [vmem:[%s0 + $0x2c] sm:$0xf]
    %v54 = vld [vmem:[%s0 + $0x30] sm:$0xf]
    %v55 = vld [vmem:[%s0 + $0x34] sm:$0xf]
    %v56 = vld [vmem:[%s0 + $0x38] sm:$0xf]
    %v57 = vld [vmem:[%s0 + $0x3c] sm:$0xf]
    %v58 = vld [vmem:[%s0 + $0x40] sm:$0xf]
    %v59 = vld [vmem:[%s0 + $0x44] sm:$0xf]
    %v60 = vld [vmem:[%s0 + $0x48] sm:$0xf]
    %v61 = vld [vmem:[%s0 + $0x4c] sm:$0xf]
    %v62 = vld [vmem:[%s0 + $0x50] sm:$0xf]
    %v63 = vld [vmem:[%s0 + $0x54] sm:$0xf]
    %v64 = vld [vmem:[%s0 + $0x58] sm:$0xf]
    %v65 = vld [vmem:[%s0 + $0x5c] sm:$0xf]
    %v66 = vld [vmem:[%s0 + $0x60] sm:$0xf]
    %v67 = vld [vmem:[%s0 + $0x64] sm:$0xf]
    %v68 = vld [vmem:[%s0 + $0x68] sm:$0xf]
    %v69 = vld [vmem:[%s0 + $0x6c] sm:$0xf]
    %v70 = vld [vmem:[%s0 + $0x70] sm:$0xf]
    %v71 = vld [vmem:[%s0 + $0x74] sm:$0xf]
    %v72 = vld [vmem:[%s0 + $0x78] sm:$0xf]
    %v73 = vld [vmem:[%s0 + $0x7c] sm:$0xf]
    %v74 = vld [vmem:[%s1] sm:$0xf]
    %v75 = vld [vmem:[%s1 + $0x4] sm:$0xf]
    %v76 = vld [vmem:[%s2] sm:$0x1]
    %v78 = vlaneseq
    %v79 = vshrl.u32 %v78, 7
    %v80 = vsub.s32 0, %v79
    %v81 = vrot.slane %v76, %v80
    %v115 = vunpack.c.l.b16 %v42
    %v116 = vunpack.c.l.b16 %v43
    %v117 = vunpack.c.l.b16 %v44
    %v118 = vunpack.c.l.b16 %v45
    %v119 = vunpack.c.l.b16 %v46
    %v120 = vunpack.c.l.b16 %v47
    %v121 = vunpack.c.l.b16 %v48
    %v122 = vunpack.c.l.b16 %v49
    %v123 = vunpack.c.l.b16 %v50
    %v124 = vunpack.c.l.b16 %v51
    %v125 = vunpack.c.l.b16 %v52
    %v126 = vunpack.c.l.b16 %v53
    %v127 = vunpack.c.l.b16 %v54
    %v128 = vunpack.c.l.b16 %v55
    %v129 = vunpack.c.l.b16 %v56
    %v130 = vunpack.c.l.b16 %v57
    %v131 = vunpack.c.l.b16 %v58
    %v132 = vunpack.c.l.b16 %v59
    %v133 = vunpack.c.l.b16 %v60
    %v134 = vunpack.c.l.b16 %v61
    %v135 = vunpack.c.l.b16 %v62
    %v136 = vunpack.c.l.b16 %v63
    %v137 = vunpack.c.l.b16 %v64
    %v138 = vunpack.c.l.b16 %v65
    %v139 = vunpack.c.l.b16 %v66
    %v140 = vunpack.c.l.b16 %v67
    %v141 = vunpack.c.l.b16 %v68
    %v142 = vunpack.c.l.b16 %v69
    %v143 = vunpack.c.l.b16 %v70
    %v144 = vunpack.c.l.b16 %v71
    %v145 = vunpack.c.l.b16 %v72
    %v146 = vunpack.c.l.b16 %v73
    %v147 = vpack.c.b16 %v116, %v115
    %v148 = vpack.c.b16 %v118, %v117
    %v149 = vpack.c.b16 %v120, %v119
    %v150 = vpack.c.b16 %v122, %v121
    %v151 = vpack.c.b16 %v124, %v123
    %v152 = vpack.c.b16 %v126, %v125
    %v153 = vpack.c.b16 %v128, %v127
    %v154 = vpack.c.b16 %v130, %v129
    %v155 = vpack.c.b16 %v132, %v131
    %v156 = vpack.c.b16 %v134, %v133
    %v157 = vpack.c.b16 %v136, %v135
    %v158 = vpack.c.b16 %v138, %v137
    %v159 = vpack.c.b16 %v140, %v139
    %v160 = vpack.c.b16 %v142, %v141
    %v161 = vpack.c.b16 %v144, %v143
    %v162 = vpack.c.b16 %v146, %v145
    %v165 = vunpack.c.l.b16 %v74
    %v166 = vunpack.c.l.b16 %v75
    %v167 = vpack.c.b16 %v166, %v165
    %vm169 = vcmask 130048
    %v171 = vsel %vm169, %v147, 0
    %v174 = vsel %vm169, %v148, 0
    %v177 = vsel %vm169, %v149, 0
    %v180 = vsel %vm169, %v150, 0
    %v183 = vsel %vm169, %v151, 0
    %v186 = vsel %vm169, %v152, 0
    %v189 = vsel %vm169, %v153, 0
    %v192 = vsel %vm169, %v154, 0
    %v195 = vsel %vm169, %v155, 0
    %v198 = vsel %vm169, %v156, 0
    %v201 = vsel %vm169, %v157, 0
    %v204 = vsel %vm169, %v158, 0
    %v207 = vsel %vm169, %v159, 0
    %v210 = vsel %vm169, %v160, 0
    %v213 = vsel %vm169, %v161, 0
    %v216 = vsel %vm169, %v162, 0
    %218 = vmatprep.subr.bf16.mxu0 0
    %219 = vmatpush1.bf16.msra.mxu0 %v167
    %220 = vmatprep.subr.bf16.mxu0 0
    %221 = vmatpush1.bf16.msra.mxu0 0
    %222 = vmatprep.subr.bf16.mxu0 0
    %223 = vmatpush1.bf16.msra.mxu0 0
    %224 = vmatprep.subr.bf16.mxu0 0
    %225 = vmatpush1.bf16.msra.mxu0 0
    %226 = vmatprep.subr.bf16.mxu0 0
    %227 = vmatpush1.bf16.msra.mxu0 0
    %228 = vmatprep.subr.bf16.mxu0 0
    %229 = vmatpush1.bf16.msra.mxu0 0
    %230 = vmatprep.subr.bf16.mxu0 0
    %231 = vmatpush1.bf16.msra.mxu0 0
    %232 = vmatprep.subr.bf16.mxu0 0
    %233 = vmatpush1.bf16.msra.mxu0 0
    %234 = vmatprep.subr.bf16.mxu0 0
    %235 = vmatpush1.bf16.msra.mxu0 0
    %236 = vmatprep.subr.bf16.mxu0 0
    %237 = vmatpush1.bf16.msra.mxu0 0
    %238 = vmatprep.subr.bf16.mxu0 0
    %239 = vmatpush1.bf16.msra.mxu0 0
    %240 = vmatprep.subr.bf16.mxu0 0
    %241 = vmatpush1.bf16.msra.mxu0 0
    %242 = vmatprep.subr.bf16.mxu0 0
    %243 = vmatpush1.bf16.msra.mxu0 0
    %244 = vmatprep.subr.bf16.mxu0 0
    %245 = vmatpush1.bf16.msra.mxu0 0
    %246 = vmatprep.subr.bf16.mxu0 0
    %247 = vmatpush1.bf16.msra.mxu0 0
    %248 = vmatprep.subr.bf16.mxu0 0
    %249 = vmatpush1.bf16.msra.mxu0 0
    %250 = vmatprep.mubr.bf16.mxu0 0
    %251 = vmatmul.mubr.bf16.gmra.mrb[0].mxu0 %v171
    %v252 = vpop.f32.mrb[0].mxu0
    %v253 = vadd.f32 %v81, %v252
    %v254 = vpop.f32.mrb[0].mxu0
    %v255 = vpop.f32.mrb[0].mxu0
    %v256 = vadd.f32 %v81, %v255
    %v257 = vpop.f32.mrb[0].mxu0
    %258 = vmatprep.mubr.bf16.mxu0 0
    %259 = vmatmul.mubr.bf16.gmra.mrb[0].mxu0 %v174
    %v260 = vpop.f32.mrb[0].mxu0
    %v261 = vadd.f32 %v81, %v260
    %v262 = vpop.f32.mrb[0].mxu0
    %v263 = vpop.f32.mrb[0].mxu0
    %v264 = vadd.f32 %v81, %v263
    %v265 = vpop.f32.mrb[0].mxu0
    %266 = vmatprep.mubr.bf16.mxu0 0
    %267 = vmatmul.mubr.bf16.gmra.mrb[0].mxu0 %v177
    %v268 = vpop.f32.mrb[0].mxu0
    %v269 = vadd.f32 %v81, %v268
    %v270 = vpop.f32.mrb[0].mxu0
    %v271 = vpop.f32.mrb[0].mxu0
    %v272 = vadd.f32 %v81, %v271
    %v273 = vpop.f32.mrb[0].mxu0
    %274 = vmatprep.mubr.bf16.mxu0 0
    %275 = vmatmul.mubr.bf16.gmra.mrb[0].mxu0 %v180
    %v276 = vpop.f32.mrb[0].mxu0
    %v277 = vadd.f32 %v81, %v276
    %v278 = vpop.f32.mrb[0].mxu0
    %v279 = vpop.f32.mrb[0].mxu0
    %v280 = vadd.f32 %v81, %v279
    %v281 = vpop.f32.mrb[0].mxu0
    %282 = vmatprep.mubr.bf16.mxu0 0
    %283 = vmatmul.mubr.bf16.gmra.mrb[0].mxu0 %v183
    %v284 = vpop.f32.mrb[0].mxu0
    %v285 = vadd.f32 %v81, %v284
    %v286 = vpop.f32.mrb[0].mxu0
    %v287 = vpop.f32.mrb[0].mxu0
    %v288 = vadd.f32 %v81, %v287
    %v289 = vpop.f32.mrb[0].mxu0
    %290 = vmatprep.mubr.bf16.mxu0 0
    %291 = vmatmul.mubr.bf16.gmra.mrb[0].mxu0 %v186
    %v292 = vpop.f32.mrb[0].mxu0
    %v293 = vadd.f32 %v81, %v292
    %v294 = vpop.f32.mrb[0].mxu0
    %v295 = vpop.f32.mrb[0].mxu0
    %v296 = vadd.f32 %v81, %v295
    %v297 = vpop.f32.mrb[0].mxu0
    %298 = vmatprep.mubr.bf16.mxu0 0
    %299 = vmatmul.mubr.bf16.gmra.mrb[0].mxu0 %v189
    %v300 = vpop.f32.mrb[0].mxu0
    %v301 = vadd.f32 %v81, %v300
    %v302 = vpop.f32.mrb[0].mxu0
    %v303 = vpop.f32.mrb[0].mxu0
    %v304 = vadd.f32 %v81, %v303
    %v305 = vpop.f32.mrb[0].mxu0
    %306 = vmatprep.mubr.bf16.mxu0 0
    %307 = vmatmul.mubr.bf16.gmra.mrb[0].mxu0 %v192
    %v308 = vpop.f32.mrb[0].mxu0
    %v309 = vadd.f32 %v81, %v308
    %v310 = vpop.f32.mrb[0].mxu0
    %v311 = vpop.f32.mrb[0].mxu0
    %v312 = vadd.f32 %v81, %v311
    %v313 = vpop.f32.mrb[0].mxu0
    %314 = vmatprep.mubr.bf16.mxu0 0
    %315 = vmatmul.mubr.bf16.gmra.mrb[0].mxu0 %v195
    %v316 = vpop.f32.mrb[0].mxu0
    %v317 = vadd.f32 %v81, %v316
    %v318 = vpop.f32.mrb[0].mxu0
    %v319 = vpop.f32.mrb[0].mxu0
    %v320 = vadd.f32 %v81, %v319
    %v321 = vpop.f32.mrb[0].mxu0
    %322 = vmatprep.mubr.bf16.mxu0 0
    %323 = vmatmul.mubr.bf16.gmra.mrb[0].mxu0 %v198
    %v324 = vpop.f32.mrb[0].mxu0
    %v325 = vadd.f32 %v81, %v324
    %v326 = vpop.f32.mrb[0].mxu0
    %v327 = vpop.f32.mrb[0].mxu0
    %v328 = vadd.f32 %v81, %v327
    %v329 = vpop.f32.mrb[0].mxu0
    %330 = vmatprep.mubr.bf16.mxu0 0
    %331 = vmatmul.mubr.bf16.gmra.mrb[0].mxu0 %v201
    %v332 = vpop.f32.mrb[0].mxu0
    %v333 = vadd.f32 %v81, %v332
    %v334 = vpop.f32.mrb[0].mxu0
    %v335 = vpop.f32.mrb[0].mxu0
    %v336 = vadd.f32 %v81, %v335
    %v337 = vpop.f32.mrb[0].mxu0
    %338 = vmatprep.mubr.bf16.mxu0 0
    %339 = vmatmul.mubr.bf16.gmra.mrb[0].mxu0 %v204
    %v340 = vpop.f32.mrb[0].mxu0
    %v341 = vadd.f32 %v81, %v340
    %v342 = vpop.f32.mrb[0].mxu0
    %v343 = vpop.f32.mrb[0].mxu0
    %v344 = vadd.f32 %v81, %v343
    %v345 = vpop.f32.mrb[0].mxu0
    %346 = vmatprep.mubr.bf16.mxu0 0
    %347 = vmatmul.mubr.bf16.gmra.mrb[0].mxu0 %v207
    %v348 = vpop.f32.mrb[0].mxu0
    %v349 = vadd.f32 %v81, %v348
    %v350 = vpop.f32.mrb[0].mxu0
    %v351 = vpop.f32.mrb[0].mxu0
    %v352 = vadd.f32 %v81, %v351
    %v353 = vpop.f32.mrb[0].mxu0
    %354 = vmatprep.mubr.bf16.mxu0 0
    %355 = vmatmul.mubr.bf16.gmra.mrb[0].mxu0 %v210
    %v356 = vpop.f32.mrb[0].mxu0
    %v357 = vadd.f32 %v81, %v356
    %v358 = vpop.f32.mrb[0].mxu0
    %v359 = vpop.f32.mrb[0].mxu0
    %v360 = vadd.f32 %v81, %v359
    %v361 = vpop.f32.mrb[0].mxu0
    %362 = vmatprep.mubr.bf16.mxu0 0
    %363 = vmatmul.mubr.bf16.gmra.mrb[0].mxu0 %v213
    %v364 = vpop.f32.mrb[0].mxu0
    %v365 = vadd.f32 %v81, %v364
    %v366 = vpop.f32.mrb[0].mxu0
    %v367 = vpop.f32.mrb[0].mxu0
    %v368 = vadd.f32 %v81, %v367
    %v369 = vpop.f32.mrb[0].mxu0
    %370 = vmatprep.mubr.bf16.mxu0 0
    %371 = vmatmul.mubr.bf16.gmra.mrb[0].mxu0 %v216
    %v372 = vpop.f32.mrb[0].mxu0
    %v373 = vadd.f32 %v81, %v372
    %v374 = vpop.f32.mrb[0].mxu0
    %v375 = vpop.f32.mrb[0].mxu0
    %v376 = vadd.f32 %v81, %v375
    %v377 = vpop.f32.mrb[0].mxu0
    %378 = vdwg.mxu0
    %v379 = vmax.f32 %v253, 0.0
    %v380 = vmax.f32 %v256, 0.0
    %v381 = vmax.f32 %v261, 0.0
    %v382 = vmax.f32 %v264, 0.0
    %v383 = vmax.f32 %v269, 0.0
    %v384 = vmax.f32 %v272, 0.0
    %v385 = vmax.f32 %v277, 0.0
    %v386 = vmax.f32 %v280, 0.0
    %v387 = vmax.f32 %v285, 0.0
    %v388 = vmax.f32 %v288, 0.0
    %v389 = vmax.f32 %v293, 0.0
    %v390 = vmax.f32 %v296, 0.0
    %v391 = vmax.f32 %v301, 0.0
    %v392 = vmax.f32 %v304, 0.0
    %v393 = vmax.f32 %v309, 0.0
    %v394 = vmax.f32 %v312, 0.0
    %v395 = vmax.f32 %v317, 0.0
    %v396 = vmax.f32 %v320, 0.0
    %v397 = vmax.f32 %v325, 0.0
    %v398 = vmax.f32 %v328, 0.0
    %v399 = vmax.f32 %v333, 0.0
    %v400 = vmax.f32 %v336, 0.0
    %v401 = vmax.f32 %v341, 0.0
    %v402 = vmax.f32 %v344, 0.0
    %v403 = vmax.f32 %v349, 0.0
    %v404 = vmax.f32 %v352, 0.0
    %v405 = vmax.f32 %v357, 0.0
    %v406 = vmax.f32 %v360, 0.0
    %v407 = vmax.f32 %v365, 0.0
    %v408 = vmax.f32 %v368, 0.0
    %v409 = vmax.f32 %v373, 0.0
    %v410 = vmax.f32 %v376, 0.0
    %v411 = vpack.c.bf16 %v380, %v379
    %v412 = vpack.c.bf16 %v382, %v381
    %v413 = vpack.c.bf16 %v384, %v383
    %v414 = vpack.c.bf16 %v386, %v385
    %v415 = vpack.c.bf16 %v388, %v387
    %v416 = vpack.c.bf16 %v390, %v389
    %v417 = vpack.c.bf16 %v392, %v391
    %v418 = vpack.c.bf16 %v394, %v393
    %v419 = vpack.c.bf16 %v396, %v395
    %v420 = vpack.c.bf16 %v398, %v397
    %v421 = vpack.c.bf16 %v400, %v399
    %v422 = vpack.c.bf16 %v402, %v401
    %v423 = vpack.c.bf16 %v404, %v403
    %v424 = vpack.c.bf16 %v406, %v405
    %v425 = vpack.c.bf16 %v408, %v407
    %v426 = vpack.c.bf16 %v410, %v409
    %v427 = vld [vmem:[%s3] sm:$0xff]
    %v428 = vld [vmem:[%s3 + $0x8] sm:$0xff]
    %v429 = vld [vmem:[%s3 + $0x10] sm:$0xff]
    %v430 = vld [vmem:[%s3 + $0x18] sm:$0xff]
    %v431 = vld [vmem:[%s3 + $0x20] sm:$0xff]
    %v432 = vld [vmem:[%s3 + $0x28] sm:$0xff]
    %v433 = vld [vmem:[%s3 + $0x30] sm:$0xff]
    %v434 = vld [vmem:[%s3 + $0x38] sm:$0xff]
    %v435 = vld [vmem:[%s3 + $0x40] sm:$0xff]
    %v436 = vld [vmem:[%s3 + $0x48] sm:$0xff]
    %v437 = vld [vmem:[%s3 + $0x50] sm:$0xff]
    %v438 = vld [vmem:[%s3 + $0x58] sm:$0xff]
    %v439 = vld [vmem:[%s3 + $0x60] sm:$0xff]
    %v440 = vld [vmem:[%s3 + $0x68] sm:$0xff]
    %v441 = vld [vmem:[%s3 + $0x70] sm:$0xff]
    %v442 = vld [vmem:[%s3 + $0x78] sm:$0xff]
    %v443 = vld [vmem:[%s4] sm:$0x3]
    %v445 = vlaneseq
    %v446 = vshrl.u32 %v445, 7
    %v447 = vsub.s32 0, %v446
    %v448 = vrot.slane %v443, %v447
    %v449 = vlaneseq
    %v450 = vshrl.u32 %v449, 7
    %v451 = vsub.s32 1, %v450
    %v452 = vrot.slane %v443, %v451
    %v471 = vunpack.c.l.b16 %v427
    %v472 = vunpack.c.h.b16 %v427
    %v473 = vunpack.c.l.b16 %v428
    %v474 = vunpack.c.h.b16 %v428
    %v475 = vunpack.c.l.b16 %v429
    %v476 = vunpack.c.h.b16 %v429
    %v477 = vunpack.c.l.b16 %v430
    %v478 = vunpack.c.h.b16 %v430
    %v479 = vunpack.c.l.b16 %v431
    %v480 = vunpack.c.h.b16 %v431
    %v481 = vunpack.c.l.b16 %v432
    %v482 = vunpack.c.h.b16 %v432
    %v483 = vunpack.c.l.b16 %v433
    %v484 = vunpack.c.h.b16 %v433
    %v485 = vunpack.c.l.b16 %v434
    %v486 = vunpack.c.h.b16 %v434
    %v487 = vunpack.c.l.b16 %v435
    %v488 = vunpack.c.h.b16 %v435
    %v489 = vunpack.c.l.b16 %v436
    %v490 = vunpack.c.h.b16 %v436
    %v491 = vunpack.c.l.b16 %v437
    %v492 = vunpack.c.h.b16 %v437
    %v493 = vunpack.c.l.b16 %v438
    %v494 = vunpack.c.h.b16 %v438
    %v495 = vunpack.c.l.b16 %v439
    %v496 = vunpack.c.h.b16 %v439
    %v497 = vunpack.c.l.b16 %v440
    %v498 = vunpack.c.h.b16 %v440
    %v499 = vunpack.c.l.b16 %v441
    %v500 = vunpack.c.h.b16 %v441
    %v501 = vunpack.c.l.b16 %v442
    %v502 = vunpack.c.h.b16 %v442
    %v503 = vpack.c.b16 %v473, %v471
    %v504 = vpack.c.b16 %v474, %v472
    %v505 = vpack.c.b16 %v477, %v475
    %v506 = vpack.c.b16 %v478, %v476
    %v507 = vpack.c.b16 %v481, %v479
    %v508 = vpack.c.b16 %v482, %v480
    %v509 = vpack.c.b16 %v485, %v483
    %v510 = vpack.c.b16 %v486, %v484
    %v511 = vpack.c.b16 %v489, %v487
    %v512 = vpack.c.b16 %v490, %v488
    %v513 = vpack.c.b16 %v493, %v491
    %v514 = vpack.c.b16 %v494, %v492
    %v515 = vpack.c.b16 %v497, %v495
    %v516 = vpack.c.b16 %v498, %v496
    %v517 = vpack.c.b16 %v501, %v499
    %v518 = vpack.c.b16 %v502, %v500
    %535 = vmatprep.subr.bf16.mxu0 %v504
    %536 = vmatpush1.bf16.msra.mxu0 %v503
    %537 = vmatprep.subr.bf16.mxu0 %v506
    %538 = vmatpush1.bf16.msra.mxu0 %v505
    %539 = vmatprep.subr.bf16.mxu0 %v508
    %540 = vmatpush1.bf16.msra.mxu0 %v507
    %541 = vmatprep.subr.bf16.mxu0 %v510
    %542 = vmatpush1.bf16.msra.mxu0 %v509
    %543 = vmatprep.subr.bf16.mxu0 %v512
    %544 = vmatpush1.bf16.msra.mxu0 %v511
    %545 = vmatprep.subr.bf16.mxu0 %v514
    %546 = vmatpush1.bf16.msra.mxu0 %v513
    %547 = vmatprep.subr.bf16.mxu0 %v516
    %548 = vmatpush1.bf16.msra.mxu0 %v515
    %549 = vmatprep.subr.bf16.mxu0 %v518
    %550 = vmatpush1.bf16.msra.mxu0 %v517
    %551 = vmatprep.subr.bf16.mxu0 0
    %552 = vmatpush1.bf16.msra.mxu0 0
    %553 = vmatprep.subr.bf16.mxu0 0
    %554 = vmatpush1.bf16.msra.mxu0 0
    %555 = vmatprep.subr.bf16.mxu0 0
    %556 = vmatpush1.bf16.msra.mxu0 0
    %557 = vmatprep.subr.bf16.mxu0 0
    %558 = vmatpush1.bf16.msra.mxu0 0
    %559 = vmatprep.subr.bf16.mxu0 0
    %560 = vmatpush1.bf16.msra.mxu0 0
    %561 = vmatprep.subr.bf16.mxu0 0
    %562 = vmatpush1.bf16.msra.mxu0 0
    %563 = vmatprep.subr.bf16.mxu0 0
    %564 = vmatpush1.bf16.msra.mxu0 0
    %565 = vmatprep.subr.bf16.mxu0 0
    %566 = vmatpush1.bf16.msra.mxu0 0
    %567 = vmatprep.mubr.bf16.mxu0 0
    %568 = vmatmul.mubr.bf16.gmra.mrb[0].mxu0 %v411
    %v569 = vpop.f32.mrb[0].mxu0
    %v570 = vadd.f32 %v448, %v569
    %v571 = vpop.f32.mrb[0].mxu0
    %v572 = vadd.f32 %v452, %v571
    %v573 = vpop.f32.mrb[0].mxu0
    %v574 = vadd.f32 %v448, %v573
    %v575 = vpop.f32.mrb[0].mxu0
    %v576 = vadd.f32 %v452, %v575
    %577 = vmatprep.mubr.bf16.mxu0 0
    %578 = vmatmul.mubr.bf16.gmra.mrb[0].mxu0 %v412
    %v579 = vpop.f32.mrb[0].mxu0
    %v580 = vadd.f32 %v448, %v579
    %v581 = vpop.f32.mrb[0].mxu0
    %v582 = vadd.f32 %v452, %v581
    %v583 = vpop.f32.mrb[0].mxu0
    %v584 = vadd.f32 %v448, %v583
    %v585 = vpop.f32.mrb[0].mxu0
    %v586 = vadd.f32 %v452, %v585
    %587 = vmatprep.mubr.bf16.mxu0 0
    %588 = vmatmul.mubr.bf16.gmra.mrb[0].mxu0 %v413
    %v589 = vpop.f32.mrb[0].mxu0
    %v590 = vadd.f32 %v448, %v589
    %v591 = vpop.f32.mrb[0].mxu0
    %v592 = vadd.f32 %v452, %v591
    %v593 = vpop.f32.mrb[0].mxu0
    %v594 = vadd.f32 %v448, %v593
    %v595 = vpop.f32.mrb[0].mxu0
    %v596 = vadd.f32 %v452, %v595
    %597 = vmatprep.mubr.bf16.mxu0 0
    %598 = vmatmul.mubr.bf16.gmra.mrb[0].mxu0 %v414
    %v599 = vpop.f32.mrb[0].mxu0
    %v600 = vadd.f32 %v448, %v599
    %v601 = vpop.f32.mrb[0].mxu0
    %v602 = vadd.f32 %v452, %v601
    %v603 = vpop.f32.mrb[0].mxu0
    %v604 = vadd.f32 %v448, %v603
    %v605 = vpop.f32.mrb[0].mxu0
    %v606 = vadd.f32 %v452, %v605
    %607 = vmatprep.mubr.bf16.mxu0 0
    %608 = vmatmul.mubr.bf16.gmra.mrb[0].mxu0 %v415
    %v609 = vpop.f32.mrb[0].mxu0
    %v610 = vadd.f32 %v448, %v609
    %v611 = vpop.f32.mrb[0].mxu0
    %v612 = vadd.f32 %v452, %v611
    %v613 = vpop.f32.mrb[0].mxu0
    %v614 = vadd.f32 %v448, %v613
    %v615 = vpop.f32.mrb[0].mxu0
    %v616 = vadd.f32 %v452, %v615
    %617 = vmatprep.mubr.bf16.mxu0 0
    %618 = vmatmul.mubr.bf16.gmra.mrb[0].mxu0 %v416
    %v619 = vpop.f32.mrb[0].mxu0
    %v620 = vadd.f32 %v448, %v619
    %v621 = vpop.f32.mrb[0].mxu0
    %v622 = vadd.f32 %v452, %v621
    %v623 = vpop.f32.mrb[0].mxu0
    %v624 = vadd.f32 %v448, %v623
    %v625 = vpop.f32.mrb[0].mxu0
    %v626 = vadd.f32 %v452, %v625
    %627 = vmatprep.mubr.bf16.mxu0 0
    %628 = vmatmul.mubr.bf16.gmra.mrb[0].mxu0 %v417
    %v629 = vpop.f32.mrb[0].mxu0
    %v630 = vadd.f32 %v448, %v629
    %v631 = vpop.f32.mrb[0].mxu0
    %v632 = vadd.f32 %v452, %v631
    %v633 = vpop.f32.mrb[0].mxu0
    %v634 = vadd.f32 %v448, %v633
    %v635 = vpop.f32.mrb[0].mxu0
    %v636 = vadd.f32 %v452, %v635
    %637 = vmatprep.mubr.bf16.mxu0 0
    %638 = vmatmul.mubr.bf16.gmra.mrb[0].mxu0 %v418
    %v639 = vpop.f32.mrb[0].mxu0
    %v640 = vadd.f32 %v448, %v639
    %v641 = vpop.f32.mrb[0].mxu0
    %v642 = vadd.f32 %v452, %v641
    %v643 = vpop.f32.mrb[0].mxu0
    %v644 = vadd.f32 %v448, %v643
    %v645 = vpop.f32.mrb[0].mxu0
    %v646 = vadd.f32 %v452, %v645
    %647 = vmatprep.mubr.bf16.mxu0 0
    %648 = vmatmul.mubr.bf16.gmra.mrb[0].mxu0 %v419
    %v649 = vpop.f32.mrb[0].mxu0
    %v650 = vadd.f32 %v448, %v649
    %v651 = vpop.f32.mrb[0].mxu0
    %v652 = vadd.f32 %v452, %v651
    %v653 = vpop.f32.mrb[0].mxu0
    %v654 = vadd.f32 %v448, %v653
    %v655 = vpop.f32.mrb[0].mxu0
    %v656 = vadd.f32 %v452, %v655
    %657 = vmatprep.mubr.bf16.mxu0 0
    %658 = vmatmul.mubr.bf16.gmra.mrb[0].mxu0 %v420
    %v659 = vpop.f32.mrb[0].mxu0
    %v660 = vadd.f32 %v448, %v659
    %v661 = vpop.f32.mrb[0].mxu0
    %v662 = vadd.f32 %v452, %v661
    %v663 = vpop.f32.mrb[0].mxu0
    %v664 = vadd.f32 %v448, %v663
    %v665 = vpop.f32.mrb[0].mxu0
    %v666 = vadd.f32 %v452, %v665
    %667 = vmatprep.mubr.bf16.mxu0 0
    %668 = vmatmul.mubr.bf16.gmra.mrb[0].mxu0 %v421
    %v669 = vpop.f32.mrb[0].mxu0
    %v670 = vadd.f32 %v448, %v669
    %v671 = vpop.f32.mrb[0].mxu0
    %v672 = vadd.f32 %v452, %v671
    %v673 = vpop.f32.mrb[0].mxu0
    %v674 = vadd.f32 %v448, %v673
    %v675 = vpop.f32.mrb[0].mxu0
    %v676 = vadd.f32 %v452, %v675
    %677 = vmatprep.mubr.bf16.mxu0 0
    %678 = vmatmul.mubr.bf16.gmra.mrb[0].mxu0 %v422
    %v679 = vpop.f32.mrb[0].mxu0
    %v680 = vadd.f32 %v448, %v679
    %v681 = vpop.f32.mrb[0].mxu0
    %v682 = vadd.f32 %v452, %v681
    %v683 = vpop.f32.mrb[0].mxu0
    %v684 = vadd.f32 %v448, %v683
    %v685 = vpop.f32.mrb[0].mxu0
    %v686 = vadd.f32 %v452, %v685
    %687 = vmatprep.mubr.bf16.mxu0 0
    %688 = vmatmul.mubr.bf16.gmra.mrb[0].mxu0 %v423
    %v689 = vpop.f32.mrb[0].mxu0
    %v690 = vadd.f32 %v448, %v689
    %v691 = vpop.f32.mrb[0].mxu0
    %v692 = vadd.f32 %v452, %v691
    %v693 = vpop.f32.mrb[0].mxu0
    %v694 = vadd.f32 %v448, %v693
    %v695 = vpop.f32.mrb[0].mxu0
    %v696 = vadd.f32 %v452, %v695
    %697 = vmatprep.mubr.bf16.mxu0 0
    %698 = vmatmul.mubr.bf16.gmra.mrb[0].mxu0 %v424
    %v699 = vpop.f32.mrb[0].mxu0
    %v700 = vadd.f32 %v448, %v699
    %v701 = vpop.f32.mrb[0].mxu0
    %v702 = vadd.f32 %v452, %v701
    %v703 = vpop.f32.mrb[0].mxu0
    %v704 = vadd.f32 %v448, %v703
    %v705 = vpop.f32.mrb[0].mxu0
    %v706 = vadd.f32 %v452, %v705
    %707 = vmatprep.mubr.bf16.mxu0 0
    %708 = vmatmul.mubr.bf16.gmra.mrb[0].mxu0 %v425
    %v709 = vpop.f32.mrb[0].mxu0
    %v710 = vadd.f32 %v448, %v709
    %v711 = vpop.f32.mrb[0].mxu0
    %v712 = vadd.f32 %v452, %v711
    %v713 = vpop.f32.mrb[0].mxu0
    %v714 = vadd.f32 %v448, %v713
    %v715 = vpop.f32.mrb[0].mxu0
    %v716 = vadd.f32 %v452, %v715
    %717 = vmatprep.mubr.bf16.mxu0 0
    %718 = vmatmul.mubr.bf16.gmra.mrb[0].mxu0 %v426
    %v719 = vpop.f32.mrb[0].mxu0
    %v720 = vadd.f32 %v448, %v719
    %v721 = vpop.f32.mrb[0].mxu0
    %v722 = vadd.f32 %v452, %v721
    %v723 = vpop.f32.mrb[0].mxu0
    %v724 = vadd.f32 %v448, %v723
    %v725 = vpop.f32.mrb[0].mxu0
    %v726 = vadd.f32 %v452, %v725
    %727 = vdwg.mxu0
    %v728 = vmax.f32 %v570, 0.0
    %v729 = vmax.f32 %v572, 0.0
    %v730 = vmax.f32 %v574, 0.0
    %v731 = vmax.f32 %v576, 0.0
    %v732 = vmax.f32 %v580, 0.0
    %v733 = vmax.f32 %v582, 0.0
    %v734 = vmax.f32 %v584, 0.0
    %v735 = vmax.f32 %v586, 0.0
    %v736 = vmax.f32 %v590, 0.0
    %v737 = vmax.f32 %v592, 0.0
    %v738 = vmax.f32 %v594, 0.0
    %v739 = vmax.f32 %v596, 0.0
    %v740 = vmax.f32 %v600, 0.0
    %v741 = vmax.f32 %v602, 0.0
    %v742 = vmax.f32 %v604, 0.0
    %v743 = vmax.f32 %v606, 0.0
    %v744 = vmax.f32 %v610, 0.0
    %v745 = vmax.f32 %v612, 0.0
    %v746 = vmax.f32 %v614, 0.0
    %v747 = vmax.f32 %v616, 0.0
    %v748 = vmax.f32 %v620, 0.0
    %v749 = vmax.f32 %v622, 0.0
    %v750 = vmax.f32 %v624, 0.0
    %v751 = vmax.f32 %v626, 0.0
    %v752 = vmax.f32 %v630, 0.0
    %v753 = vmax.f32 %v632, 0.0
    %v754 = vmax.f32 %v634, 0.0
    %v755 = vmax.f32 %v636, 0.0
    %v756 = vmax.f32 %v640, 0.0
    %v757 = vmax.f32 %v642, 0.0
    %v758 = vmax.f32 %v644, 0.0
    %v759 = vmax.f32 %v646, 0.0
    %v760 = vmax.f32 %v650, 0.0
    %v761 = vmax.f32 %v652, 0.0
    %v762 = vmax.f32 %v654, 0.0
    %v763 = vmax.f32 %v656, 0.0
    %v764 = vmax.f32 %v660, 0.0
    %v765 = vmax.f32 %v662, 0.0
    %v766 = vmax.f32 %v664, 0.0
    %v767 = vmax.f32 %v666, 0.0
    %v768 = vmax.f32 %v670, 0.0
    %v769 = vmax.f32 %v672, 0.0
    %v770 = vmax.f32 %v674, 0.0
    %v771 = vmax.f32 %v676, 0.0
    %v772 = vmax.f32 %v680, 0.0
    %v773 = vmax.f32 %v682, 0.0
    %v774 = vmax.f32 %v684, 0.0
    %v775 = vmax.f32 %v686, 0.0
    %v776 = vmax.f32 %v690, 0.0
    %v777 = vmax.f32 %v692, 0.0
    %v778 = vmax.f32 %v694, 0.0
    %v779 = vmax.f32 %v696, 0.0
    %v780 = vmax.f32 %v700, 0.0
    %v781 = vmax.f32 %v702, 0.0
    %v782 = vmax.f32 %v704, 0.0
    %v783 = vmax.f32 %v706, 0.0
    %v784 = vmax.f32 %v710, 0.0
    %v785 = vmax.f32 %v712, 0.0
    %v786 = vmax.f32 %v714, 0.0
    %v787 = vmax.f32 %v716, 0.0
    %v788 = vmax.f32 %v720, 0.0
    %v789 = vmax.f32 %v722, 0.0
    %v790 = vmax.f32 %v724, 0.0
    %v791 = vmax.f32 %v726, 0.0
    %v792 = vpack.c.bf16 %v730, %v728
    %v793 = vpack.c.bf16 %v731, %v729
    %v794 = vpack.c.bf16 %v734, %v732
    %v795 = vpack.c.bf16 %v735, %v733
    %v796 = vpack.c.bf16 %v738, %v736
    %v797 = vpack.c.bf16 %v739, %v737
    %v798 = vpack.c.bf16 %v742, %v740
    %v799 = vpack.c.bf16 %v743, %v741
    %v800 = vpack.c.bf16 %v746, %v744
    %v801 = vpack.c.bf16 %v747, %v745
    %v802 = vpack.c.bf16 %v750, %v748
    %v803 = vpack.c.bf16 %v751, %v749
    %v804 = vpack.c.bf16 %v754, %v752
    %v805 = vpack.c.bf16 %v755, %v753
    %v806 = vpack.c.bf16 %v758, %v756
    %v807 = vpack.c.bf16 %v759, %v757
    %v808 = vpack.c.bf16 %v762, %v760
    %v809 = vpack.c.bf16 %v763, %v761
    %v810 = vpack.c.bf16 %v766, %v764
    %v811 = vpack.c.bf16 %v767, %v765
    %v812 = vpack.c.bf16 %v770, %v768
    %v813 = vpack.c.bf16 %v771, %v769
    %v814 = vpack.c.bf16 %v774, %v772
    %v815 = vpack.c.bf16 %v775, %v773
    %v816 = vpack.c.bf16 %v778, %v776
    %v817 = vpack.c.bf16 %v779, %v777
    %v818 = vpack.c.bf16 %v782, %v780
    %v819 = vpack.c.bf16 %v783, %v781
    %v820 = vpack.c.bf16 %v786, %v784
    %v821 = vpack.c.bf16 %v787, %v785
    %v822 = vpack.c.bf16 %v790, %v788
    %v823 = vpack.c.bf16 %v791, %v789
    %v824 = vld [vmem:[#allocation2] sm:$0xff]
    %v825 = vld [vmem:[#allocation2 + $0x8] sm:$0xff]
    %v826 = vld [vmem:[#allocation2 + $0x10] sm:$0xff]
    %v827 = vld [vmem:[#allocation2 + $0x18] sm:$0xff]
    %v828 = vld [vmem:[#allocation2 + $0x20] sm:$0xff]
    %v829 = vld [vmem:[#allocation2 + $0x28] sm:$0xff]
    %v830 = vld [vmem:[#allocation2 + $0x30] sm:$0xff]
    %v831 = vld [vmem:[#allocation2 + $0x38] sm:$0xff]
    %v832 = vld [vmem:[#allocation2 + $0x40] sm:$0xff]
    %v833 = vld [vmem:[#allocation2 + $0x48] sm:$0xff]
    %v834 = vld [vmem:[#allocation2 + $0x50] sm:$0xff]
    %v835 = vld [vmem:[#allocation2 + $0x58] sm:$0xff]
    %v836 = vld [vmem:[#allocation2 + $0x60] sm:$0xff]
    %v837 = vld [vmem:[#allocation2 + $0x68] sm:$0xff]
    %v838 = vld [vmem:[#allocation2 + $0x70] sm:$0xff]
    %v839 = vld [vmem:[#allocation2 + $0x78] sm:$0xff]
    %v840 = vld [vmem:[#allocation2 + $0x80] sm:$0xff]
    %v841 = vld [vmem:[#allocation2 + $0x88] sm:$0xff]
    %v842 = vld [vmem:[#allocation2 + $0x90] sm:$0xff]
    %v843 = vld [vmem:[#allocation2 + $0x98] sm:$0xff]
    %v844 = vld [vmem:[#allocation2 + $0xa0] sm:$0xff]
    %v845 = vld [vmem:[#allocation2 + $0xa8] sm:$0xff]
    %v846 = vld [vmem:[#allocation2 + $0xb0] sm:$0xff]
    %v847 = vld [vmem:[#allocation2 + $0xb8] sm:$0xff]
    %v848 = vld [vmem:[#allocation2 + $0xc0] sm:$0xff]
    %v849 = vld [vmem:[#allocation2 + $0xc8] sm:$0xff]
    %v850 = vld [vmem:[#allocation2 + $0xd0] sm:$0xff]
    %v851 = vld [vmem:[#allocation2 + $0xd8] sm:$0xff]
    %v852 = vld [vmem:[#allocation2 + $0xe0] sm:$0xff]
    %v853 = vld [vmem:[#allocation2 + $0xe8] sm:$0xff]
    %v854 = vld [vmem:[#allocation2 + $0xf0] sm:$0xff]
    %v855 = vld [vmem:[#allocation2 + $0xf8] sm:$0xff]
    %v856 = vld [vmem:[#allocation2 + $0x100] sm:$0xff]
    %v857 = vld [vmem:[#allocation2 + $0x108] sm:$0xff]
    %v858 = vld [vmem:[#allocation2 + $0x110] sm:$0xff]
    %v859 = vld [vmem:[#allocation2 + $0x118] sm:$0xff]
    %v860 = vld [vmem:[#allocation2 + $0x120] sm:$0xff]
    %v861 = vld [vmem:[#allocation2 + $0x128] sm:$0xff]
    %v862 = vld [vmem:[#allocation2 + $0x130] sm:$0xff]
    %v863 = vld [vmem:[#allocation2 + $0x138] sm:$0xff]
    %v864 = vld [vmem:[#allocation2 + $0x140] sm:$0xff]
    %v865 = vld [vmem:[#allocation2 + $0x148] sm:$0xff]
    %v866 = vld [vmem:[#allocation2 + $0x150] sm:$0xff]
    %v867 = vld [vmem:[#allocation2 + $0x158] sm:$0xff]
    %v868 = vld [vmem:[#allocation2 + $0x160] sm:$0xff]
    %v869 = vld [vmem:[#allocation2 + $0x168] sm:$0xff]
    %v870 = vld [vmem:[#allocation2 + $0x170] sm:$0xff]
    %v871 = vld [vmem:[#allocation2 + $0x178] sm:$0xff]
    %v872 = vld [vmem:[#allocation2 + $0x180] sm:$0xff]
    %v873 = vld [vmem:[#allocation2 + $0x188] sm:$0xff]
    %v874 = vld [vmem:[#allocation2 + $0x190] sm:$0xff]
    %v875 = vld [vmem:[#allocation2 + $0x198] sm:$0xff]
    %v876 = vld [vmem:[#allocation2 + $0x1a0] sm:$0xff]
    %v877 = vld [vmem:[#allocation2 + $0x1a8] sm:$0xff]
    %v878 = vld [vmem:[#allocation2 + $0x1b0] sm:$0xff]
    %v879 = vld [vmem:[#allocation2 + $0x1b8] sm:$0xff]
    %v880 = vld [vmem:[#allocation2 + $0x1c0] sm:$0xff]
    %v881 = vld [vmem:[#allocation2 + $0x1c8] sm:$0xff]
    %v882 = vld [vmem:[#allocation2 + $0x1d0] sm:$0xff]
    %v883 = vld [vmem:[#allocation2 + $0x1d8] sm:$0xff]
    %v884 = vld [vmem:[#allocation2 + $0x1e0] sm:$0xff]
    %v885 = vld [vmem:[#allocation2 + $0x1e8] sm:$0xff]
    %v886 = vld [vmem:[#allocation2 + $0x1f0] sm:$0xff]
    %v887 = vld [vmem:[#allocation2 + $0x1f8] sm:$0xff]
    %v888 = vld [vmem:[%s6] sm:$0xf]
    %v890 = vlaneseq
    %v891 = vshrl.u32 %v890, 7
    %v892 = vsub.s32 0, %v891
    %v893 = vrot.slane %v888, %v892
    %v894 = vlaneseq
    %v895 = vshrl.u32 %v894, 7
    %v896 = vsub.s32 1, %v895
    %v897 = vrot.slane %v888, %v896
    %v898 = vlaneseq
    %v899 = vshrl.u32 %v898, 7
    %v900 = vsub.s32 2, %v899
    %v901 = vrot.slane %v888, %v900
    %v902 = vlaneseq
    %v903 = vshrl.u32 %v902, 7
    %v904 = vsub.s32 3, %v903
    %v905 = vrot.slane %v888, %v904
    %v974 = vunpack.c.l.b16 %v824
    %v975 = vunpack.c.h.b16 %v824
    %v976 = vunpack.c.l.b16 %v825
    %v977 = vunpack.c.h.b16 %v825
    %v978 = vunpack.c.l.b16 %v826
    %v979 = vunpack.c.h.b16 %v826
    %v980 = vunpack.c.l.b16 %v827
    %v981 = vunpack.c.h.b16 %v827
    %v982 = vunpack.c.l.b16 %v828
    %v983 = vunpack.c.h.b16 %v828
    %v984 = vunpack.c.l.b16 %v829
    %v985 = vunpack.c.h.b16 %v829
    %v986 = vunpack.c.l.b16 %v830
    %v987 = vunpack.c.h.b16 %v830
    %v988 = vunpack.c.l.b16 %v831
    %v989 = vunpack.c.h.b16 %v831
    %v990 = vunpack.c.l.b16 %v832
    %v991 = vunpack.c.h.b16 %v832
    %v992 = vunpack.c.l.b16 %v833
    %v993 = vunpack.c.h.b16 %v833
    %v994 = vunpack.c.l.b16 %v834
    %v995 = vunpack.c.h.b16 %v834
    %v996 = vunpack.c.l.b16 %v835
    %v997 = vunpack.c.h.b16 %v835
    %v998 = vunpack.c.l.b16 %v836
    %v999 = vunpack.c.h.b16 %v836
    %v1000 = vunpack.c.l.b16 %v837
    %v1001 = vunpack.c.h.b16 %v837
    %v1002 = vunpack.c.l.b16 %v838
    %v1003 = vunpack.c.h.b16 %v838
    %v1004 = vunpack.c.l.b16 %v839
    %v1005 = vunpack.c.h.b16 %v839
    %v1006 = vunpack.c.l.b16 %v840
    %v1007 = vunpack.c.h.b16 %v840
    %v1008 = vunpack.c.l.b16 %v841
    %v1009 = vunpack.c.h.b16 %v841
    %v1010 = vunpack.c.l.b16 %v842
    %v1011 = vunpack.c.h.b16 %v842
    %v1012 = vunpack.c.l.b16 %v843
    %v1013 = vunpack.c.h.b16 %v843
    %v1014 = vunpack.c.l.b16 %v844
    %v1015 = vunpack.c.h.b16 %v844
    %v1016 = vunpack.c.l.b16 %v845
    %v1017 = vunpack.c.h.b16 %v845
    %v1018 = vunpack.c.l.b16 %v846
    %v1019 = vunpack.c.h.b16 %v846
    %v1020 = vunpack.c.l.b16 %v847
    %v1021 = vunpack.c.h.b16 %v847
    %v1022 = vunpack.c.l.b16 %v848
    %v1023 = vunpack.c.h.b16 %v848
    %v1024 = vunpack.c.l.b16 %v849
    %v1025 = vunpack.c.h.b16 %v849
    %v1026 = vunpack.c.l.b16 %v850
    %v1027 = vunpack.c.h.b16 %v850
    %v1028 = vunpack.c.l.b16 %v851
    %v1029 = vunpack.c.h.b16 %v851
    %v1030 = vunpack.c.l.b16 %v852
    %v1031 = vunpack.c.h.b16 %v852
    %v1032 = vunpack.c.l.b16 %v853
    %v1033 = vunpack.c.h.b16 %v853
    %v1034 = vunpack.c.l.b16 %v854
    %v1035 = vunpack.c.h.b16 %v854
    %v1036 = vunpack.c.l.b16 %v855
    %v1037 = vunpack.c.h.b16 %v855
    %v1038 = vunpack.c.l.b16 %v856
    %v1039 = vunpack.c.h.b16 %v856
    %v1040 = vunpack.c.l.b16 %v857
    %v1041 = vunpack.c.h.b16 %v857
    %v1042 = vunpack.c.l.b16 %v858
    %v1043 = vunpack.c.h.b16 %v858
    %v1044 = vunpack.c.l.b16 %v859
    %v1045 = vunpack.c.h.b16 %v859
    %v1046 = vunpack.c.l.b16 %v860
    %v1047 = vunpack.c.h.b16 %v860
    %v1048 = vunpack.c.l.b16 %v861
    %v1049 = vunpack.c.h.b16 %v861
    %v1050 = vunpack.c.l.b16 %v862
    %v1051 = vunpack.c.h.b16 %v862
    %v1052 = vunpack.c.l.b16 %v863
    %v1053 = vunpack.c.h.b16 %v863
    %v1054 = vunpack.c.l.b16 %v864
    %v1055 = vunpack.c.h.b16 %v864
    %v1056 = vunpack.c.l.b16 %v865
    %v1057 = vunpack.c.h.b16 %v865
    %v1058 = vunpack.c.l.b16 %v866
    %v1059 = vunpack.c.h.b16 %v866
    %v1060 = vunpack.c.l.b16 %v867
    %v1061 = vunpack.c.h.b16 %v867
    %v1062 = vunpack.c.l.b16 %v868
    %v1063 = vunpack.c.h.b16 %v868
    %v1064 = vunpack.c.l.b16 %v869
    %v1065 = vunpack.c.h.b16 %v869
    %v1066 = vunpack.c.l.b16 %v870
    %v1067 = vunpack.c.h.b16 %v870
    %v1068 = vunpack.c.l.b16 %v871
    %v1069 = vunpack.c.h.b16 %v871
    %v1070 = vunpack.c.l.b16 %v872
    %v1071 = vunpack.c.h.b16 %v872
    %v1072 = vunpack.c.l.b16 %v873
    %v1073 = vunpack.c.h.b16 %v873
    %v1074 = vunpack.c.l.b16 %v874
    %v1075 = vunpack.c.h.b16 %v874
    %v1076 = vunpack.c.l.b16 %v875
    %v1077 = vunpack.c.h.b16 %v875
    %v1078 = vunpack.c.l.b16 %v876
    %v1079 = vunpack.c.h.b16 %v876
    %v1080 = vunpack.c.l.b16 %v877
    %v1081 = vunpack.c.h.b16 %v877
    %v1082 = vunpack.c.l.b16 %v878
    %v1083 = vunpack.c.h.b16 %v878
    %v1084 = vunpack.c.l.b16 %v879
    %v1085 = vunpack.c.h.b16 %v879
    %v1086 = vunpack.c.l.b16 %v880
    %v1087 = vunpack.c.h.b16 %v880
    %v1088 = vunpack.c.l.b16 %v881
    %v1089 = vunpack.c.h.b16 %v881
    %v1090 = vunpack.c.l.b16 %v882
    %v1091 = vunpack.c.h.b16 %v882
    %v1092 = vunpack.c.l.b16 %v883
    %v1093 = vunpack.c.h.b16 %v883
    %v1094 = vunpack.c.l.b16 %v884
    %v1095 = vunpack.c.h.b16 %v884
    %v1096 = vunpack.c.l.b16 %v885
    %v1097 = vunpack.c.h.b16 %v885
    %v1098 = vunpack.c.l.b16 %v886
    %v1099 = vunpack.c.h.b16 %v886
    %v1100 = vunpack.c.l.b16 %v887
    %v1101 = vunpack.c.h.b16 %v887
    %v1102 = vpack.c.b16 %v978, %v974
    %v1103 = vpack.c.b16 %v979, %v975
    %v1104 = vpack.c.b16 %v980, %v976
    %v1105 = vpack.c.b16 %v981, %v977
    %v1106 = vpack.c.b16 %v986, %v982
    %v1107 = vpack.c.b16 %v987, %v983
    %v1108 = vpack.c.b16 %v988, %v984
    %v1109 = vpack.c.b16 %v989, %v985
    %v1110 = vpack.c.b16 %v994, %v990
    %v1111 = vpack.c.b16 %v995, %v991
    %v1112 = vpack.c.b16 %v996, %v992
    %v1113 = vpack.c.b16 %v997, %v993
    %v1114 = vpack.c.b16 %v1002, %v998
    %v1115 = vpack.c.b16 %v1003, %v999
    %v1116 = vpack.c.b16 %v1004, %v1000
    %v1117 = vpack.c.b16 %v1005, %v1001
    %v1118 = vpack.c.b16 %v1010, %v1006
    %v1119 = vpack.c.b16 %v1011, %v1007
    %v1120 = vpack.c.b16 %v1012, %v1008
    %v1121 = vpack.c.b16 %v1013, %v1009
    %v1122 = vpack.c.b16 %v1018, %v1014
    %v1123 = vpack.c.b16 %v1019, %v1015
    %v1124 = vpack.c.b16 %v1020, %v1016
    %v1125 = vpack.c.b16 %v1021, %v1017
    %v1126 = vpack.c.b16 %v1026, %v1022
    %v1127 = vpack.c.b16 %v1027, %v1023
    %v1128 = vpack.c.b16 %v1028, %v1024
    %v1129 = vpack.c.b16 %v1029, %v1025
    %v1130 = vpack.c.b16 %v1034, %v1030
    %v1131 = vpack.c.b16 %v1035, %v1031
    %v1132 = vpack.c.b16 %v1036, %v1032
    %v1133 = vpack.c.b16 %v1037, %v1033
    %v1134 = vpack.c.b16 %v1042, %v1038
    %v1135 = vpack.c.b16 %v1043, %v1039
    %v1136 = vpack.c.b16 %v1044, %v1040
    %v1137 = vpack.c.b16 %v1045, %v1041
    %v1138 = vpack.c.b16 %v1050, %v1046
    %v1139 = vpack.c.b16 %v1051, %v1047
    %v1140 = vpack.c.b16 %v1052, %v1048
    %v1141 = vpack.c.b16 %v1053, %v1049
    %v1142 = vpack.c.b16 %v1058, %v1054
    %v1143 = vpack.c.b16 %v1059, %v1055
    %v1144 = vpack.c.b16 %v1060, %v1056
    %v1145 = vpack.c.b16 %v1061, %v1057
    %v1146 = vpack.c.b16 %v1066, %v1062
    %v1147 = vpack.c.b16 %v1067, %v1063
    %v1148 = vpack.c.b16 %v1068, %v1064
    %v1149 = vpack.c.b16 %v1069, %v1065
    %v1150 = vpack.c.b16 %v1074, %v1070
    %v1151 = vpack.c.b16 %v1075, %v1071
    %v1152 = vpack.c.b16 %v1076, %v1072
    %v1153 = vpack.c.b16 %v1077, %v1073
    %v1154 = vpack.c.b16 %v1082, %v1078
    %v1155 = vpack.c.b16 %v1083, %v1079
    %v1156 = vpack.c.b16 %v1084, %v1080
    %v1157 = vpack.c.b16 %v1085, %v1081
    %v1158 = vpack.c.b16 %v1090, %v1086
    %v1159 = vpack.c.b16 %v1091, %v1087
    %v1160 = vpack.c.b16 %v1092, %v1088
    %v1161 = vpack.c.b16 %v1093, %v1089
    %v1162 = vpack.c.b16 %v1098, %v1094
    %v1163 = vpack.c.b16 %v1099, %v1095
    %v1164 = vpack.c.b16 %v1100, %v1096
    %v1165 = vpack.c.b16 %v1101, %v1097
    %1230 = vmatprep.subr.bf16.mxu0 %v1103
    %1231 = vmatpush1.bf16.msra.mxu0 %v1102
    %1232 = vmatprep.subr.bf16.mxu0 %v1107
    %1233 = vmatpush1.bf16.msra.mxu0 %v1106
    %1234 = vmatprep.subr.bf16.mxu0 %v1111
    %1235 = vmatpush1.bf16.msra.mxu0 %v1110
    %1236 = vmatprep.subr.bf16.mxu0 %v1115
    %1237 = vmatpush1.bf16.msra.mxu0 %v1114
    %1238 = vmatprep.subr.bf16.mxu0 %v1119
    %1239 = vmatpush1.bf16.msra.mxu0 %v1118
    %1240 = vmatprep.subr.bf16.mxu0 %v1123
    %1241 = vmatpush1.bf16.msra.mxu0 %v1122
    %1242 = vmatprep.subr.bf16.mxu0 %v1127
    %1243 = vmatpush1.bf16.msra.mxu0 %v1126
    %1244 = vmatprep.subr.bf16.mxu0 %v1131
    %1245 = vmatpush1.bf16.msra.mxu0 %v1130
    %1246 = vmatprep.subr.bf16.mxu0 %v1135
    %1247 = vmatpush1.bf16.msra.mxu0 %v1134
    %1248 = vmatprep.subr.bf16.mxu0 %v1139
    %1249 = vmatpush1.bf16.msra.mxu0 %v1138
    %1250 = vmatprep.subr.bf16.mxu0 %v1143
    %1251 = vmatpush1.bf16.msra.mxu0 %v1142
    %1252 = vmatprep.subr.bf16.mxu0 %v1147
    %1253 = vmatpush1.bf16.msra.mxu0 %v1146
    %1254 = vmatprep.subr.bf16.mxu0 %v1151
    %1255 = vmatpush1.bf16.msra.mxu0 %v1150
    %1256 = vmatprep.subr.bf16.mxu0 %v1155
    %1257 = vmatpush1.bf16.msra.mxu0 %v1154
    %1258 = vmatprep.subr.bf16.mxu0 %v1159
    %1259 = vmatpush1.bf16.msra.mxu0 %v1158
    %1260 = vmatprep.subr.bf16.mxu0 %v1163
    %1261 = vmatpush1.bf16.msra.mxu0 %v1162
    %1262 = vmatprep.mubr.bf16.mxu0 %v793
    %1263 = vmatmul.mubr.bf16.gmra.mrb[0].mxu0 %v792
    %v1264 = vpop.f32.mrb[0].mxu0
    %v1265 = vadd.f32 %v893, %v1264
    %v1266 = vpop.f32.mrb[0].mxu0
    %v1267 = vadd.f32 %v897, %v1266
    %v1268 = vpop.f32.mrb[0].mxu0
    %v1269 = vadd.f32 %v893, %v1268
    %v1270 = vpop.f32.mrb[0].mxu0
    %v1271 = vadd.f32 %v897, %v1270
    %1272 = vmatprep.mubr.bf16.mxu0 %v795
    %1273 = vmatmul.mubr.bf16.gmra.mrb[0].mxu0 %v794
    %v1274 = vpop.f32.mrb[0].mxu0
    %v1275 = vadd.f32 %v893, %v1274
    %v1276 = vpop.f32.mrb[0].mxu0
    %v1277 = vadd.f32 %v897, %v1276
    %v1278 = vpop.f32.mrb[0].mxu0
    %v1279 = vadd.f32 %v893, %v1278
    %v1280 = vpop.f32.mrb[0].mxu0
    %v1281 = vadd.f32 %v897, %v1280
    %1282 = vmatprep.mubr.bf16.mxu0 %v797
    %1283 = vmatmul.mubr.bf16.gmra.mrb[0].mxu0 %v796
    %v1284 = vpop.f32.mrb[0].mxu0
    %v1285 = vadd.f32 %v893, %v1284
    %v1286 = vpop.f32.mrb[0].mxu0
    %v1287 = vadd.f32 %v897, %v1286
    %v1288 = vpop.f32.mrb[0].mxu0
    %v1289 = vadd.f32 %v893, %v1288
    %v1290 = vpop.f32.mrb[0].mxu0
    %v1291 = vadd.f32 %v897, %v1290
    %1292 = vmatprep.mubr.bf16.mxu0 %v799
    %1293 = vmatmul.mubr.bf16.gmra.mrb[0].mxu0 %v798
    %v1294 = vpop.f32.mrb[0].mxu0
    %v1295 = vadd.f32 %v893, %v1294
    %v1296 = vpop.f32.mrb[0].mxu0
    %v1297 = vadd.f32 %v897, %v1296
    %v1298 = vpop.f32.mrb[0].mxu0
    %v1299 = vadd.f32 %v893, %v1298
    %v1300 = vpop.f32.mrb[0].mxu0
    %v1301 = vadd.f32 %v897, %v1300
    %1302 = vmatprep.mubr.bf16.mxu0 %v801
    %1303 = vmatmul.mubr.bf16.gmra.mrb[0].mxu0 %v800
    %v1304 = vpop.f32.mrb[0].mxu0
    %v1305 = vadd.f32 %v893, %v1304
    %v1306 = vpop.f32.mrb[0].mxu0
    %v1307 = vadd.f32 %v897, %v1306
    %v1308 = vpop.f32.mrb[0].mxu0
    %v1309 = vadd.f32 %v893, %v1308
    %v1310 = vpop.f32.mrb[0].mxu0
    %v1311 = vadd.f32 %v897, %v1310
    %1312 = vmatprep.mubr.bf16.mxu0 %v803
    %1313 = vmatmul.mubr.bf16.gmra.mrb[0].mxu0 %v802
    %v1314 = vpop.f32.mrb[0].mxu0
    %v1315 = vadd.f32 %v893, %v1314
    %v1316 = vpop.f32.mrb[0].mxu0
    %v1317 = vadd.f32 %v897, %v1316
    %v1318 = vpop.f32.mrb[0].mxu0
    %v1319 = vadd.f32 %v893, %v1318
    %v1320 = vpop.f32.mrb[0].mxu0
    %v1321 = vadd.f32 %v897, %v1320
    %1322 = vmatprep.mubr.bf16.mxu0 %v805
    %1323 = vmatmul.mubr.bf16.gmra.mrb[0].mxu0 %v804
    %v1324 = vpop.f32.mrb[0].mxu0
    %v1325 = vadd.f32 %v893, %v1324
    %v1326 = vpop.f32.mrb[0].mxu0
    %v1327 = vadd.f32 %v897, %v1326
    %v1328 = vpop.f32.mrb[0].mxu0
    %v1329 = vadd.f32 %v893, %v1328
    %v1330 = vpop.f32.mrb[0].mxu0
    %v1331 = vadd.f32 %v897, %v1330
    %1332 = vmatprep.mubr.bf16.mxu0 %v807
    %1333 = vmatmul.mubr.bf16.gmra.mrb[0].mxu0 %v806
    %v1334 = vpop.f32.mrb[0].mxu0
    %v1335 = vadd.f32 %v893, %v1334
    %v1336 = vpop.f32.mrb[0].mxu0
    %v1337 = vadd.f32 %v897, %v1336
    %v1338 = vpop.f32.mrb[0].mxu0
    %v1339 = vadd.f32 %v893, %v1338
    %v1340 = vpop.f32.mrb[0].mxu0
    %v1341 = vadd.f32 %v897, %v1340
    %1342 = vmatprep.mubr.bf16.mxu0 %v809
    %1343 = vmatmul.mubr.bf16.gmra.mrb[0].mxu0 %v808
    %v1344 = vpop.f32.mrb[0].mxu0
    %v1345 = vadd.f32 %v893, %v1344
    %v1346 = vpop.f32.mrb[0].mxu0
    %v1347 = vadd.f32 %v897, %v1346
    %v1348 = vpop.f32.mrb[0].mxu0
    %v1349 = vadd.f32 %v893, %v1348
    %v1350 = vpop.f32.mrb[0].mxu0
    %v1351 = vadd.f32 %v897, %v1350
    %1352 = vmatprep.mubr.bf16.mxu0 %v811
    %1353 = vmatmul.mubr.bf16.gmra.mrb[0].mxu0 %v810
    %v1354 = vpop.f32.mrb[0].mxu0
    %v1355 = vadd.f32 %v893, %v1354
    %v1356 = vpop.f32.mrb[0].mxu0
    %v1357 = vadd.f32 %v897, %v1356
    %v1358 = vpop.f32.mrb[0].mxu0
    %v1359 = vadd.f32 %v893, %v1358
    %v1360 = vpop.f32.mrb[0].mxu0
    %v1361 = vadd.f32 %v897, %v1360
    %1362 = vmatprep.mubr.bf16.mxu0 %v813
    %1363 = vmatmul.mubr.bf16.gmra.mrb[0].mxu0 %v812
    %v1364 = vpop.f32.mrb[0].mxu0
    %v1365 = vadd.f32 %v893, %v1364
    %v1366 = vpop.f32.mrb[0].mxu0
    %v1367 = vadd.f32 %v897, %v1366
    %v1368 = vpop.f32.mrb[0].mxu0
    %v1369 = vadd.f32 %v893, %v1368
    %v1370 = vpop.f32.mrb[0].mxu0
    %v1371 = vadd.f32 %v897, %v1370
    %1372 = vmatprep.mubr.bf16.mxu0 %v815
    %1373 = vmatmul.mubr.bf16.gmra.mrb[0].mxu0 %v814
    %v1374 = vpop.f32.mrb[0].mxu0
    %v1375 = vadd.f32 %v893, %v1374
    %v1376 = vpop.f32.mrb[0].mxu0
    %v1377 = vadd.f32 %v897, %v1376
    %v1378 = vpop.f32.mrb[0].mxu0
    %v1379 = vadd.f32 %v893, %v1378
    %v1380 = vpop.f32.mrb[0].mxu0
    %v1381 = vadd.f32 %v897, %v1380
    %1382 = vmatprep.mubr.bf16.mxu0 %v817
    %1383 = vmatmul.mubr.bf16.gmra.mrb[0].mxu0 %v816
    %v1384 = vpop.f32.mrb[0].mxu0
    %v1385 = vadd.f32 %v893, %v1384
    %v1386 = vpop.f32.mrb[0].mxu0
    %v1387 = vadd.f32 %v897, %v1386
    %v1388 = vpop.f32.mrb[0].mxu0
    %v1389 = vadd.f32 %v893, %v1388
    %v1390 = vpop.f32.mrb[0].mxu0
    %v1391 = vadd.f32 %v897, %v1390
    %1392 = vmatprep.mubr.bf16.mxu0 %v819
    %1393 = vmatmul.mubr.bf16.gmra.mrb[0].mxu0 %v818
    %v1394 = vpop.f32.mrb[0].mxu0
    %v1395 = vadd.f32 %v893, %v1394
    %v1396 = vpop.f32.mrb[0].mxu0
    %v1397 = vadd.f32 %v897, %v1396
    %v1398 = vpop.f32.mrb[0].mxu0
    %v1399 = vadd.f32 %v893, %v1398
    %v1400 = vpop.f32.mrb[0].mxu0
    %v1401 = vadd.f32 %v897, %v1400
    %1402 = vmatprep.mubr.bf16.mxu0 %v821
    %1403 = vmatmul.mubr.bf16.gmra.mrb[0].mxu0 %v820
    %v1404 = vpop.f32.mrb[0].mxu0
    %v1405 = vadd.f32 %v893, %v1404
    %v1406 = vpop.f32.mrb[0].mxu0
    %v1407 = vadd.f32 %v897, %v1406
    %v1408 = vpop.f32.mrb[0].mxu0
    %v1409 = vadd.f32 %v893, %v1408
    %v1410 = vpop.f32.mrb[0].mxu0
    %v1411 = vadd.f32 %v897, %v1410
    %1412 = vmatprep.mubr.bf16.mxu0 %v823
    %1413 = vmatmul.mubr.bf16.gmra.mrb[0].mxu0 %v822
    %v1414 = vpop.f32.mrb[0].mxu0
    %v1415 = vadd.f32 %v893, %v1414
    %v1416 = vpop.f32.mrb[0].mxu0
    %v1417 = vadd.f32 %v897, %v1416
    %v1418 = vpop.f32.mrb[0].mxu0
    %v1419 = vadd.f32 %v893, %v1418
    %v1420 = vpop.f32.mrb[0].mxu0
    %v1421 = vadd.f32 %v897, %v1420
    %1422 = vdwg.mxu0
    %1423 = vmatprep.subr.bf16.mxu0 %v1105
    %1424 = vmatpush1.bf16.msra.mxu0 %v1104
    %1425 = vmatprep.subr.bf16.mxu0 %v1109
    %1426 = vmatpush1.bf16.msra.mxu0 %v1108
    %1427 = vmatprep.subr.bf16.mxu0 %v1113
    %1428 = vmatpush1.bf16.msra.mxu0 %v1112
    %1429 = vmatprep.subr.bf16.mxu0 %v1117
    %1430 = vmatpush1.bf16.msra.mxu0 %v1116
    %1431 = vmatprep.subr.bf16.mxu0 %v1121
    %1432 = vmatpush1.bf16.msra.mxu0 %v1120
    %1433 = vmatprep.subr.bf16.mxu0 %v1125
    %1434 = vmatpush1.bf16.msra.mxu0 %v1124
    %1435 = vmatprep.subr.bf16.mxu0 %v1129
    %1436 = vmatpush1.bf16.msra.mxu0 %v1128
    %1437 = vmatprep.subr.bf16.mxu0 %v1133
    %1438 = vmatpush1.bf16.msra.mxu0 %v1132
    %1439 = vmatprep.subr.bf16.mxu0 %v1137
    %1440 = vmatpush1.bf16.msra.mxu0 %v1136
    %1441 = vmatprep.subr.bf16.mxu0 %v1141
    %1442 = vmatpush1.bf16.msra.mxu0 %v1140
    %1443 = vmatprep.subr.bf16.mxu0 %v1145
    %1444 = vmatpush1.bf16.msra.mxu0 %v1144
    %1445 = vmatprep.subr.bf16.mxu0 %v1149
    %1446 = vmatpush1.bf16.msra.mxu0 %v1148
    %1447 = vmatprep.subr.bf16.mxu0 %v1153
    %1448 = vmatpush1.bf16.msra.mxu0 %v1152
    %1449 = vmatprep.subr.bf16.mxu0 %v1157
    %1450 = vmatpush1.bf16.msra.mxu0 %v1156
    %1451 = vmatprep.subr.bf16.mxu0 %v1161
    %1452 = vmatpush1.bf16.msra.mxu0 %v1160
    %1453 = vmatprep.subr.bf16.mxu0 %v1165
    %1454 = vmatpush1.bf16.msra.mxu0 %v1164
    %1455 = vmatprep.mubr.bf16.mxu0 %v793
    %1456 = vmatmul.mubr.bf16.gmra.mrb[0].mxu0 %v792
    %v1457 = vpop.f32.mrb[0].mxu0
    %v1458 = vadd.f32 %v901, %v1457
    %v1459 = vpop.f32.mrb[0].mxu0
    %v1460 = vadd.f32 %v905, %v1459
    %v1461 = vpop.f32.mrb[0].mxu0
    %v1462 = vadd.f32 %v901, %v1461
    %v1463 = vpop.f32.mrb[0].mxu0
    %v1464 = vadd.f32 %v905, %v1463
    %1465 = vmatprep.mubr.bf16.mxu0 %v795
    %1466 = vmatmul.mubr.bf16.gmra.mrb[0].mxu0 %v794
    %v1467 = vpop.f32.mrb[0].mxu0
    %v1468 = vadd.f32 %v901, %v1467
    %v1469 = vpop.f32.mrb[0].mxu0
    %v1470 = vadd.f32 %v905, %v1469
    %v1471 = vpop.f32.mrb[0].mxu0
    %v1472 = vadd.f32 %v901, %v1471
    %v1473 = vpop.f32.mrb[0].mxu0
    %v1474 = vadd.f32 %v905, %v1473
    %1475 = vmatprep.mubr.bf16.mxu0 %v797
    %1476 = vmatmul.mubr.bf16.gmra.mrb[0].mxu0 %v796
    %v1477 = vpop.f32.mrb[0].mxu0
    %v1478 = vadd.f32 %v901, %v1477
    %v1479 = vpop.f32.mrb[0].mxu0
    %v1480 = vadd.f32 %v905, %v1479
    %v1481 = vpop.f32.mrb[0].mxu0
    %v1482 = vadd.f32 %v901, %v1481
    %v1483 = vpop.f32.mrb[0].mxu0
    %v1484 = vadd.f32 %v905, %v1483
    %1485 = vmatprep.mubr.bf16.mxu0 %v799
    %1486 = vmatmul.mubr.bf16.gmra.mrb[0].mxu0 %v798
    %v1487 = vpop.f32.mrb[0].mxu0
    %v1488 = vadd.f32 %v901, %v1487
    %v1489 = vpop.f32.mrb[0].mxu0
    %v1490 = vadd.f32 %v905, %v1489
    %v1491 = vpop.f32.mrb[0].mxu0
    %v1492 = vadd.f32 %v901, %v1491
    %v1493 = vpop.f32.mrb[0].mxu0
    %v1494 = vadd.f32 %v905, %v1493
    %1495 = vmatprep.mubr.bf16.mxu0 %v801
    %1496 = vmatmul.mubr.bf16.gmra.mrb[0].mxu0 %v800
    %v1497 = vpop.f32.mrb[0].mxu0
    %v1498 = vadd.f32 %v901, %v1497
    %v1499 = vpop.f32.mrb[0].mxu0
    %v1500 = vadd.f32 %v905, %v1499
    %v1501 = vpop.f32.mrb[0].mxu0
    %v1502 = vadd.f32 %v901, %v1501
    %v1503 = vpop.f32.mrb[0].mxu0
    %v1504 = vadd.f32 %v905, %v1503
    %1505 = vmatprep.mubr.bf16.mxu0 %v803
    %1506 = vmatmul.mubr.bf16.gmra.mrb[0].mxu0 %v802
    %v1507 = vpop.f32.mrb[0].mxu0
    %v1508 = vadd.f32 %v901, %v1507
    %v1509 = vpop.f32.mrb[0].mxu0
    %v1510 = vadd.f32 %v905, %v1509
    %v1511 = vpop.f32.mrb[0].mxu0
    %v1512 = vadd.f32 %v901, %v1511
    %v1513 = vpop.f32.mrb[0].mxu0
    %v1514 = vadd.f32 %v905, %v1513
    %1515 = vmatprep.mubr.bf16.mxu0 %v805
    %1516 = vmatmul.mubr.bf16.gmra.mrb[0].mxu0 %v804
    %v1517 = vpop.f32.mrb[0].mxu0
    %v1518 = vadd.f32 %v901, %v1517
    %v1519 = vpop.f32.mrb[0].mxu0
    %v1520 = vadd.f32 %v905, %v1519
    %v1521 = vpop.f32.mrb[0].mxu0
    %v1522 = vadd.f32 %v901, %v1521
    %v1523 = vpop.f32.mrb[0].mxu0
    %v1524 = vadd.f32 %v905, %v1523
    %1525 = vmatprep.mubr.bf16.mxu0 %v807
    %1526 = vmatmul.mubr.bf16.gmra.mrb[0].mxu0 %v806
    %v1527 = vpop.f32.mrb[0].mxu0
    %v1528 = vadd.f32 %v901, %v1527
    %v1529 = vpop.f32.mrb[0].mxu0
    %v1530 = vadd.f32 %v905, %v1529
    %v1531 = vpop.f32.mrb[0].mxu0
    %v1532 = vadd.f32 %v901, %v1531
    %v1533 = vpop.f32.mrb[0].mxu0
    %v1534 = vadd.f32 %v905, %v1533
    %1535 = vmatprep.mubr.bf16.mxu0 %v809
    %1536 = vmatmul.mubr.bf16.gmra.mrb[0].mxu0 %v808
    %v1537 = vpop.f32.mrb[0].mxu0
    %v1538 = vadd.f32 %v901, %v1537
    %v1539 = vpop.f32.mrb[0].mxu0
    %v1540 = vadd.f32 %v905, %v1539
    %v1541 = vpop.f32.mrb[0].mxu0
    %v1542 = vadd.f32 %v901, %v1541
    %v1543 = vpop.f32.mrb[0].mxu0
    %v1544 = vadd.f32 %v905, %v1543
    %1545 = vmatprep.mubr.bf16.mxu0 %v811
    %1546 = vmatmul.mubr.bf16.gmra.mrb[0].mxu0 %v810
    %v1547 = vpop.f32.mrb[0].mxu0
    %v1548 = vadd.f32 %v901, %v1547
    %v1549 = vpop.f32.mrb[0].mxu0
    %v1550 = vadd.f32 %v905, %v1549
    %v1551 = vpop.f32.mrb[0].mxu0
    %v1552 = vadd.f32 %v901, %v1551
    %v1553 = vpop.f32.mrb[0].mxu0
    %v1554 = vadd.f32 %v905, %v1553
    %1555 = vmatprep.mubr.bf16.mxu0 %v813
    %1556 = vmatmul.mubr.bf16.gmra.mrb[0].mxu0 %v812
    %v1557 = vpop.f32.mrb[0].mxu0
    %v1558 = vadd.f32 %v901, %v1557
    %v1559 = vpop.f32.mrb[0].mxu0
    %v1560 = vadd.f32 %v905, %v1559
    %v1561 = vpop.f32.mrb[0].mxu0
    %v1562 = vadd.f32 %v901, %v1561
    %v1563 = vpop.f32.mrb[0].mxu0
    %v1564 = vadd.f32 %v905, %v1563
    %1565 = vmatprep.mubr.bf16.mxu0 %v815
    %1566 = vmatmul.mubr.bf16.gmra.mrb[0].mxu0 %v814
    %v1567 = vpop.f32.mrb[0].mxu0
    %v1568 = vadd.f32 %v901, %v1567
    %v1569 = vpop.f32.mrb[0].mxu0
    %v1570 = vadd.f32 %v905, %v1569
    %v1571 = vpop.f32.mrb[0].mxu0
    %v1572 = vadd.f32 %v901, %v1571
    %v1573 = vpop.f32.mrb[0].mxu0
    %v1574 = vadd.f32 %v905, %v1573
    %1575 = vmatprep.mubr.bf16.mxu0 %v817
    %1576 = vmatmul.mubr.bf16.gmra.mrb[0].mxu0 %v816
    %v1577 = vpop.f32.mrb[0].mxu0
    %v1578 = vadd.f32 %v901, %v1577
    %v1579 = vpop.f32.mrb[0].mxu0
    %v1580 = vadd.f32 %v905, %v1579
    %v1581 = vpop.f32.mrb[0].mxu0
    %v1582 = vadd.f32 %v901, %v1581
    %v1583 = vpop.f32.mrb[0].mxu0
    %v1584 = vadd.f32 %v905, %v1583
    %1585 = vmatprep.mubr.bf16.mxu0 %v819
    %1586 = vmatmul.mubr.bf16.gmra.mrb[0].mxu0 %v818
    %v1587 = vpop.f32.mrb[0].mxu0
    %v1588 = vadd.f32 %v901, %v1587
    %v1589 = vpop.f32.mrb[0].mxu0
    %v1590 = vadd.f32 %v905, %v1589
    %v1591 = vpop.f32.mrb[0].mxu0
    %v1592 = vadd.f32 %v901, %v1591
    %v1593 = vpop.f32.mrb[0].mxu0
    %v1594 = vadd.f32 %v905, %v1593
    %1595 = vmatprep.mubr.bf16.mxu0 %v821
    %1596 = vmatmul.mubr.bf16.gmra.mrb[0].mxu0 %v820
    %v1597 = vpop.f32.mrb[0].mxu0
    %v1598 = vadd.f32 %v901, %v1597
    %v1599 = vpop.f32.mrb[0].mxu0
    %v1600 = vadd.f32 %v905, %v1599
    %v1601 = vpop.f32.mrb[0].mxu0
    %v1602 = vadd.f32 %v901, %v1601
    %v1603 = vpop.f32.mrb[0].mxu0
    %v1604 = vadd.f32 %v905, %v1603
    %1605 = vmatprep.mubr.bf16.mxu0 %v823
    %1606 = vmatmul.mubr.bf16.gmra.mrb[0].mxu0 %v822
    %v1607 = vpop.f32.mrb[0].mxu0
    %v1608 = vadd.f32 %v901, %v1607
    %v1609 = vpop.f32.mrb[0].mxu0
    %v1610 = vadd.f32 %v905, %v1609
    %v1611 = vpop.f32.mrb[0].mxu0
    %v1612 = vadd.f32 %v901, %v1611
    %v1613 = vpop.f32.mrb[0].mxu0
    %v1614 = vadd.f32 %v905, %v1613
    %1615 = vdwg.mxu0
    %v1616 = vcombine.low %v1265, %v1458
    %v1617 = vcombine.high %v1265, %v1458
    %v1619 = vunpack.c.l.s4 1983009808
    %v1620 = vunpack.c.0.s8 %v1619
    %v1621 = vlaneseq
    %v1622 = vshrl.u32 %v1621, 7
    %v1623 = vsub.s32 %v1620, %v1622
    %v1624 = vrot.slane %v1616, %v1623
    %v1626 = vunpack.c.l.s4 1983009808
    %v1627 = vunpack.c.0.s8 %v1626
    %v1628 = vlaneseq
    %v1629 = vshrl.u32 %v1628, 7
    %v1630 = vsub.s32 %v1627, %v1629
    %v1631 = vrot.slane %v1617, %v1630
    %v1632 = vcombine.low %v1267, %v1460
    %v1633 = vcombine.high %v1267, %v1460
    %v1635 = vunpack.c.l.s4 1983009808
    %v1636 = vunpack.c.0.s8 %v1635
    %v1637 = vlaneseq
    %v1638 = vshrl.u32 %v1637, 7
    %v1639 = vsub.s32 %v1636, %v1638
    %v1640 = vrot.slane %v1632, %v1639
    %v1642 = vunpack.c.l.s4 1983009808
    %v1643 = vunpack.c.0.s8 %v1642
    %v1644 = vlaneseq
    %v1645 = vshrl.u32 %v1644, 7
    %v1646 = vsub.s32 %v1643, %v1645
    %v1647 = vrot.slane %v1633, %v1646
    %v1648 = vcombine.low %v1624, %v1640
    %v1649 = vcombine.high %v1624, %v1640
    %v1651 = vunpack.c.l.s4 1934713408
    %v1652 = vunpack.c.0.s8 %v1651
    %v1653 = vlaneseq
    %v1654 = vshrl.u32 %v1653, 7
    %v1655 = vsub.s32 %v1652, %v1654
    %v1656 = vrot.slane %v1648, %v1655
    %v1658 = vunpack.c.l.s4 1934713408
    %v1659 = vunpack.c.0.s8 %v1658
    %v1660 = vlaneseq
    %v1661 = vshrl.u32 %v1660, 7
    %v1662 = vsub.s32 %v1659, %v1661
    %v1663 = vrot.slane %v1649, %v1662
    %v1664 = vcombine.low %v1631, %v1647
    %v1665 = vcombine.high %v1631, %v1647
    %v1667 = vunpack.c.l.s4 1934713408
    %v1668 = vunpack.c.0.s8 %v1667
    %v1669 = vlaneseq
    %v1670 = vshrl.u32 %v1669, 7
    %v1671 = vsub.s32 %v1668, %v1670
    %v1672 = vrot.slane %v1664, %v1671
    %v1674 = vunpack.c.l.s4 1934713408
    %v1675 = vunpack.c.0.s8 %v1674
    %v1676 = vlaneseq
    %v1677 = vshrl.u32 %v1676, 7
    %v1678 = vsub.s32 %v1675, %v1677
    %v1679 = vrot.slane %v1665, %v1678
    %v1680 = vcombine.high %v1656, 0.0
    %v1681 = vcombine.high %v1663, 0.0
    %v1682 = vcombine.high %v1672, 0.0
    %v1683 = vcombine.high %v1679, 0.0
    %v1684 = vcombine.low %v1269, %v1462
    %v1685 = vcombine.high %v1269, %v1462
    %v1687 = vunpack.c.l.s4 1983009808
    %v1688 = vunpack.c.0.s8 %v1687
    %v1689 = vlaneseq
    %v1690 = vshrl.u32 %v1689, 7
    %v1691 = vsub.s32 %v1688, %v1690
    %v1692 = vrot.slane %v1684, %v1691
    %v1694 = vunpack.c.l.s4 1983009808
    %v1695 = vunpack.c.0.s8 %v1694
    %v1696 = vlaneseq
    %v1697 = vshrl.u32 %v1696, 7
    %v1698 = vsub.s32 %v1695, %v1697
    %v1699 = vrot.slane %v1685, %v1698
    %v1700 = vcombine.low %v1271, %v1464
    %v1701 = vcombine.high %v1271, %v1464
    %v1703 = vunpack.c.l.s4 1983009808
    %v1704 = vunpack.c.0.s8 %v1703
    %v1705 = vlaneseq
    %v1706 = vshrl.u32 %v1705, 7
    %v1707 = vsub.s32 %v1704, %v1706
    %v1708 = vrot.slane %v1700, %v1707
    %v1710 = vunpack.c.l.s4 1983009808
    %v1711 = vunpack.c.0.s8 %v1710
    %v1712 = vlaneseq
    %v1713 = vshrl.u32 %v1712, 7
    %v1714 = vsub.s32 %v1711, %v1713
    %v1715 = vrot.slane %v1701, %v1714
    %v1716 = vcombine.low %v1692, %v1708
    %v1717 = vcombine.high %v1692, %v1708
    %v1719 = vunpack.c.l.s4 1934713408
    %v1720 = vunpack.c.0.s8 %v1719
    %v1721 = vlaneseq
    %v1722 = vshrl.u32 %v1721, 7
    %v1723 = vsub.s32 %v1720, %v1722
    %v1724 = vrot.slane %v1716, %v1723
    %v1726 = vunpack.c.l.s4 1934713408
    %v1727 = vunpack.c.0.s8 %v1726
    %v1728 = vlaneseq
    %v1729 = vshrl.u32 %v1728, 7
    %v1730 = vsub.s32 %v1727, %v1729
    %v1731 = vrot.slane %v1717, %v1730
    %v1732 = vcombine.low %v1699, %v1715
    %v1733 = vcombine.high %v1699, %v1715
    %v1735 = vunpack.c.l.s4 1934713408
    %v1736 = vunpack.c.0.s8 %v1735
    %v1737 = vlaneseq
    %v1738 = vshrl.u32 %v1737, 7
    %v1739 = vsub.s32 %v1736, %v1738
    %v1740 = vrot.slane %v1732, %v1739
    %v1742 = vunpack.c.l.s4 1934713408
    %v1743 = vunpack.c.0.s8 %v1742
    %v1744 = vlaneseq
    %v1745 = vshrl.u32 %v1744, 7
    %v1746 = vsub.s32 %v1743, %v1745
    %v1747 = vrot.slane %v1733, %v1746
    %v1748 = vcombine.high %v1724, 0.0
    %v1749 = vcombine.high %v1731, 0.0
    %v1750 = vcombine.high %v1740, 0.0
    %v1751 = vcombine.high %v1747, 0.0
    %v1752 = vcombine.low %v1275, %v1468
    %v1753 = vcombine.high %v1275, %v1468
    %v1755 = vunpack.c.l.s4 1983009808
    %v1756 = vunpack.c.0.s8 %v1755
    %v1757 = vlaneseq
    %v1758 = vshrl.u32 %v1757, 7
    %v1759 = vsub.s32 %v1756, %v1758
    %v1760 = vrot.slane %v1752, %v1759
    %v1762 = vunpack.c.l.s4 1983009808
    %v1763 = vunpack.c.0.s8 %v1762
    %v1764 = vlaneseq
    %v1765 = vshrl.u32 %v1764, 7
    %v1766 = vsub.s32 %v1763, %v1765
    %v1767 = vrot.slane %v1753, %v1766
    %v1768 = vcombine.low %v1277, %v1470
    %v1769 = vcombine.high %v1277, %v1470
    %v1771 = vunpack.c.l.s4 1983009808
    %v1772 = vunpack.c.0.s8 %v1771
    %v1773 = vlaneseq
    %v1774 = vshrl.u32 %v1773, 7
    %v1775 = vsub.s32 %v1772, %v1774
    %v1776 = vrot.slane %v1768, %v1775
    %v1778 = vunpack.c.l.s4 1983009808
    %v1779 = vunpack.c.0.s8 %v1778
    %v1780 = vlaneseq
    %v1781 = vshrl.u32 %v1780, 7
    %v1782 = vsub.s32 %v1779, %v1781
    %v1783 = vrot.slane %v1769, %v1782
    %v1784 = vcombine.low %v1760, %v1776
    %v1785 = vcombine.high %v1760, %v1776
    %v1787 = vunpack.c.l.s4 1934713408
    %v1788 = vunpack.c.0.s8 %v1787
    %v1789 = vlaneseq
    %v1790 = vshrl.u32 %v1789, 7
    %v1791 = vsub.s32 %v1788, %v1790
    %v1792 = vrot.slane %v1784, %v1791
    %v1794 = vunpack.c.l.s4 1934713408
    %v1795 = vunpack.c.0.s8 %v1794
    %v1796 = vlaneseq
    %v1797 = vshrl.u32 %v1796, 7
    %v1798 = vsub.s32 %v1795, %v1797
    %v1799 = vrot.slane %v1785, %v1798
    %v1800 = vcombine.low %v1767, %v1783
    %v1801 = vcombine.high %v1767, %v1783
    %v1803 = vunpack.c.l.s4 1934713408
    %v1804 = vunpack.c.0.s8 %v1803
    %v1805 = vlaneseq
    %v1806 = vshrl.u32 %v1805, 7
    %v1807 = vsub.s32 %v1804, %v1806
    %v1808 = vrot.slane %v1800, %v1807
    %v1810 = vunpack.c.l.s4 1934713408
    %v1811 = vunpack.c.0.s8 %v1810
    %v1812 = vlaneseq
    %v1813 = vshrl.u32 %v1812, 7
    %v1814 = vsub.s32 %v1811, %v1813
    %v1815 = vrot.slane %v1801, %v1814
    %v1816 = vcombine.high %v1792, 0.0
    %v1817 = vcombine.high %v1799, 0.0
    %v1818 = vcombine.high %v1808, 0.0
    %v1819 = vcombine.high %v1815, 0.0
    %v1820 = vcombine.low %v1279, %v1472
    %v1821 = vcombine.high %v1279, %v1472
    %v1823 = vunpack.c.l.s4 1983009808
    %v1824 = vunpack.c.0.s8 %v1823
    %v1825 = vlaneseq
    %v1826 = vshrl.u32 %v1825, 7
    %v1827 = vsub.s32 %v1824, %v1826
    %v1828 = vrot.slane %v1820, %v1827
    %v1830 = vunpack.c.l.s4 1983009808
    %v1831 = vunpack.c.0.s8 %v1830
    %v1832 = vlaneseq
    %v1833 = vshrl.u32 %v1832, 7
    %v1834 = vsub.s32 %v1831, %v1833
    %v1835 = vrot.slane %v1821, %v1834
    %v1836 = vcombine.low %v1281, %v1474
    %v1837 = vcombine.high %v1281, %v1474
    %v1839 = vunpack.c.l.s4 1983009808
    %v1840 = vunpack.c.0.s8 %v1839
    %v1841 = vlaneseq
    %v1842 = vshrl.u32 %v1841, 7
    %v1843 = vsub.s32 %v1840, %v1842
    %v1844 = vrot.slane %v1836, %v1843
    %v1846 = vunpack.c.l.s4 1983009808
    %v1847 = vunpack.c.0.s8 %v1846
    %v1848 = vlaneseq
    %v1849 = vshrl.u32 %v1848, 7
    %v1850 = vsub.s32 %v1847, %v1849
    %v1851 = vrot.slane %v1837, %v1850
    %v1852 = vcombine.low %v1828, %v1844
    %v1853 = vcombine.high %v1828, %v1844
    %v1855 = vunpack.c.l.s4 1934713408
    %v1856 = vunpack.c.0.s8 %v1855
    %v1857 = vlaneseq
    %v1858 = vshrl.u32 %v1857, 7
    %v1859 = vsub.s32 %v1856, %v1858
    %v1860 = vrot.slane %v1852, %v1859
    %v1862 = vunpack.c.l.s4 1934713408
    %v1863 = vunpack.c.0.s8 %v1862
    %v1864 = vlaneseq
    %v1865 = vshrl.u32 %v1864, 7
    %v1866 = vsub.s32 %v1863, %v1865
    %v1867 = vrot.slane %v1853, %v1866
    %v1868 = vcombine.low %v1835, %v1851
    %v1869 = vcombine.high %v1835, %v1851
    %v1871 = vunpack.c.l.s4 1934713408
    %v1872 = vunpack.c.0.s8 %v1871
    %v1873 = vlaneseq
    %v1874 = vshrl.u32 %v1873, 7
    %v1875 = vsub.s32 %v1872, %v1874
    %v1876 = vrot.slane %v1868, %v1875
    %v1878 = vunpack.c.l.s4 1934713408
    %v1879 = vunpack.c.0.s8 %v1878
    %v1880 = vlaneseq
    %v1881 = vshrl.u32 %v1880, 7
    %v1882 = vsub.s32 %v1879, %v1881
    %v1883 = vrot.slane %v1869, %v1882
    %v1884 = vcombine.high %v1860, 0.0
    %v1885 = vcombine.high %v1867, 0.0
    %v1886 = vcombine.high %v1876, 0.0
    %v1887 = vcombine.high %v1883, 0.0
    %v1888 = vcombine.low %v1285, %v1478
    %v1889 = vcombine.high %v1285, %v1478
    %v1891 = vunpack.c.l.s4 1983009808
    %v1892 = vunpack.c.0.s8 %v1891
    %v1893 = vlaneseq
    %v1894 = vshrl.u32 %v1893, 7
    %v1895 = vsub.s32 %v1892, %v1894
    %v1896 = vrot.slane %v1888, %v1895
    %v1898 = vunpack.c.l.s4 1983009808
    %v1899 = vunpack.c.0.s8 %v1898
    %v1900 = vlaneseq
    %v1901 = vshrl.u32 %v1900, 7
    %v1902 = vsub.s32 %v1899, %v1901
    %v1903 = vrot.slane %v1889, %v1902
    %v1904 = vcombine.low %v1287, %v1480
    %v1905 = vcombine.high %v1287, %v1480
    %v1907 = vunpack.c.l.s4 1983009808
    %v1908 = vunpack.c.0.s8 %v1907
    %v1909 = vlaneseq
    %v1910 = vshrl.u32 %v1909, 7
    %v1911 = vsub.s32 %v1908, %v1910
    %v1912 = vrot.slane %v1904, %v1911
    %v1914 = vunpack.c.l.s4 1983009808
    %v1915 = vunpack.c.0.s8 %v1914
    %v1916 = vlaneseq
    %v1917 = vshrl.u32 %v1916, 7
    %v1918 = vsub.s32 %v1915, %v1917
    %v1919 = vrot.slane %v1905, %v1918
    %v1920 = vcombine.low %v1896, %v1912
    %v1921 = vcombine.high %v1896, %v1912
    %v1923 = vunpack.c.l.s4 1934713408
    %v1924 = vunpack.c.0.s8 %v1923
    %v1925 = vlaneseq
    %v1926 = vshrl.u32 %v1925, 7
    %v1927 = vsub.s32 %v1924, %v1926
    %v1928 = vrot.slane %v1920, %v1927
    %v1930 = vunpack.c.l.s4 1934713408
    %v1931 = vunpack.c.0.s8 %v1930
    %v1932 = vlaneseq
    %v1933 = vshrl.u32 %v1932, 7
    %v1934 = vsub.s32 %v1931, %v1933
    %v1935 = vrot.slane %v1921, %v1934
    %v1936 = vcombine.low %v1903, %v1919
    %v1937 = vcombine.high %v1903, %v1919
    %v1939 = vunpack.c.l.s4 1934713408
    %v1940 = vunpack.c.0.s8 %v1939
    %v1941 = vlaneseq
    %v1942 = vshrl.u32 %v1941, 7
    %v1943 = vsub.s32 %v1940, %v1942
    %v1944 = vrot.slane %v1936, %v1943
    %v1946 = vunpack.c.l.s4 1934713408
    %v1947 = vunpack.c.0.s8 %v1946
    %v1948 = vlaneseq
    %v1949 = vshrl.u32 %v1948, 7
    %v1950 = vsub.s32 %v1947, %v1949
    %v1951 = vrot.slane %v1937, %v1950
    %v1952 = vcombine.high %v1928, 0.0
    %v1953 = vcombine.high %v1935, 0.0
    %v1954 = vcombine.high %v1944, 0.0
    %v1955 = vcombine.high %v1951, 0.0
    %v1956 = vcombine.low %v1289, %v1482
    %v1957 = vcombine.high %v1289, %v1482
    %v1959 = vunpack.c.l.s4 1983009808
    %v1960 = vunpack.c.0.s8 %v1959
    %v1961 = vlaneseq
    %v1962 = vshrl.u32 %v1961, 7
    %v1963 = vsub.s32 %v1960, %v1962
    %v1964 = vrot.slane %v1956, %v1963
    %v1966 = vunpack.c.l.s4 1983009808
    %v1967 = vunpack.c.0.s8 %v1966
    %v1968 = vlaneseq
    %v1969 = vshrl.u32 %v1968, 7
    %v1970 = vsub.s32 %v1967, %v1969
    %v1971 = vrot.slane %v1957, %v1970
    %v1972 = vcombine.low %v1291, %v1484
    %v1973 = vcombine.high %v1291, %v1484
    %v1975 = vunpack.c.l.s4 1983009808
    %v1976 = vunpack.c.0.s8 %v1975
    %v1977 = vlaneseq
    %v1978 = vshrl.u32 %v1977, 7
    %v1979 = vsub.s32 %v1976, %v1978
    %v1980 = vrot.slane %v1972, %v1979
    %v1982 = vunpack.c.l.s4 1983009808
    %v1983 = vunpack.c.0.s8 %v1982
    %v1984 = vlaneseq
    %v1985 = vshrl.u32 %v1984, 7
    %v1986 = vsub.s32 %v1983, %v1985
    %v1987 = vrot.slane %v1973, %v1986
    %v1988 = vcombine.low %v1964, %v1980
    %v1989 = vcombine.high %v1964, %v1980
    %v1991 = vunpack.c.l.s4 1934713408
    %v1992 = vunpack.c.0.s8 %v1991
    %v1993 = vlaneseq
    %v1994 = vshrl.u32 %v1993, 7
    %v1995 = vsub.s32 %v1992, %v1994
    %v1996 = vrot.slane %v1988, %v1995
    %v1998 = vunpack.c.l.s4 1934713408
    %v1999 = vunpack.c.0.s8 %v1998
    %v2000 = vlaneseq
    %v2001 = vshrl.u32 %v2000, 7
    %v2002 = vsub.s32 %v1999, %v2001
    %v2003 = vrot.slane %v1989, %v2002
    %v2004 = vcombine.low %v1971, %v1987
    %v2005 = vcombine.high %v1971, %v1987
    %v2007 = vunpack.c.l.s4 1934713408
    %v2008 = vunpack.c.0.s8 %v2007
    %v2009 = vlaneseq
    %v2010 = vshrl.u32 %v2009, 7
    %v2011 = vsub.s32 %v2008, %v2010
    %v2012 = vrot.slane %v2004, %v2011
    %v2014 = vunpack.c.l.s4 1934713408
    %v2015 = vunpack.c.0.s8 %v2014
    %v2016 = vlaneseq
    %v2017 = vshrl.u32 %v2016, 7
    %v2018 = vsub.s32 %v2015, %v2017
    %v2019 = vrot.slane %v2005, %v2018
    %v2020 = vcombine.high %v1996, 0.0
    %v2021 = vcombine.high %v2003, 0.0
    %v2022 = vcombine.high %v2012, 0.0
    %v2023 = vcombine.high %v2019, 0.0
    %v2024 = vcombine.low %v1295, %v1488
    %v2025 = vcombine.high %v1295, %v1488
    %v2027 = vunpack.c.l.s4 1983009808
    %v2028 = vunpack.c.0.s8 %v2027
    %v2029 = vlaneseq
    %v2030 = vshrl.u32 %v2029, 7
    %v2031 = vsub.s32 %v2028, %v2030
    %v2032 = vrot.slane %v2024, %v2031
    %v2034 = vunpack.c.l.s4 1983009808
    %v2035 = vunpack.c.0.s8 %v2034
    %v2036 = vlaneseq
    %v2037 = vshrl.u32 %v2036, 7
    %v2038 = vsub.s32 %v2035, %v2037
    %v2039 = vrot.slane %v2025, %v2038
    %v2040 = vcombine.low %v1297, %v1490
    %v2041 = vcombine.high %v1297, %v1490
    %v2043 = vunpack.c.l.s4 1983009808
    %v2044 = vunpack.c.0.s8 %v2043
    %v2045 = vlaneseq
    %v2046 = vshrl.u32 %v2045, 7
    %v2047 = vsub.s32 %v2044, %v2046
    %v2048 = vrot.slane %v2040, %v2047
    %v2050 = vunpack.c.l.s4 1983009808
    %v2051 = vunpack.c.0.s8 %v2050
    %v2052 = vlaneseq
    %v2053 = vshrl.u32 %v2052, 7
    %v2054 = vsub.s32 %v2051, %v2053
    %v2055 = vrot.slane %v2041, %v2054
    %v2056 = vcombine.low %v2032, %v2048
    %v2057 = vcombine.high %v2032, %v2048
    %v2059 = vunpack.c.l.s4 1934713408
    %v2060 = vunpack.c.0.s8 %v2059
    %v2061 = vlaneseq
    %v2062 = vshrl.u32 %v2061, 7
    %v2063 = vsub.s32 %v2060, %v2062
    %v2064 = vrot.slane %v2056, %v2063
    %v2066 = vunpack.c.l.s4 1934713408
    %v2067 = vunpack.c.0.s8 %v2066
    %v2068 = vlaneseq
    %v2069 = vshrl.u32 %v2068, 7
    %v2070 = vsub.s32 %v2067, %v2069
    %v2071 = vrot.slane %v2057, %v2070
    %v2072 = vcombine.low %v2039, %v2055
    %v2073 = vcombine.high %v2039, %v2055
    %v2075 = vunpack.c.l.s4 1934713408
    %v2076 = vunpack.c.0.s8 %v2075
    %v2077 = vlaneseq
    %v2078 = vshrl.u32 %v2077, 7
    %v2079 = vsub.s32 %v2076, %v2078
    %v2080 = vrot.slane %v2072, %v2079
    %v2082 = vunpack.c.l.s4 1934713408
    %v2083 = vunpack.c.0.s8 %v2082
    %v2084 = vlaneseq
    %v2085 = vshrl.u32 %v2084, 7
    %v2086 = vsub.s32 %v2083, %v2085
    %v2087 = vrot.slane %v2073, %v2086
    %v2088 = vcombine.high %v2064, 0.0
    %v2089 = vcombine.high %v2071, 0.0
    %v2090 = vcombine.high %v2080, 0.0
    %v2091 = vcombine.high %v2087, 0.0
    %v2092 = vcombine.low %v1299, %v1492
    %v2093 = vcombine.high %v1299, %v1492
    %v2095 = vunpack.c.l.s4 1983009808
    %v2096 = vunpack.c.0.s8 %v2095
    %v2097 = vlaneseq
    %v2098 = vshrl.u32 %v2097, 7
    %v2099 = vsub.s32 %v2096, %v2098
    %v2100 = vrot.slane %v2092, %v2099
    %v2102 = vunpack.c.l.s4 1983009808
    %v2103 = vunpack.c.0.s8 %v2102
    %v2104 = vlaneseq
    %v2105 = vshrl.u32 %v2104, 7
    %v2106 = vsub.s32 %v2103, %v2105
    %v2107 = vrot.slane %v2093, %v2106
    %v2108 = vcombine.low %v1301, %v1494
    %v2109 = vcombine.high %v1301, %v1494
    %v2111 = vunpack.c.l.s4 1983009808
    %v2112 = vunpack.c.0.s8 %v2111
    %v2113 = vlaneseq
    %v2114 = vshrl.u32 %v2113, 7
    %v2115 = vsub.s32 %v2112, %v2114
    %v2116 = vrot.slane %v2108, %v2115
    %v2118 = vunpack.c.l.s4 1983009808
    %v2119 = vunpack.c.0.s8 %v2118
    %v2120 = vlaneseq
    %v2121 = vshrl.u32 %v2120, 7
    %v2122 = vsub.s32 %v2119, %v2121
    %v2123 = vrot.slane %v2109, %v2122
    %v2124 = vcombine.low %v2100, %v2116
    %v2125 = vcombine.high %v2100, %v2116
    %v2127 = vunpack.c.l.s4 1934713408
    %v2128 = vunpack.c.0.s8 %v2127
    %v2129 = vlaneseq
    %v2130 = vshrl.u32 %v2129, 7
    %v2131 = vsub.s32 %v2128, %v2130
    %v2132 = vrot.slane %v2124, %v2131
    %v2134 = vunpack.c.l.s4 1934713408
    %v2135 = vunpack.c.0.s8 %v2134
    %v2136 = vlaneseq
    %v2137 = vshrl.u32 %v2136, 7
    %v2138 = vsub.s32 %v2135, %v2137
    %v2139 = vrot.slane %v2125, %v2138
    %v2140 = vcombine.low %v2107, %v2123
    %v2141 = vcombine.high %v2107, %v2123
    %v2143 = vunpack.c.l.s4 1934713408
    %v2144 = vunpack.c.0.s8 %v2143
    %v2145 = vlaneseq
    %v2146 = vshrl.u32 %v2145, 7
    %v2147 = vsub.s32 %v2144, %v2146
    %v2148 = vrot.slane %v2140, %v2147
    %v2150 = vunpack.c.l.s4 1934713408
    %v2151 = vunpack.c.0.s8 %v2150
    %v2152 = vlaneseq
    %v2153 = vshrl.u32 %v2152, 7
    %v2154 = vsub.s32 %v2151, %v2153
    %v2155 = vrot.slane %v2141, %v2154
    %v2156 = vcombine.high %v2132, 0.0
    %v2157 = vcombine.high %v2139, 0.0
    %v2158 = vcombine.high %v2148, 0.0
    %v2159 = vcombine.high %v2155, 0.0
    %v2160 = vcombine.low %v1305, %v1498
    %v2161 = vcombine.high %v1305, %v1498
    %v2163 = vunpack.c.l.s4 1983009808
    %v2164 = vunpack.c.0.s8 %v2163
    %v2165 = vlaneseq
    %v2166 = vshrl.u32 %v2165, 7
    %v2167 = vsub.s32 %v2164, %v2166
    %v2168 = vrot.slane %v2160, %v2167
    %v2170 = vunpack.c.l.s4 1983009808
    %v2171 = vunpack.c.0.s8 %v2170
    %v2172 = vlaneseq
    %v2173 = vshrl.u32 %v2172, 7
    %v2174 = vsub.s32 %v2171, %v2173
    %v2175 = vrot.slane %v2161, %v2174
    %v2176 = vcombine.low %v1307, %v1500
    %v2177 = vcombine.high %v1307, %v1500
    %v2179 = vunpack.c.l.s4 1983009808
    %v2180 = vunpack.c.0.s8 %v2179
    %v2181 = vlaneseq
    %v2182 = vshrl.u32 %v2181, 7
    %v2183 = vsub.s32 %v2180, %v2182
    %v2184 = vrot.slane %v2176, %v2183
    %v2186 = vunpack.c.l.s4 1983009808
    %v2187 = vunpack.c.0.s8 %v2186
    %v2188 = vlaneseq
    %v2189 = vshrl.u32 %v2188, 7
    %v2190 = vsub.s32 %v2187, %v2189
    %v2191 = vrot.slane %v2177, %v2190
    %v2192 = vcombine.low %v2168, %v2184
    %v2193 = vcombine.high %v2168, %v2184
    %v2195 = vunpack.c.l.s4 1934713408
    %v2196 = vunpack.c.0.s8 %v2195
    %v2197 = vlaneseq
    %v2198 = vshrl.u32 %v2197, 7
    %v2199 = vsub.s32 %v2196, %v2198
    %v2200 = vrot.slane %v2192, %v2199
    %v2202 = vunpack.c.l.s4 1934713408
    %v2203 = vunpack.c.0.s8 %v2202
    %v2204 = vlaneseq
    %v2205 = vshrl.u32 %v2204, 7
    %v2206 = vsub.s32 %v2203, %v2205
    %v2207 = vrot.slane %v2193, %v2206
    %v2208 = vcombine.low %v2175, %v2191
    %v2209 = vcombine.high %v2175, %v2191
    %v2211 = vunpack.c.l.s4 1934713408
    %v2212 = vunpack.c.0.s8 %v2211
    %v2213 = vlaneseq
    %v2214 = vshrl.u32 %v2213, 7
    %v2215 = vsub.s32 %v2212, %v2214
    %v2216 = vrot.slane %v2208, %v2215
    %v2218 = vunpack.c.l.s4 1934713408
    %v2219 = vunpack.c.0.s8 %v2218
    %v2220 = vlaneseq
    %v2221 = vshrl.u32 %v2220, 7
    %v2222 = vsub.s32 %v2219, %v2221
    %v2223 = vrot.slane %v2209, %v2222
    %v2224 = vcombine.high %v2200, 0.0
    %v2225 = vcombine.high %v2207, 0.0
    %v2226 = vcombine.high %v2216, 0.0
    %v2227 = vcombine.high %v2223, 0.0
    %v2228 = vcombine.low %v1309, %v1502
    %v2229 = vcombine.high %v1309, %v1502
    %v2231 = vunpack.c.l.s4 1983009808
    %v2232 = vunpack.c.0.s8 %v2231
    %v2233 = vlaneseq
    %v2234 = vshrl.u32 %v2233, 7
    %v2235 = vsub.s32 %v2232, %v2234
    %v2236 = vrot.slane %v2228, %v2235
    %v2238 = vunpack.c.l.s4 1983009808
    %v2239 = vunpack.c.0.s8 %v2238
    %v2240 = vlaneseq
    %v2241 = vshrl.u32 %v2240, 7
    %v2242 = vsub.s32 %v2239, %v2241
    %v2243 = vrot.slane %v2229, %v2242
    %v2244 = vcombine.low %v1311, %v1504
    %v2245 = vcombine.high %v1311, %v1504
    %v2247 = vunpack.c.l.s4 1983009808
    %v2248 = vunpack.c.0.s8 %v2247
    %v2249 = vlaneseq
    %v2250 = vshrl.u32 %v2249, 7
    %v2251 = vsub.s32 %v2248, %v2250
    %v2252 = vrot.slane %v2244, %v2251
    %v2254 = vunpack.c.l.s4 1983009808
    %v2255 = vunpack.c.0.s8 %v2254
    %v2256 = vlaneseq
    %v2257 = vshrl.u32 %v2256, 7
    %v2258 = vsub.s32 %v2255, %v2257
    %v2259 = vrot.slane %v2245, %v2258
    %v2260 = vcombine.low %v2236, %v2252
    %v2261 = vcombine.high %v2236, %v2252
    %v2263 = vunpack.c.l.s4 1934713408
    %v2264 = vunpack.c.0.s8 %v2263
    %v2265 = vlaneseq
    %v2266 = vshrl.u32 %v2265, 7
    %v2267 = vsub.s32 %v2264, %v2266
    %v2268 = vrot.slane %v2260, %v2267
    %v2270 = vunpack.c.l.s4 1934713408
    %v2271 = vunpack.c.0.s8 %v2270
    %v2272 = vlaneseq
    %v2273 = vshrl.u32 %v2272, 7
    %v2274 = vsub.s32 %v2271, %v2273
    %v2275 = vrot.slane %v2261, %v2274
    %v2276 = vcombine.low %v2243, %v2259
    %v2277 = vcombine.high %v2243, %v2259
    %v2279 = vunpack.c.l.s4 1934713408
    %v2280 = vunpack.c.0.s8 %v2279
    %v2281 = vlaneseq
    %v2282 = vshrl.u32 %v2281, 7
    %v2283 = vsub.s32 %v2280, %v2282
    %v2284 = vrot.slane %v2276, %v2283
    %v2286 = vunpack.c.l.s4 1934713408
    %v2287 = vunpack.c.0.s8 %v2286
    %v2288 = vlaneseq
    %v2289 = vshrl.u32 %v2288, 7
    %v2290 = vsub.s32 %v2287, %v2289
    %v2291 = vrot.slane %v2277, %v2290
    %v2292 = vcombine.high %v2268, 0.0
    %v2293 = vcombine.high %v2275, 0.0
    %v2294 = vcombine.high %v2284, 0.0
    %v2295 = vcombine.high %v2291, 0.0
    %v2296 = vcombine.low %v1315, %v1508
    %v2297 = vcombine.high %v1315, %v1508
    %v2299 = vunpack.c.l.s4 1983009808
    %v2300 = vunpack.c.0.s8 %v2299
    %v2301 = vlaneseq
    %v2302 = vshrl.u32 %v2301, 7
    %v2303 = vsub.s32 %v2300, %v2302
    %v2304 = vrot.slane %v2296, %v2303
    %v2306 = vunpack.c.l.s4 1983009808
    %v2307 = vunpack.c.0.s8 %v2306
    %v2308 = vlaneseq
    %v2309 = vshrl.u32 %v2308, 7
    %v2310 = vsub.s32 %v2307, %v2309
    %v2311 = vrot.slane %v2297, %v2310
    %v2312 = vcombine.low %v1317, %v1510
    %v2313 = vcombine.high %v1317, %v1510
    %v2315 = vunpack.c.l.s4 1983009808
    %v2316 = vunpack.c.0.s8 %v2315
    %v2317 = vlaneseq
    %v2318 = vshrl.u32 %v2317, 7
    %v2319 = vsub.s32 %v2316, %v2318
    %v2320 = vrot.slane %v2312, %v2319
    %v2322 = vunpack.c.l.s4 1983009808
    %v2323 = vunpack.c.0.s8 %v2322
    %v2324 = vlaneseq
    %v2325 = vshrl.u32 %v2324, 7
    %v2326 = vsub.s32 %v2323, %v2325
    %v2327 = vrot.slane %v2313, %v2326
    %v2328 = vcombine.low %v2304, %v2320
    %v2329 = vcombine.high %v2304, %v2320
    %v2331 = vunpack.c.l.s4 1934713408
    %v2332 = vunpack.c.0.s8 %v2331
    %v2333 = vlaneseq
    %v2334 = vshrl.u32 %v2333, 7
    %v2335 = vsub.s32 %v2332, %v2334
    %v2336 = vrot.slane %v2328, %v2335
    %v2338 = vunpack.c.l.s4 1934713408
    %v2339 = vunpack.c.0.s8 %v2338
    %v2340 = vlaneseq
    %v2341 = vshrl.u32 %v2340, 7
    %v2342 = vsub.s32 %v2339, %v2341
    %v2343 = vrot.slane %v2329, %v2342
    %v2344 = vcombine.low %v2311, %v2327
    %v2345 = vcombine.high %v2311, %v2327
    %v2347 = vunpack.c.l.s4 1934713408
    %v2348 = vunpack.c.0.s8 %v2347
    %v2349 = vlaneseq
    %v2350 = vshrl.u32 %v2349, 7
    %v2351 = vsub.s32 %v2348, %v2350
    %v2352 = vrot.slane %v2344, %v2351
    %v2354 = vunpack.c.l.s4 1934713408
    %v2355 = vunpack.c.0.s8 %v2354
    %v2356 = vlaneseq
    %v2357 = vshrl.u32 %v2356, 7
    %v2358 = vsub.s32 %v2355, %v2357
    %v2359 = vrot.slane %v2345, %v2358
    %v2360 = vcombine.high %v2336, 0.0
    %v2361 = vcombine.high %v2343, 0.0
    %v2362 = vcombine.high %v2352, 0.0
    %v2363 = vcombine.high %v2359, 0.0
    %v2364 = vcombine.low %v1319, %v1512
    %v2365 = vcombine.high %v1319, %v1512
    %v2367 = vunpack.c.l.s4 1983009808
    %v2368 = vunpack.c.0.s8 %v2367
    %v2369 = vlaneseq
    %v2370 = vshrl.u32 %v2369, 7
    %v2371 = vsub.s32 %v2368, %v2370
    %v2372 = vrot.slane %v2364, %v2371
    %v2374 = vunpack.c.l.s4 1983009808
    %v2375 = vunpack.c.0.s8 %v2374
    %v2376 = vlaneseq
    %v2377 = vshrl.u32 %v2376, 7
    %v2378 = vsub.s32 %v2375, %v2377
    %v2379 = vrot.slane %v2365, %v2378
    %v2380 = vcombine.low %v1321, %v1514
    %v2381 = vcombine.high %v1321, %v1514
    %v2383 = vunpack.c.l.s4 1983009808
    %v2384 = vunpack.c.0.s8 %v2383
    %v2385 = vlaneseq
    %v2386 = vshrl.u32 %v2385, 7
    %v2387 = vsub.s32 %v2384, %v2386
    %v2388 = vrot.slane %v2380, %v2387
    %v2390 = vunpack.c.l.s4 1983009808
    %v2391 = vunpack.c.0.s8 %v2390
    %v2392 = vlaneseq
    %v2393 = vshrl.u32 %v2392, 7
    %v2394 = vsub.s32 %v2391, %v2393
    %v2395 = vrot.slane %v2381, %v2394
    %v2396 = vcombine.low %v2372, %v2388
    %v2397 = vcombine.high %v2372, %v2388
    %v2399 = vunpack.c.l.s4 1934713408
    %v2400 = vunpack.c.0.s8 %v2399
    %v2401 = vlaneseq
    %v2402 = vshrl.u32 %v2401, 7
    %v2403 = vsub.s32 %v2400, %v2402
    %v2404 = vrot.slane %v2396, %v2403
    %v2406 = vunpack.c.l.s4 1934713408
    %v2407 = vunpack.c.0.s8 %v2406
    %v2408 = vlaneseq
    %v2409 = vshrl.u32 %v2408, 7
    %v2410 = vsub.s32 %v2407, %v2409
    %v2411 = vrot.slane %v2397, %v2410
    %v2412 = vcombine.low %v2379, %v2395
    %v2413 = vcombine.high %v2379, %v2395
    %v2415 = vunpack.c.l.s4 1934713408
    %v2416 = vunpack.c.0.s8 %v2415
    %v2417 = vlaneseq
    %v2418 = vshrl.u32 %v2417, 7
    %v2419 = vsub.s32 %v2416, %v2418
    %v2420 = vrot.slane %v2412, %v2419
    %v2422 = vunpack.c.l.s4 1934713408
    %v2423 = vunpack.c.0.s8 %v2422
    %v2424 = vlaneseq
    %v2425 = vshrl.u32 %v2424, 7
    %v2426 = vsub.s32 %v2423, %v2425
    %v2427 = vrot.slane %v2413, %v2426
    %v2428 = vcombine.high %v2404, 0.0
    %v2429 = vcombine.high %v2411, 0.0
    %v2430 = vcombine.high %v2420, 0.0
    %v2431 = vcombine.high %v2427, 0.0
    %v2432 = vcombine.low %v1325, %v1518
    %v2433 = vcombine.high %v1325, %v1518
    %v2435 = vunpack.c.l.s4 1983009808
    %v2436 = vunpack.c.0.s8 %v2435
    %v2437 = vlaneseq
    %v2438 = vshrl.u32 %v2437, 7
    %v2439 = vsub.s32 %v2436, %v2438
    %v2440 = vrot.slane %v2432, %v2439
    %v2442 = vunpack.c.l.s4 1983009808
    %v2443 = vunpack.c.0.s8 %v2442
    %v2444 = vlaneseq
    %v2445 = vshrl.u32 %v2444, 7
    %v2446 = vsub.s32 %v2443, %v2445
    %v2447 = vrot.slane %v2433, %v2446
    %v2448 = vcombine.low %v1327, %v1520
    %v2449 = vcombine.high %v1327, %v1520
    %v2451 = vunpack.c.l.s4 1983009808
    %v2452 = vunpack.c.0.s8 %v2451
    %v2453 = vlaneseq
    %v2454 = vshrl.u32 %v2453, 7
    %v2455 = vsub.s32 %v2452, %v2454
    %v2456 = vrot.slane %v2448, %v2455
    %v2458 = vunpack.c.l.s4 1983009808
    %v2459 = vunpack.c.0.s8 %v2458
    %v2460 = vlaneseq
    %v2461 = vshrl.u32 %v2460, 7
    %v2462 = vsub.s32 %v2459, %v2461
    %v2463 = vrot.slane %v2449, %v2462
    %v2464 = vcombine.low %v2440, %v2456
    %v2465 = vcombine.high %v2440, %v2456
    %v2467 = vunpack.c.l.s4 1934713408
    %v2468 = vunpack.c.0.s8 %v2467
    %v2469 = vlaneseq
    %v2470 = vshrl.u32 %v2469, 7
    %v2471 = vsub.s32 %v2468, %v2470
    %v2472 = vrot.slane %v2464, %v2471
    %v2474 = vunpack.c.l.s4 1934713408
    %v2475 = vunpack.c.0.s8 %v2474
    %v2476 = vlaneseq
    %v2477 = vshrl.u32 %v2476, 7
    %v2478 = vsub.s32 %v2475, %v2477
    %v2479 = vrot.slane %v2465, %v2478
    %v2480 = vcombine.low %v2447, %v2463
    %v2481 = vcombine.high %v2447, %v2463
    %v2483 = vunpack.c.l.s4 1934713408
    %v2484 = vunpack.c.0.s8 %v2483
    %v2485 = vlaneseq
    %v2486 = vshrl.u32 %v2485, 7
    %v2487 = vsub.s32 %v2484, %v2486
    %v2488 = vrot.slane %v2480, %v2487
    %v2490 = vunpack.c.l.s4 1934713408
    %v2491 = vunpack.c.0.s8 %v2490
    %v2492 = vlaneseq
    %v2493 = vshrl.u32 %v2492, 7
    %v2494 = vsub.s32 %v2491, %v2493
    %v2495 = vrot.slane %v2481, %v2494
    %v2496 = vcombine.high %v2472, 0.0
    %v2497 = vcombine.high %v2479, 0.0
    %v2498 = vcombine.high %v2488, 0.0
    %v2499 = vcombine.high %v2495, 0.0
    %v2500 = vcombine.low %v1329, %v1522
    %v2501 = vcombine.high %v1329, %v1522
    %v2503 = vunpack.c.l.s4 1983009808
    %v2504 = vunpack.c.0.s8 %v2503
    %v2505 = vlaneseq
    %v2506 = vshrl.u32 %v2505, 7
    %v2507 = vsub.s32 %v2504, %v2506
    %v2508 = vrot.slane %v2500, %v2507
    %v2510 = vunpack.c.l.s4 1983009808
    %v2511 = vunpack.c.0.s8 %v2510
    %v2512 = vlaneseq
    %v2513 = vshrl.u32 %v2512, 7
    %v2514 = vsub.s32 %v2511, %v2513
    %v2515 = vrot.slane %v2501, %v2514
    %v2516 = vcombine.low %v1331, %v1524
    %v2517 = vcombine.high %v1331, %v1524
    %v2519 = vunpack.c.l.s4 1983009808
    %v2520 = vunpack.c.0.s8 %v2519
    %v2521 = vlaneseq
    %v2522 = vshrl.u32 %v2521, 7
    %v2523 = vsub.s32 %v2520, %v2522
    %v2524 = vrot.slane %v2516, %v2523
    %v2526 = vunpack.c.l.s4 1983009808
    %v2527 = vunpack.c.0.s8 %v2526
    %v2528 = vlaneseq
    %v2529 = vshrl.u32 %v2528, 7
    %v2530 = vsub.s32 %v2527, %v2529
    %v2531 = vrot.slane %v2517, %v2530
    %v2532 = vcombine.low %v2508, %v2524
    %v2533 = vcombine.high %v2508, %v2524
    %v2535 = vunpack.c.l.s4 1934713408
    %v2536 = vunpack.c.0.s8 %v2535
    %v2537 = vlaneseq
    %v2538 = vshrl.u32 %v2537, 7
    %v2539 = vsub.s32 %v2536, %v2538
    %v2540 = vrot.slane %v2532, %v2539
    %v2542 = vunpack.c.l.s4 1934713408
    %v2543 = vunpack.c.0.s8 %v2542
    %v2544 = vlaneseq
    %v2545 = vshrl.u32 %v2544, 7
    %v2546 = vsub.s32 %v2543, %v2545
    %v2547 = vrot.slane %v2533, %v2546
    %v2548 = vcombine.low %v2515, %v2531
    %v2549 = vcombine.high %v2515, %v2531
    %v2551 = vunpack.c.l.s4 1934713408
    %v2552 = vunpack.c.0.s8 %v2551
    %v2553 = vlaneseq
    %v2554 = vshrl.u32 %v2553, 7
    %v2555 = vsub.s32 %v2552, %v2554
    %v2556 = vrot.slane %v2548, %v2555
    %v2558 = vunpack.c.l.s4 1934713408
    %v2559 = vunpack.c.0.s8 %v2558
    %v2560 = vlaneseq
    %v2561 = vshrl.u32 %v2560, 7
    %v2562 = vsub.s32 %v2559, %v2561
    %v2563 = vrot.slane %v2549, %v2562
    %v2564 = vcombine.high %v2540, 0.0
    %v2565 = vcombine.high %v2547, 0.0
    %v2566 = vcombine.high %v2556, 0.0
    %v2567 = vcombine.high %v2563, 0.0
    %v2568 = vcombine.low %v1335, %v1528
    %v2569 = vcombine.high %v1335, %v1528
    %v2571 = vunpack.c.l.s4 1983009808
    %v2572 = vunpack.c.0.s8 %v2571
    %v2573 = vlaneseq
    %v2574 = vshrl.u32 %v2573, 7
    %v2575 = vsub.s32 %v2572, %v2574
    %v2576 = vrot.slane %v2568, %v2575
    %v2578 = vunpack.c.l.s4 1983009808
    %v2579 = vunpack.c.0.s8 %v2578
    %v2580 = vlaneseq
    %v2581 = vshrl.u32 %v2580, 7
    %v2582 = vsub.s32 %v2579, %v2581
    %v2583 = vrot.slane %v2569, %v2582
    %v2584 = vcombine.low %v1337, %v1530
    %v2585 = vcombine.high %v1337, %v1530
    %v2587 = vunpack.c.l.s4 1983009808
    %v2588 = vunpack.c.0.s8 %v2587
    %v2589 = vlaneseq
    %v2590 = vshrl.u32 %v2589, 7
    %v2591 = vsub.s32 %v2588, %v2590
    %v2592 = vrot.slane %v2584, %v2591
    %v2594 = vunpack.c.l.s4 1983009808
    %v2595 = vunpack.c.0.s8 %v2594
    %v2596 = vlaneseq
    %v2597 = vshrl.u32 %v2596, 7
    %v2598 = vsub.s32 %v2595, %v2597
    %v2599 = vrot.slane %v2585, %v2598
    %v2600 = vcombine.low %v2576, %v2592
    %v2601 = vcombine.high %v2576, %v2592
    %v2603 = vunpack.c.l.s4 1934713408
    %v2604 = vunpack.c.0.s8 %v2603
    %v2605 = vlaneseq
    %v2606 = vshrl.u32 %v2605, 7
    %v2607 = vsub.s32 %v2604, %v2606
    %v2608 = vrot.slane %v2600, %v2607
    %v2610 = vunpack.c.l.s4 1934713408
    %v2611 = vunpack.c.0.s8 %v2610
    %v2612 = vlaneseq
    %v2613 = vshrl.u32 %v2612, 7
    %v2614 = vsub.s32 %v2611, %v2613
    %v2615 = vrot.slane %v2601, %v2614
    %v2616 = vcombine.low %v2583, %v2599
    %v2617 = vcombine.high %v2583, %v2599
    %v2619 = vunpack.c.l.s4 1934713408
    %v2620 = vunpack.c.0.s8 %v2619
    %v2621 = vlaneseq
    %v2622 = vshrl.u32 %v2621, 7
    %v2623 = vsub.s32 %v2620, %v2622
    %v2624 = vrot.slane %v2616, %v2623
    %v2626 = vunpack.c.l.s4 1934713408
    %v2627 = vunpack.c.0.s8 %v2626
    %v2628 = vlaneseq
    %v2629 = vshrl.u32 %v2628, 7
    %v2630 = vsub.s32 %v2627, %v2629
    %v2631 = vrot.slane %v2617, %v2630
    %v2632 = vcombine.high %v2608, 0.0
    %v2633 = vcombine.high %v2615, 0.0
    %v2634 = vcombine.high %v2624, 0.0
    %v2635 = vcombine.high %v2631, 0.0
    %v2636 = vcombine.low %v1339, %v1532
    %v2637 = vcombine.high %v1339, %v1532
    %v2639 = vunpack.c.l.s4 1983009808
    %v2640 = vunpack.c.0.s8 %v2639
    %v2641 = vlaneseq
    %v2642 = vshrl.u32 %v2641, 7
    %v2643 = vsub.s32 %v2640, %v2642
    %v2644 = vrot.slane %v2636, %v2643
    %v2646 = vunpack.c.l.s4 1983009808
    %v2647 = vunpack.c.0.s8 %v2646
    %v2648 = vlaneseq
    %v2649 = vshrl.u32 %v2648, 7
    %v2650 = vsub.s32 %v2647, %v2649
    %v2651 = vrot.slane %v2637, %v2650
    %v2652 = vcombine.low %v1341, %v1534
    %v2653 = vcombine.high %v1341, %v1534
    %v2655 = vunpack.c.l.s4 1983009808
    %v2656 = vunpack.c.0.s8 %v2655
    %v2657 = vlaneseq
    %v2658 = vshrl.u32 %v2657, 7
    %v2659 = vsub.s32 %v2656, %v2658
    %v2660 = vrot.slane %v2652, %v2659
    %v2662 = vunpack.c.l.s4 1983009808
    %v2663 = vunpack.c.0.s8 %v2662
    %v2664 = vlaneseq
    %v2665 = vshrl.u32 %v2664, 7
    %v2666 = vsub.s32 %v2663, %v2665
    %v2667 = vrot.slane %v2653, %v2666
    %v2668 = vcombine.low %v2644, %v2660
    %v2669 = vcombine.high %v2644, %v2660
    %v2671 = vunpack.c.l.s4 1934713408
    %v2672 = vunpack.c.0.s8 %v2671
    %v2673 = vlaneseq
    %v2674 = vshrl.u32 %v2673, 7
    %v2675 = vsub.s32 %v2672, %v2674
    %v2676 = vrot.slane %v2668, %v2675
    %v2678 = vunpack.c.l.s4 1934713408
    %v2679 = vunpack.c.0.s8 %v2678
    %v2680 = vlaneseq
    %v2681 = vshrl.u32 %v2680, 7
    %v2682 = vsub.s32 %v2679, %v2681
    %v2683 = vrot.slane %v2669, %v2682
    %v2684 = vcombine.low %v2651, %v2667
    %v2685 = vcombine.high %v2651, %v2667
    %v2687 = vunpack.c.l.s4 1934713408
    %v2688 = vunpack.c.0.s8 %v2687
    %v2689 = vlaneseq
    %v2690 = vshrl.u32 %v2689, 7
    %v2691 = vsub.s32 %v2688, %v2690
    %v2692 = vrot.slane %v2684, %v2691
    %v2694 = vunpack.c.l.s4 1934713408
    %v2695 = vunpack.c.0.s8 %v2694
    %v2696 = vlaneseq
    %v2697 = vshrl.u32 %v2696, 7
    %v2698 = vsub.s32 %v2695, %v2697
    %v2699 = vrot.slane %v2685, %v2698
    %v2700 = vcombine.high %v2676, 0.0
    %v2701 = vcombine.high %v2683, 0.0
    %v2702 = vcombine.high %v2692, 0.0
    %v2703 = vcombine.high %v2699, 0.0
    %v2704 = vcombine.low %v1345, %v1538
    %v2705 = vcombine.high %v1345, %v1538
    %v2707 = vunpack.c.l.s4 1983009808
    %v2708 = vunpack.c.0.s8 %v2707
    %v2709 = vlaneseq
    %v2710 = vshrl.u32 %v2709, 7
    %v2711 = vsub.s32 %v2708, %v2710
    %v2712 = vrot.slane %v2704, %v2711
    %v2714 = vunpack.c.l.s4 1983009808
    %v2715 = vunpack.c.0.s8 %v2714
    %v2716 = vlaneseq
    %v2717 = vshrl.u32 %v2716, 7
    %v2718 = vsub.s32 %v2715, %v2717
    %v2719 = vrot.slane %v2705, %v2718
    %v2720 = vcombine.low %v1347, %v1540
    %v2721 = vcombine.high %v1347, %v1540
    %v2723 = vunpack.c.l.s4 1983009808
    %v2724 = vunpack.c.0.s8 %v2723
    %v2725 = vlaneseq
    %v2726 = vshrl.u32 %v2725, 7
    %v2727 = vsub.s32 %v2724, %v2726
    %v2728 = vrot.slane %v2720, %v2727
    %v2730 = vunpack.c.l.s4 1983009808
    %v2731 = vunpack.c.0.s8 %v2730
    %v2732 = vlaneseq
    %v2733 = vshrl.u32 %v2732, 7
    %v2734 = vsub.s32 %v2731, %v2733
    %v2735 = vrot.slane %v2721, %v2734
    %v2736 = vcombine.low %v2712, %v2728
    %v2737 = vcombine.high %v2712, %v2728
    %v2739 = vunpack.c.l.s4 1934713408
    %v2740 = vunpack.c.0.s8 %v2739
    %v2741 = vlaneseq
    %v2742 = vshrl.u32 %v2741, 7
    %v2743 = vsub.s32 %v2740, %v2742
    %v2744 = vrot.slane %v2736, %v2743
    %v2746 = vunpack.c.l.s4 1934713408
    %v2747 = vunpack.c.0.s8 %v2746
    %v2748 = vlaneseq
    %v2749 = vshrl.u32 %v2748, 7
    %v2750 = vsub.s32 %v2747, %v2749
    %v2751 = vrot.slane %v2737, %v2750
    %v2752 = vcombine.low %v2719, %v2735
    %v2753 = vcombine.high %v2719, %v2735
    %v2755 = vunpack.c.l.s4 1934713408
    %v2756 = vunpack.c.0.s8 %v2755
    %v2757 = vlaneseq
    %v2758 = vshrl.u32 %v2757, 7
    %v2759 = vsub.s32 %v2756, %v2758
    %v2760 = vrot.slane %v2752, %v2759
    %v2762 = vunpack.c.l.s4 1934713408
    %v2763 = vunpack.c.0.s8 %v2762
    %v2764 = vlaneseq
    %v2765 = vshrl.u32 %v2764, 7
    %v2766 = vsub.s32 %v2763, %v2765
    %v2767 = vrot.slane %v2753, %v2766
    %v2768 = vcombine.high %v2744, 0.0
    %v2769 = vcombine.high %v2751, 0.0
    %v2770 = vcombine.high %v2760, 0.0
    %v2771 = vcombine.high %v2767, 0.0
    %v2772 = vcombine.low %v1349, %v1542
    %v2773 = vcombine.high %v1349, %v1542
    %v2775 = vunpack.c.l.s4 1983009808
    %v2776 = vunpack.c.0.s8 %v2775
    %v2777 = vlaneseq
    %v2778 = vshrl.u32 %v2777, 7
    %v2779 = vsub.s32 %v2776, %v2778
    %v2780 = vrot.slane %v2772, %v2779
    %v2782 = vunpack.c.l.s4 1983009808
    %v2783 = vunpack.c.0.s8 %v2782
    %v2784 = vlaneseq
    %v2785 = vshrl.u32 %v2784, 7
    %v2786 = vsub.s32 %v2783, %v2785
    %v2787 = vrot.slane %v2773, %v2786
    %v2788 = vcombine.low %v1351, %v1544
    %v2789 = vcombine.high %v1351, %v1544
    %v2791 = vunpack.c.l.s4 1983009808
    %v2792 = vunpack.c.0.s8 %v2791
    %v2793 = vlaneseq
    %v2794 = vshrl.u32 %v2793, 7
    %v2795 = vsub.s32 %v2792, %v2794
    %v2796 = vrot.slane %v2788, %v2795
    %v2798 = vunpack.c.l.s4 1983009808
    %v2799 = vunpack.c.0.s8 %v2798
    %v2800 = vlaneseq
    %v2801 = vshrl.u32 %v2800, 7
    %v2802 = vsub.s32 %v2799, %v2801
    %v2803 = vrot.slane %v2789, %v2802
    %v2804 = vcombine.low %v2780, %v2796
    %v2805 = vcombine.high %v2780, %v2796
    %v2807 = vunpack.c.l.s4 1934713408
    %v2808 = vunpack.c.0.s8 %v2807
    %v2809 = vlaneseq
    %v2810 = vshrl.u32 %v2809, 7
    %v2811 = vsub.s32 %v2808, %v2810
    %v2812 = vrot.slane %v2804, %v2811
    %v2814 = vunpack.c.l.s4 1934713408
    %v2815 = vunpack.c.0.s8 %v2814
    %v2816 = vlaneseq
    %v2817 = vshrl.u32 %v2816, 7
    %v2818 = vsub.s32 %v2815, %v2817
    %v2819 = vrot.slane %v2805, %v2818
    %v2820 = vcombine.low %v2787, %v2803
    %v2821 = vcombine.high %v2787, %v2803
    %v2823 = vunpack.c.l.s4 1934713408
    %v2824 = vunpack.c.0.s8 %v2823
    %v2825 = vlaneseq
    %v2826 = vshrl.u32 %v2825, 7
    %v2827 = vsub.s32 %v2824, %v2826
    %v2828 = vrot.slane %v2820, %v2827
    %v2830 = vunpack.c.l.s4 1934713408
    %v2831 = vunpack.c.0.s8 %v2830
    %v2832 = vlaneseq
    %v2833 = vshrl.u32 %v2832, 7
    %v2834 = vsub.s32 %v2831, %v2833
    %v2835 = vrot.slane %v2821, %v2834
    %v2836 = vcombine.high %v2812, 0.0
    %v2837 = vcombine.high %v2819, 0.0
    %v2838 = vcombine.high %v2828, 0.0
    %v2839 = vcombine.high %v2835, 0.0
    %v2840 = vcombine.low %v1355, %v1548
    %v2841 = vcombine.high %v1355, %v1548
    %v2843 = vunpack.c.l.s4 1983009808
    %v2844 = vunpack.c.0.s8 %v2843
    %v2845 = vlaneseq
    %v2846 = vshrl.u32 %v2845, 7
    %v2847 = vsub.s32 %v2844, %v2846
    %v2848 = vrot.slane %v2840, %v2847
    %v2850 = vunpack.c.l.s4 1983009808
    %v2851 = vunpack.c.0.s8 %v2850
    %v2852 = vlaneseq
    %v2853 = vshrl.u32 %v2852, 7
    %v2854 = vsub.s32 %v2851, %v2853
    %v2855 = vrot.slane %v2841, %v2854
    %v2856 = vcombine.low %v1357, %v1550
    %v2857 = vcombine.high %v1357, %v1550
    %v2859 = vunpack.c.l.s4 1983009808
    %v2860 = vunpack.c.0.s8 %v2859
    %v2861 = vlaneseq
    %v2862 = vshrl.u32 %v2861, 7
    %v2863 = vsub.s32 %v2860, %v2862
    %v2864 = vrot.slane %v2856, %v2863
    %v2866 = vunpack.c.l.s4 1983009808
    %v2867 = vunpack.c.0.s8 %v2866
    %v2868 = vlaneseq
    %v2869 = vshrl.u32 %v2868, 7
    %v2870 = vsub.s32 %v2867, %v2869
    %v2871 = vrot.slane %v2857, %v2870
    %v2872 = vcombine.low %v2848, %v2864
    %v2873 = vcombine.high %v2848, %v2864
    %v2875 = vunpack.c.l.s4 1934713408
    %v2876 = vunpack.c.0.s8 %v2875
    %v2877 = vlaneseq
    %v2878 = vshrl.u32 %v2877, 7
    %v2879 = vsub.s32 %v2876, %v2878
    %v2880 = vrot.slane %v2872, %v2879
    %v2882 = vunpack.c.l.s4 1934713408
    %v2883 = vunpack.c.0.s8 %v2882
    %v2884 = vlaneseq
    %v2885 = vshrl.u32 %v2884, 7
    %v2886 = vsub.s32 %v2883, %v2885
    %v2887 = vrot.slane %v2873, %v2886
    %v2888 = vcombine.low %v2855, %v2871
    %v2889 = vcombine.high %v2855, %v2871
    %v2891 = vunpack.c.l.s4 1934713408
    %v2892 = vunpack.c.0.s8 %v2891
    %v2893 = vlaneseq
    %v2894 = vshrl.u32 %v2893, 7
    %v2895 = vsub.s32 %v2892, %v2894
    %v2896 = vrot.slane %v2888, %v2895
    %v2898 = vunpack.c.l.s4 1934713408
    %v2899 = vunpack.c.0.s8 %v2898
    %v2900 = vlaneseq
    %v2901 = vshrl.u32 %v2900, 7
    %v2902 = vsub.s32 %v2899, %v2901
    %v2903 = vrot.slane %v2889, %v2902
    %v2904 = vcombine.high %v2880, 0.0
    %v2905 = vcombine.high %v2887, 0.0
    %v2906 = vcombine.high %v2896, 0.0
    %v2907 = vcombine.high %v2903, 0.0
    %v2908 = vcombine.low %v1359, %v1552
    %v2909 = vcombine.high %v1359, %v1552
    %v2911 = vunpack.c.l.s4 1983009808
    %v2912 = vunpack.c.0.s8 %v2911
    %v2913 = vlaneseq
    %v2914 = vshrl.u32 %v2913, 7
    %v2915 = vsub.s32 %v2912, %v2914
    %v2916 = vrot.slane %v2908, %v2915
    %v2918 = vunpack.c.l.s4 1983009808
    %v2919 = vunpack.c.0.s8 %v2918
    %v2920 = vlaneseq
    %v2921 = vshrl.u32 %v2920, 7
    %v2922 = vsub.s32 %v2919, %v2921
    %v2923 = vrot.slane %v2909, %v2922
    %v2924 = vcombine.low %v1361, %v1554
    %v2925 = vcombine.high %v1361, %v1554
    %v2927 = vunpack.c.l.s4 1983009808
    %v2928 = vunpack.c.0.s8 %v2927
    %v2929 = vlaneseq
    %v2930 = vshrl.u32 %v2929, 7
    %v2931 = vsub.s32 %v2928, %v2930
    %v2932 = vrot.slane %v2924, %v2931
    %v2934 = vunpack.c.l.s4 1983009808
    %v2935 = vunpack.c.0.s8 %v2934
    %v2936 = vlaneseq
    %v2937 = vshrl.u32 %v2936, 7
    %v2938 = vsub.s32 %v2935, %v2937
    %v2939 = vrot.slane %v2925, %v2938
    %v2940 = vcombine.low %v2916, %v2932
    %v2941 = vcombine.high %v2916, %v2932
    %v2943 = vunpack.c.l.s4 1934713408
    %v2944 = vunpack.c.0.s8 %v2943
    %v2945 = vlaneseq
    %v2946 = vshrl.u32 %v2945, 7
    %v2947 = vsub.s32 %v2944, %v2946
    %v2948 = vrot.slane %v2940, %v2947
    %v2950 = vunpack.c.l.s4 1934713408
    %v2951 = vunpack.c.0.s8 %v2950
    %v2952 = vlaneseq
    %v2953 = vshrl.u32 %v2952, 7
    %v2954 = vsub.s32 %v2951, %v2953
    %v2955 = vrot.slane %v2941, %v2954
    %v2956 = vcombine.low %v2923, %v2939
    %v2957 = vcombine.high %v2923, %v2939
    %v2959 = vunpack.c.l.s4 1934713408
    %v2960 = vunpack.c.0.s8 %v2959
    %v2961 = vlaneseq
    %v2962 = vshrl.u32 %v2961, 7
    %v2963 = vsub.s32 %v2960, %v2962
    %v2964 = vrot.slane %v2956, %v2963
    %v2966 = vunpack.c.l.s4 1934713408
    %v2967 = vunpack.c.0.s8 %v2966
    %v2968 = vlaneseq
    %v2969 = vshrl.u32 %v2968, 7
    %v2970 = vsub.s32 %v2967, %v2969
    %v2971 = vrot.slane %v2957, %v2970
    %v2972 = vcombine.high %v2948, 0.0
    %v2973 = vcombine.high %v2955, 0.0
    %v2974 = vcombine.high %v2964, 0.0
    %v2975 = vcombine.high %v2971, 0.0
    %v2976 = vcombine.low %v1365, %v1558
    %v2977 = vcombine.high %v1365, %v1558
    %v2979 = vunpack.c.l.s4 1983009808
    %v2980 = vunpack.c.0.s8 %v2979
    %v2981 = vlaneseq
    %v2982 = vshrl.u32 %v2981, 7
    %v2983 = vsub.s32 %v2980, %v2982
    %v2984 = vrot.slane %v2976, %v2983
    %v2986 = vunpack.c.l.s4 1983009808
    %v2987 = vunpack.c.0.s8 %v2986
    %v2988 = vlaneseq
    %v2989 = vshrl.u32 %v2988, 7
    %v2990 = vsub.s32 %v2987, %v2989
    %v2991 = vrot.slane %v2977, %v2990
    %v2992 = vcombine.low %v1367, %v1560
    %v2993 = vcombine.high %v1367, %v1560
    %v2995 = vunpack.c.l.s4 1983009808
    %v2996 = vunpack.c.0.s8 %v2995
    %v2997 = vlaneseq
    %v2998 = vshrl.u32 %v2997, 7
    %v2999 = vsub.s32 %v2996, %v2998
    %v3000 = vrot.slane %v2992, %v2999
    %v3002 = vunpack.c.l.s4 1983009808
    %v3003 = vunpack.c.0.s8 %v3002
    %v3004 = vlaneseq
    %v3005 = vshrl.u32 %v3004, 7
    %v3006 = vsub.s32 %v3003, %v3005
    %v3007 = vrot.slane %v2993, %v3006
    %v3008 = vcombine.low %v2984, %v3000
    %v3009 = vcombine.high %v2984, %v3000
    %v3011 = vunpack.c.l.s4 1934713408
    %v3012 = vunpack.c.0.s8 %v3011
    %v3013 = vlaneseq
    %v3014 = vshrl.u32 %v3013, 7
    %v3015 = vsub.s32 %v3012, %v3014
    %v3016 = vrot.slane %v3008, %v3015
    %v3018 = vunpack.c.l.s4 1934713408
    %v3019 = vunpack.c.0.s8 %v3018
    %v3020 = vlaneseq
    %v3021 = vshrl.u32 %v3020, 7
    %v3022 = vsub.s32 %v3019, %v3021
    %v3023 = vrot.slane %v3009, %v3022
    %v3024 = vcombine.low %v2991, %v3007
    %v3025 = vcombine.high %v2991, %v3007
    %v3027 = vunpack.c.l.s4 1934713408
    %v3028 = vunpack.c.0.s8 %v3027
    %v3029 = vlaneseq
    %v3030 = vshrl.u32 %v3029, 7
    %v3031 = vsub.s32 %v3028, %v3030
    %v3032 = vrot.slane %v3024, %v3031
    %v3034 = vunpack.c.l.s4 1934713408
    %v3035 = vunpack.c.0.s8 %v3034
    %v3036 = vlaneseq
    %v3037 = vshrl.u32 %v3036, 7
    %v3038 = vsub.s32 %v3035, %v3037
    %v3039 = vrot.slane %v3025, %v3038
    %v3040 = vcombine.high %v3016, 0.0
    %v3041 = vcombine.high %v3023, 0.0
    %v3042 = vcombine.high %v3032, 0.0
    %v3043 = vcombine.high %v3039, 0.0
    %v3044 = vcombine.low %v1369, %v1562
    %v3045 = vcombine.high %v1369, %v1562
    %v3047 = vunpack.c.l.s4 1983009808
    %v3048 = vunpack.c.0.s8 %v3047
    %v3049 = vlaneseq
    %v3050 = vshrl.u32 %v3049, 7
    %v3051 = vsub.s32 %v3048, %v3050
    %v3052 = vrot.slane %v3044, %v3051
    %v3054 = vunpack.c.l.s4 1983009808
    %v3055 = vunpack.c.0.s8 %v3054
    %v3056 = vlaneseq
    %v3057 = vshrl.u32 %v3056, 7
    %v3058 = vsub.s32 %v3055, %v3057
    %v3059 = vrot.slane %v3045, %v3058
    %v3060 = vcombine.low %v1371, %v1564
    %v3061 = vcombine.high %v1371, %v1564
    %v3063 = vunpack.c.l.s4 1983009808
    %v3064 = vunpack.c.0.s8 %v3063
    %v3065 = vlaneseq
    %v3066 = vshrl.u32 %v3065, 7
    %v3067 = vsub.s32 %v3064, %v3066
    %v3068 = vrot.slane %v3060, %v3067
    %v3070 = vunpack.c.l.s4 1983009808
    %v3071 = vunpack.c.0.s8 %v3070
    %v3072 = vlaneseq
    %v3073 = vshrl.u32 %v3072, 7
    %v3074 = vsub.s32 %v3071, %v3073
    %v3075 = vrot.slane %v3061, %v3074
    %v3076 = vcombine.low %v3052, %v3068
    %v3077 = vcombine.high %v3052, %v3068
    %v3079 = vunpack.c.l.s4 1934713408
    %v3080 = vunpack.c.0.s8 %v3079
    %v3081 = vlaneseq
    %v3082 = vshrl.u32 %v3081, 7
    %v3083 = vsub.s32 %v3080, %v3082
    %v3084 = vrot.slane %v3076, %v3083
    %v3086 = vunpack.c.l.s4 1934713408
    %v3087 = vunpack.c.0.s8 %v3086
    %v3088 = vlaneseq
    %v3089 = vshrl.u32 %v3088, 7
    %v3090 = vsub.s32 %v3087, %v3089
    %v3091 = vrot.slane %v3077, %v3090
    %v3092 = vcombine.low %v3059, %v3075
    %v3093 = vcombine.high %v3059, %v3075
    %v3095 = vunpack.c.l.s4 1934713408
    %v3096 = vunpack.c.0.s8 %v3095
    %v3097 = vlaneseq
    %v3098 = vshrl.u32 %v3097, 7
    %v3099 = vsub.s32 %v3096, %v3098
    %v3100 = vrot.slane %v3092, %v3099
    %v3102 = vunpack.c.l.s4 1934713408
    %v3103 = vunpack.c.0.s8 %v3102
    %v3104 = vlaneseq
    %v3105 = vshrl.u32 %v3104, 7
    %v3106 = vsub.s32 %v3103, %v3105
    %v3107 = vrot.slane %v3093, %v3106
    %v3108 = vcombine.high %v3084, 0.0
    %v3109 = vcombine.high %v3091, 0.0
    %v3110 = vcombine.high %v3100, 0.0
    %v3111 = vcombine.high %v3107, 0.0
    %v3112 = vcombine.low %v1375, %v1568
    %v3113 = vcombine.high %v1375, %v1568
    %v3115 = vunpack.c.l.s4 1983009808
    %v3116 = vunpack.c.0.s8 %v3115
    %v3117 = vlaneseq
    %v3118 = vshrl.u32 %v3117, 7
    %v3119 = vsub.s32 %v3116, %v3118
    %v3120 = vrot.slane %v3112, %v3119
    %v3122 = vunpack.c.l.s4 1983009808
    %v3123 = vunpack.c.0.s8 %v3122
    %v3124 = vlaneseq
    %v3125 = vshrl.u32 %v3124, 7
    %v3126 = vsub.s32 %v3123, %v3125
    %v3127 = vrot.slane %v3113, %v3126
    %v3128 = vcombine.low %v1377, %v1570
    %v3129 = vcombine.high %v1377, %v1570
    %v3131 = vunpack.c.l.s4 1983009808
    %v3132 = vunpack.c.0.s8 %v3131
    %v3133 = vlaneseq
    %v3134 = vshrl.u32 %v3133, 7
    %v3135 = vsub.s32 %v3132, %v3134
    %v3136 = vrot.slane %v3128, %v3135
    %v3138 = vunpack.c.l.s4 1983009808
    %v3139 = vunpack.c.0.s8 %v3138
    %v3140 = vlaneseq
    %v3141 = vshrl.u32 %v3140, 7
    %v3142 = vsub.s32 %v3139, %v3141
    %v3143 = vrot.slane %v3129, %v3142
    %v3144 = vcombine.low %v3120, %v3136
    %v3145 = vcombine.high %v3120, %v3136
    %v3147 = vunpack.c.l.s4 1934713408
    %v3148 = vunpack.c.0.s8 %v3147
    %v3149 = vlaneseq
    %v3150 = vshrl.u32 %v3149, 7
    %v3151 = vsub.s32 %v3148, %v3150
    %v3152 = vrot.slane %v3144, %v3151
    %v3154 = vunpack.c.l.s4 1934713408
    %v3155 = vunpack.c.0.s8 %v3154
    %v3156 = vlaneseq
    %v3157 = vshrl.u32 %v3156, 7
    %v3158 = vsub.s32 %v3155, %v3157
    %v3159 = vrot.slane %v3145, %v3158
    %v3160 = vcombine.low %v3127, %v3143
    %v3161 = vcombine.high %v3127, %v3143
    %v3163 = vunpack.c.l.s4 1934713408
    %v3164 = vunpack.c.0.s8 %v3163
    %v3165 = vlaneseq
    %v3166 = vshrl.u32 %v3165, 7
    %v3167 = vsub.s32 %v3164, %v3166
    %v3168 = vrot.slane %v3160, %v3167
    %v3170 = vunpack.c.l.s4 1934713408
    %v3171 = vunpack.c.0.s8 %v3170
    %v3172 = vlaneseq
    %v3173 = vshrl.u32 %v3172, 7
    %v3174 = vsub.s32 %v3171, %v3173
    %v3175 = vrot.slane %v3161, %v3174
    %v3176 = vcombine.high %v3152, 0.0
    %v3177 = vcombine.high %v3159, 0.0
    %v3178 = vcombine.high %v3168, 0.0
    %v3179 = vcombine.high %v3175, 0.0
    %v3180 = vcombine.low %v1379, %v1572
    %v3181 = vcombine.high %v1379, %v1572
    %v3183 = vunpack.c.l.s4 1983009808
    %v3184 = vunpack.c.0.s8 %v3183
    %v3185 = vlaneseq
    %v3186 = vshrl.u32 %v3185, 7
    %v3187 = vsub.s32 %v3184, %v3186
    %v3188 = vrot.slane %v3180, %v3187
    %v3190 = vunpack.c.l.s4 1983009808
    %v3191 = vunpack.c.0.s8 %v3190
    %v3192 = vlaneseq
    %v3193 = vshrl.u32 %v3192, 7
    %v3194 = vsub.s32 %v3191, %v3193
    %v3195 = vrot.slane %v3181, %v3194
    %v3196 = vcombine.low %v1381, %v1574
    %v3197 = vcombine.high %v1381, %v1574
    %v3199 = vunpack.c.l.s4 1983009808
    %v3200 = vunpack.c.0.s8 %v3199
    %v3201 = vlaneseq
    %v3202 = vshrl.u32 %v3201, 7
    %v3203 = vsub.s32 %v3200, %v3202
    %v3204 = vrot.slane %v3196, %v3203
    %v3206 = vunpack.c.l.s4 1983009808
    %v3207 = vunpack.c.0.s8 %v3206
    %v3208 = vlaneseq
    %v3209 = vshrl.u32 %v3208, 7
    %v3210 = vsub.s32 %v3207, %v3209
    %v3211 = vrot.slane %v3197, %v3210
    %v3212 = vcombine.low %v3188, %v3204
    %v3213 = vcombine.high %v3188, %v3204
    %v3215 = vunpack.c.l.s4 1934713408
    %v3216 = vunpack.c.0.s8 %v3215
    %v3217 = vlaneseq
    %v3218 = vshrl.u32 %v3217, 7
    %v3219 = vsub.s32 %v3216, %v3218
    %v3220 = vrot.slane %v3212, %v3219
    %v3222 = vunpack.c.l.s4 1934713408
    %v3223 = vunpack.c.0.s8 %v3222
    %v3224 = vlaneseq
    %v3225 = vshrl.u32 %v3224, 7
    %v3226 = vsub.s32 %v3223, %v3225
    %v3227 = vrot.slane %v3213, %v3226
    %v3228 = vcombine.low %v3195, %v3211
    %v3229 = vcombine.high %v3195, %v3211
    %v3231 = vunpack.c.l.s4 1934713408
    %v3232 = vunpack.c.0.s8 %v3231
    %v3233 = vlaneseq
    %v3234 = vshrl.u32 %v3233, 7
    %v3235 = vsub.s32 %v3232, %v3234
    %v3236 = vrot.slane %v3228, %v3235
    %v3238 = vunpack.c.l.s4 1934713408
    %v3239 = vunpack.c.0.s8 %v3238
    %v3240 = vlaneseq
    %v3241 = vshrl.u32 %v3240, 7
    %v3242 = vsub.s32 %v3239, %v3241
    %v3243 = vrot.slane %v3229, %v3242
    %v3244 = vcombine.high %v3220, 0.0
    %v3245 = vcombine.high %v3227, 0.0
    %v3246 = vcombine.high %v3236, 0.0
    %v3247 = vcombine.high %v3243, 0.0
    %v3248 = vcombine.low %v1385, %v1578
    %v3249 = vcombine.high %v1385, %v1578
    %v3251 = vunpack.c.l.s4 1983009808
    %v3252 = vunpack.c.0.s8 %v3251
    %v3253 = vlaneseq
    %v3254 = vshrl.u32 %v3253, 7
    %v3255 = vsub.s32 %v3252, %v3254
    %v3256 = vrot.slane %v3248, %v3255
    %v3258 = vunpack.c.l.s4 1983009808
    %v3259 = vunpack.c.0.s8 %v3258
    %v3260 = vlaneseq
    %v3261 = vshrl.u32 %v3260, 7
    %v3262 = vsub.s32 %v3259, %v3261
    %v3263 = vrot.slane %v3249, %v3262
    %v3264 = vcombine.low %v1387, %v1580
    %v3265 = vcombine.high %v1387, %v1580
    %v3267 = vunpack.c.l.s4 1983009808
    %v3268 = vunpack.c.0.s8 %v3267
    %v3269 = vlaneseq
    %v3270 = vshrl.u32 %v3269, 7
    %v3271 = vsub.s32 %v3268, %v3270
    %v3272 = vrot.slane %v3264, %v3271
    %v3274 = vunpack.c.l.s4 1983009808
    %v3275 = vunpack.c.0.s8 %v3274
    %v3276 = vlaneseq
    %v3277 = vshrl.u32 %v3276, 7
    %v3278 = vsub.s32 %v3275, %v3277
    %v3279 = vrot.slane %v3265, %v3278
    %v3280 = vcombine.low %v3256, %v3272
    %v3281 = vcombine.high %v3256, %v3272
    %v3283 = vunpack.c.l.s4 1934713408
    %v3284 = vunpack.c.0.s8 %v3283
    %v3285 = vlaneseq
    %v3286 = vshrl.u32 %v3285, 7
    %v3287 = vsub.s32 %v3284, %v3286
    %v3288 = vrot.slane %v3280, %v3287
    %v3290 = vunpack.c.l.s4 1934713408
    %v3291 = vunpack.c.0.s8 %v3290
    %v3292 = vlaneseq
    %v3293 = vshrl.u32 %v3292, 7
    %v3294 = vsub.s32 %v3291, %v3293
    %v3295 = vrot.slane %v3281, %v3294
    %v3296 = vcombine.low %v3263, %v3279
    %v3297 = vcombine.high %v3263, %v3279
    %v3299 = vunpack.c.l.s4 1934713408
    %v3300 = vunpack.c.0.s8 %v3299
    %v3301 = vlaneseq
    %v3302 = vshrl.u32 %v3301, 7
    %v3303 = vsub.s32 %v3300, %v3302
    %v3304 = vrot.slane %v3296, %v3303
    %v3306 = vunpack.c.l.s4 1934713408
    %v3307 = vunpack.c.0.s8 %v3306
    %v3308 = vlaneseq
    %v3309 = vshrl.u32 %v3308, 7
    %v3310 = vsub.s32 %v3307, %v3309
    %v3311 = vrot.slane %v3297, %v3310
    %v3312 = vcombine.high %v3288, 0.0
    %v3313 = vcombine.high %v3295, 0.0
    %v3314 = vcombine.high %v3304, 0.0
    %v3315 = vcombine.high %v3311, 0.0
    %v3316 = vcombine.low %v1389, %v1582
    %v3317 = vcombine.high %v1389, %v1582
    %v3319 = vunpack.c.l.s4 1983009808
    %v3320 = vunpack.c.0.s8 %v3319
    %v3321 = vlaneseq
    %v3322 = vshrl.u32 %v3321, 7
    %v3323 = vsub.s32 %v3320, %v3322
    %v3324 = vrot.slane %v3316, %v3323
    %v3326 = vunpack.c.l.s4 1983009808
    %v3327 = vunpack.c.0.s8 %v3326
    %v3328 = vlaneseq
    %v3329 = vshrl.u32 %v3328, 7
    %v3330 = vsub.s32 %v3327, %v3329
    %v3331 = vrot.slane %v3317, %v3330
    %v3332 = vcombine.low %v1391, %v1584
    %v3333 = vcombine.high %v1391, %v1584
    %v3335 = vunpack.c.l.s4 1983009808
    %v3336 = vunpack.c.0.s8 %v3335
    %v3337 = vlaneseq
    %v3338 = vshrl.u32 %v3337, 7
    %v3339 = vsub.s32 %v3336, %v3338
    %v3340 = vrot.slane %v3332, %v3339
    %v3342 = vunpack.c.l.s4 1983009808
    %v3343 = vunpack.c.0.s8 %v3342
    %v3344 = vlaneseq
    %v3345 = vshrl.u32 %v3344, 7
    %v3346 = vsub.s32 %v3343, %v3345
    %v3347 = vrot.slane %v3333, %v3346
    %v3348 = vcombine.low %v3324, %v3340
    %v3349 = vcombine.high %v3324, %v3340
    %v3351 = vunpack.c.l.s4 1934713408
    %v3352 = vunpack.c.0.s8 %v3351
    %v3353 = vlaneseq
    %v3354 = vshrl.u32 %v3353, 7
    %v3355 = vsub.s32 %v3352, %v3354
    %v3356 = vrot.slane %v3348, %v3355
    %v3358 = vunpack.c.l.s4 1934713408
    %v3359 = vunpack.c.0.s8 %v3358
    %v3360 = vlaneseq
    %v3361 = vshrl.u32 %v3360, 7
    %v3362 = vsub.s32 %v3359, %v3361
    %v3363 = vrot.slane %v3349, %v3362
    %v3364 = vcombine.low %v3331, %v3347
    %v3365 = vcombine.high %v3331, %v3347
    %v3367 = vunpack.c.l.s4 1934713408
    %v3368 = vunpack.c.0.s8 %v3367
    %v3369 = vlaneseq
    %v3370 = vshrl.u32 %v3369, 7
    %v3371 = vsub.s32 %v3368, %v3370
    %v3372 = vrot.slane %v3364, %v3371
    %v3374 = vunpack.c.l.s4 1934713408
    %v3375 = vunpack.c.0.s8 %v3374
    %v3376 = vlaneseq
    %v3377 = vshrl.u32 %v3376, 7
    %v3378 = vsub.s32 %v3375, %v3377
    %v3379 = vrot.slane %v3365, %v3378
    %v3380 = vcombine.high %v3356, 0.0
    %v3381 = vcombine.high %v3363, 0.0
    %v3382 = vcombine.high %v3372, 0.0
    %v3383 = vcombine.high %v3379, 0.0
    %v3384 = vcombine.low %v1395, %v1588
    %v3385 = vcombine.high %v1395, %v1588
    %v3387 = vunpack.c.l.s4 1983009808
    %v3388 = vunpack.c.0.s8 %v3387
    %v3389 = vlaneseq
    %v3390 = vshrl.u32 %v3389, 7
    %v3391 = vsub.s32 %v3388, %v3390
    %v3392 = vrot.slane %v3384, %v3391
    %v3394 = vunpack.c.l.s4 1983009808
    %v3395 = vunpack.c.0.s8 %v3394
    %v3396 = vlaneseq
    %v3397 = vshrl.u32 %v3396, 7
    %v3398 = vsub.s32 %v3395, %v3397
    %v3399 = vrot.slane %v3385, %v3398
    %v3400 = vcombine.low %v1397, %v1590
    %v3401 = vcombine.high %v1397, %v1590
    %v3403 = vunpack.c.l.s4 1983009808
    %v3404 = vunpack.c.0.s8 %v3403
    %v3405 = vlaneseq
    %v3406 = vshrl.u32 %v3405, 7
    %v3407 = vsub.s32 %v3404, %v3406
    %v3408 = vrot.slane %v3400, %v3407
    %v3410 = vunpack.c.l.s4 1983009808
    %v3411 = vunpack.c.0.s8 %v3410
    %v3412 = vlaneseq
    %v3413 = vshrl.u32 %v3412, 7
    %v3414 = vsub.s32 %v3411, %v3413
    %v3415 = vrot.slane %v3401, %v3414
    %v3416 = vcombine.low %v3392, %v3408
    %v3417 = vcombine.high %v3392, %v3408
    %v3419 = vunpack.c.l.s4 1934713408
    %v3420 = vunpack.c.0.s8 %v3419
    %v3421 = vlaneseq
    %v3422 = vshrl.u32 %v3421, 7
    %v3423 = vsub.s32 %v3420, %v3422
    %v3424 = vrot.slane %v3416, %v3423
    %v3426 = vunpack.c.l.s4 1934713408
    %v3427 = vunpack.c.0.s8 %v3426
    %v3428 = vlaneseq
    %v3429 = vshrl.u32 %v3428, 7
    %v3430 = vsub.s32 %v3427, %v3429
    %v3431 = vrot.slane %v3417, %v3430
    %v3432 = vcombine.low %v3399, %v3415
    %v3433 = vcombine.high %v3399, %v3415
    %v3435 = vunpack.c.l.s4 1934713408
    %v3436 = vunpack.c.0.s8 %v3435
    %v3437 = vlaneseq
    %v3438 = vshrl.u32 %v3437, 7
    %v3439 = vsub.s32 %v3436, %v3438
    %v3440 = vrot.slane %v3432, %v3439
    %v3442 = vunpack.c.l.s4 1934713408
    %v3443 = vunpack.c.0.s8 %v3442
    %v3444 = vlaneseq
    %v3445 = vshrl.u32 %v3444, 7
    %v3446 = vsub.s32 %v3443, %v3445
    %v3447 = vrot.slane %v3433, %v3446
    %v3448 = vcombine.high %v3424, 0.0
    %v3449 = vcombine.high %v3431, 0.0
    %v3450 = vcombine.high %v3440, 0.0
    %v3451 = vcombine.high %v3447, 0.0
    %v3452 = vcombine.low %v1399, %v1592
    %v3453 = vcombine.high %v1399, %v1592
    %v3455 = vunpack.c.l.s4 1983009808
    %v3456 = vunpack.c.0.s8 %v3455
    %v3457 = vlaneseq
    %v3458 = vshrl.u32 %v3457, 7
    %v3459 = vsub.s32 %v3456, %v3458
    %v3460 = vrot.slane %v3452, %v3459
    %v3462 = vunpack.c.l.s4 1983009808
    %v3463 = vunpack.c.0.s8 %v3462
    %v3464 = vlaneseq
    %v3465 = vshrl.u32 %v3464, 7
    %v3466 = vsub.s32 %v3463, %v3465
    %v3467 = vrot.slane %v3453, %v3466
    %v3468 = vcombine.low %v1401, %v1594
    %v3469 = vcombine.high %v1401, %v1594
    %v3471 = vunpack.c.l.s4 1983009808
    %v3472 = vunpack.c.0.s8 %v3471
    %v3473 = vlaneseq
    %v3474 = vshrl.u32 %v3473, 7
    %v3475 = vsub.s32 %v3472, %v3474
    %v3476 = vrot.slane %v3468, %v3475
    %v3478 = vunpack.c.l.s4 1983009808
    %v3479 = vunpack.c.0.s8 %v3478
    %v3480 = vlaneseq
    %v3481 = vshrl.u32 %v3480, 7
    %v3482 = vsub.s32 %v3479, %v3481
    %v3483 = vrot.slane %v3469, %v3482
    %v3484 = vcombine.low %v3460, %v3476
    %v3485 = vcombine.high %v3460, %v3476
    %v3487 = vunpack.c.l.s4 1934713408
    %v3488 = vunpack.c.0.s8 %v3487
    %v3489 = vlaneseq
    %v3490 = vshrl.u32 %v3489, 7
    %v3491 = vsub.s32 %v3488, %v3490
    %v3492 = vrot.slane %v3484, %v3491
    %v3494 = vunpack.c.l.s4 1934713408
    %v3495 = vunpack.c.0.s8 %v3494
    %v3496 = vlaneseq
    %v3497 = vshrl.u32 %v3496, 7
    %v3498 = vsub.s32 %v3495, %v3497
    %v3499 = vrot.slane %v3485, %v3498
    %v3500 = vcombine.low %v3467, %v3483
    %v3501 = vcombine.high %v3467, %v3483
    %v3503 = vunpack.c.l.s4 1934713408
    %v3504 = vunpack.c.0.s8 %v3503
    %v3505 = vlaneseq
    %v3506 = vshrl.u32 %v3505, 7
    %v3507 = vsub.s32 %v3504, %v3506
    %v3508 = vrot.slane %v3500, %v3507
    %v3510 = vunpack.c.l.s4 1934713408
    %v3511 = vunpack.c.0.s8 %v3510
    %v3512 = vlaneseq
    %v3513 = vshrl.u32 %v3512, 7
    %v3514 = vsub.s32 %v3511, %v3513
    %v3515 = vrot.slane %v3501, %v3514
    %v3516 = vcombine.high %v3492, 0.0
    %v3517 = vcombine.high %v3499, 0.0
    %v3518 = vcombine.high %v3508, 0.0
    %v3519 = vcombine.high %v3515, 0.0
    %v3520 = vcombine.low %v1405, %v1598
    %v3521 = vcombine.high %v1405, %v1598
    %v3523 = vunpack.c.l.s4 1983009808
    %v3524 = vunpack.c.0.s8 %v3523
    %v3525 = vlaneseq
    %v3526 = vshrl.u32 %v3525, 7
    %v3527 = vsub.s32 %v3524, %v3526
    %v3528 = vrot.slane %v3520, %v3527
    %v3530 = vunpack.c.l.s4 1983009808
    %v3531 = vunpack.c.0.s8 %v3530
    %v3532 = vlaneseq
    %v3533 = vshrl.u32 %v3532, 7
    %v3534 = vsub.s32 %v3531, %v3533
    %v3535 = vrot.slane %v3521, %v3534
    %v3536 = vcombine.low %v1407, %v1600
    %v3537 = vcombine.high %v1407, %v1600
    %v3539 = vunpack.c.l.s4 1983009808
    %v3540 = vunpack.c.0.s8 %v3539
    %v3541 = vlaneseq
    %v3542 = vshrl.u32 %v3541, 7
    %v3543 = vsub.s32 %v3540, %v3542
    %v3544 = vrot.slane %v3536, %v3543
    %v3546 = vunpack.c.l.s4 1983009808
    %v3547 = vunpack.c.0.s8 %v3546
    %v3548 = vlaneseq
    %v3549 = vshrl.u32 %v3548, 7
    %v3550 = vsub.s32 %v3547, %v3549
    %v3551 = vrot.slane %v3537, %v3550
    %v3552 = vcombine.low %v3528, %v3544
    %v3553 = vcombine.high %v3528, %v3544
    %v3555 = vunpack.c.l.s4 1934713408
    %v3556 = vunpack.c.0.s8 %v3555
    %v3557 = vlaneseq
    %v3558 = vshrl.u32 %v3557, 7
    %v3559 = vsub.s32 %v3556, %v3558
    %v3560 = vrot.slane %v3552, %v3559
    %v3562 = vunpack.c.l.s4 1934713408
    %v3563 = vunpack.c.0.s8 %v3562
    %v3564 = vlaneseq
    %v3565 = vshrl.u32 %v3564, 7
    %v3566 = vsub.s32 %v3563, %v3565
    %v3567 = vrot.slane %v3553, %v3566
    %v3568 = vcombine.low %v3535, %v3551
    %v3569 = vcombine.high %v3535, %v3551
    %v3571 = vunpack.c.l.s4 1934713408
    %v3572 = vunpack.c.0.s8 %v3571
    %v3573 = vlaneseq
    %v3574 = vshrl.u32 %v3573, 7
    %v3575 = vsub.s32 %v3572, %v3574
    %v3576 = vrot.slane %v3568, %v3575
    %v3578 = vunpack.c.l.s4 1934713408
    %v3579 = vunpack.c.0.s8 %v3578
    %v3580 = vlaneseq
    %v3581 = vshrl.u32 %v3580, 7
    %v3582 = vsub.s32 %v3579, %v3581
    %v3583 = vrot.slane %v3569, %v3582
    %v3584 = vcombine.high %v3560, 0.0
    %v3585 = vcombine.high %v3567, 0.0
    %v3586 = vcombine.high %v3576, 0.0
    %v3587 = vcombine.high %v3583, 0.0
    %v3588 = vcombine.low %v1409, %v1602
    %v3589 = vcombine.high %v1409, %v1602
    %v3591 = vunpack.c.l.s4 1983009808
    %v3592 = vunpack.c.0.s8 %v3591
    %v3593 = vlaneseq
    %v3594 = vshrl.u32 %v3593, 7
    %v3595 = vsub.s32 %v3592, %v3594
    %v3596 = vrot.slane %v3588, %v3595
    %v3598 = vunpack.c.l.s4 1983009808
    %v3599 = vunpack.c.0.s8 %v3598
    %v3600 = vlaneseq
    %v3601 = vshrl.u32 %v3600, 7
    %v3602 = vsub.s32 %v3599, %v3601
    %v3603 = vrot.slane %v3589, %v3602
    %v3604 = vcombine.low %v1411, %v1604
    %v3605 = vcombine.high %v1411, %v1604
    %v3607 = vunpack.c.l.s4 1983009808
    %v3608 = vunpack.c.0.s8 %v3607
    %v3609 = vlaneseq
    %v3610 = vshrl.u32 %v3609, 7
    %v3611 = vsub.s32 %v3608, %v3610
    %v3612 = vrot.slane %v3604, %v3611
    %v3614 = vunpack.c.l.s4 1983009808
    %v3615 = vunpack.c.0.s8 %v3614
    %v3616 = vlaneseq
    %v3617 = vshrl.u32 %v3616, 7
    %v3618 = vsub.s32 %v3615, %v3617
    %v3619 = vrot.slane %v3605, %v3618
    %v3620 = vcombine.low %v3596, %v3612
    %v3621 = vcombine.high %v3596, %v3612
    %v3623 = vunpack.c.l.s4 1934713408
    %v3624 = vunpack.c.0.s8 %v3623
    %v3625 = vlaneseq
    %v3626 = vshrl.u32 %v3625, 7
    %v3627 = vsub.s32 %v3624, %v3626
    %v3628 = vrot.slane %v3620, %v3627
    %v3630 = vunpack.c.l.s4 1934713408
    %v3631 = vunpack.c.0.s8 %v3630
    %v3632 = vlaneseq
    %v3633 = vshrl.u32 %v3632, 7
    %v3634 = vsub.s32 %v3631, %v3633
    %v3635 = vrot.slane %v3621, %v3634
    %v3636 = vcombine.low %v3603, %v3619
    %v3637 = vcombine.high %v3603, %v3619
    %v3639 = vunpack.c.l.s4 1934713408
    %v3640 = vunpack.c.0.s8 %v3639
    %v3641 = vlaneseq
    %v3642 = vshrl.u32 %v3641, 7
    %v3643 = vsub.s32 %v3640, %v3642
    %v3644 = vrot.slane %v3636, %v3643
    %v3646 = vunpack.c.l.s4 1934713408
    %v3647 = vunpack.c.0.s8 %v3646
    %v3648 = vlaneseq
    %v3649 = vshrl.u32 %v3648, 7
    %v3650 = vsub.s32 %v3647, %v3649
    %v3651 = vrot.slane %v3637, %v3650
    %v3652 = vcombine.high %v3628, 0.0
    %v3653 = vcombine.high %v3635, 0.0
    %v3654 = vcombine.high %v3644, 0.0
    %v3655 = vcombine.high %v3651, 0.0
    %v3656 = vcombine.low %v1415, %v1608
    %v3657 = vcombine.high %v1415, %v1608
    %v3659 = vunpack.c.l.s4 1983009808
    %v3660 = vunpack.c.0.s8 %v3659
    %v3661 = vlaneseq
    %v3662 = vshrl.u32 %v3661, 7
    %v3663 = vsub.s32 %v3660, %v3662
    %v3664 = vrot.slane %v3656, %v3663
    %v3666 = vunpack.c.l.s4 1983009808
    %v3667 = vunpack.c.0.s8 %v3666
    %v3668 = vlaneseq
    %v3669 = vshrl.u32 %v3668, 7
    %v3670 = vsub.s32 %v3667, %v3669
    %v3671 = vrot.slane %v3657, %v3670
    %v3672 = vcombine.low %v1417, %v1610
    %v3673 = vcombine.high %v1417, %v1610
    %v3675 = vunpack.c.l.s4 1983009808
    %v3676 = vunpack.c.0.s8 %v3675
    %v3677 = vlaneseq
    %v3678 = vshrl.u32 %v3677, 7
    %v3679 = vsub.s32 %v3676, %v3678
    %v3680 = vrot.slane %v3672, %v3679
    %v3682 = vunpack.c.l.s4 1983009808
    %v3683 = vunpack.c.0.s8 %v3682
    %v3684 = vlaneseq
    %v3685 = vshrl.u32 %v3684, 7
    %v3686 = vsub.s32 %v3683, %v3685
    %v3687 = vrot.slane %v3673, %v3686
    %v3688 = vcombine.low %v3664, %v3680
    %v3689 = vcombine.high %v3664, %v3680
    %v3691 = vunpack.c.l.s4 1934713408
    %v3692 = vunpack.c.0.s8 %v3691
    %v3693 = vlaneseq
    %v3694 = vshrl.u32 %v3693, 7
    %v3695 = vsub.s32 %v3692, %v3694
    %v3696 = vrot.slane %v3688, %v3695
    %v3698 = vunpack.c.l.s4 1934713408
    %v3699 = vunpack.c.0.s8 %v3698
    %v3700 = vlaneseq
    %v3701 = vshrl.u32 %v3700, 7
    %v3702 = vsub.s32 %v3699, %v3701
    %v3703 = vrot.slane %v3689, %v3702
    %v3704 = vcombine.low %v3671, %v3687
    %v3705 = vcombine.high %v3671, %v3687
    %v3707 = vunpack.c.l.s4 1934713408
    %v3708 = vunpack.c.0.s8 %v3707
    %v3709 = vlaneseq
    %v3710 = vshrl.u32 %v3709, 7
    %v3711 = vsub.s32 %v3708, %v3710
    %v3712 = vrot.slane %v3704, %v3711
    %v3714 = vunpack.c.l.s4 1934713408
    %v3715 = vunpack.c.0.s8 %v3714
    %v3716 = vlaneseq
    %v3717 = vshrl.u32 %v3716, 7
    %v3718 = vsub.s32 %v3715, %v3717
    %v3719 = vrot.slane %v3705, %v3718
    %v3720 = vcombine.high %v3696, 0.0
    %v3721 = vcombine.high %v3703, 0.0
    %v3722 = vcombine.high %v3712, 0.0
    %v3723 = vcombine.high %v3719, 0.0
    %v3724 = vcombine.low %v1419, %v1612
    %v3725 = vcombine.high %v1419, %v1612
    %v3727 = vunpack.c.l.s4 1983009808
    %v3728 = vunpack.c.0.s8 %v3727
    %v3729 = vlaneseq
    %v3730 = vshrl.u32 %v3729, 7
    %v3731 = vsub.s32 %v3728, %v3730
    %v3732 = vrot.slane %v3724, %v3731
    %v3734 = vunpack.c.l.s4 1983009808
    %v3735 = vunpack.c.0.s8 %v3734
    %v3736 = vlaneseq
    %v3737 = vshrl.u32 %v3736, 7
    %v3738 = vsub.s32 %v3735, %v3737
    %v3739 = vrot.slane %v3725, %v3738
    %v3740 = vcombine.low %v1421, %v1614
    %v3741 = vcombine.high %v1421, %v1614
    %v3743 = vunpack.c.l.s4 1983009808
    %v3744 = vunpack.c.0.s8 %v3743
    %v3745 = vlaneseq
    %v3746 = vshrl.u32 %v3745, 7
    %v3747 = vsub.s32 %v3744, %v3746
    %v3748 = vrot.slane %v3740, %v3747
    %v3750 = vunpack.c.l.s4 1983009808
    %v3751 = vunpack.c.0.s8 %v3750
    %v3752 = vlaneseq
    %v3753 = vshrl.u32 %v3752, 7
    %v3754 = vsub.s32 %v3751, %v3753
    %v3755 = vrot.slane %v3741, %v3754
    %v3756 = vcombine.low %v3732, %v3748
    %v3757 = vcombine.high %v3732, %v3748
    %v3759 = vunpack.c.l.s4 1934713408
    %v3760 = vunpack.c.0.s8 %v3759
    %v3761 = vlaneseq
    %v3762 = vshrl.u32 %v3761, 7
    %v3763 = vsub.s32 %v3760, %v3762
    %v3764 = vrot.slane %v3756, %v3763
    %v3766 = vunpack.c.l.s4 1934713408
    %v3767 = vunpack.c.0.s8 %v3766
    %v3768 = vlaneseq
    %v3769 = vshrl.u32 %v3768, 7
    %v3770 = vsub.s32 %v3767, %v3769
    %v3771 = vrot.slane %v3757, %v3770
    %v3772 = vcombine.low %v3739, %v3755
    %v3773 = vcombine.high %v3739, %v3755
    %v3775 = vunpack.c.l.s4 1934713408
    %v3776 = vunpack.c.0.s8 %v3775
    %v3777 = vlaneseq
    %v3778 = vshrl.u32 %v3777, 7
    %v3779 = vsub.s32 %v3776, %v3778
    %v3780 = vrot.slane %v3772, %v3779
    %v3782 = vunpack.c.l.s4 1934713408
    %v3783 = vunpack.c.0.s8 %v3782
    %v3784 = vlaneseq
    %v3785 = vshrl.u32 %v3784, 7
    %v3786 = vsub.s32 %v3783, %v3785
    %v3787 = vrot.slane %v3773, %v3786
    %v3788 = vcombine.high %v3764, 0.0
    %v3789 = vcombine.high %v3771, 0.0
    %v3790 = vcombine.high %v3780, 0.0
    %v3791 = vcombine.high %v3787, 0.0
    %vm3792 = vcmask 1043456
    %v3793 = vsel %vm3792, %v1656, -inf
    %3794 = vmax.xlane.f32.xlu0 %v3793
    %v3795 = vpop.xlane.xlu0 %3794
    %v3796 = vsel %vm3792, %v1680, -inf
    %3797 = vmax.xlane.f32.xlu0 %v3796
    %v3798 = vpop.xlane.xlu0 %3797
    %v3799 = vsel %vm3792, %v1663, -inf
    %3800 = vmax.xlane.f32.xlu0 %v3799
    %v3801 = vpop.xlane.xlu0 %3800
    %v3802 = vsel %vm3792, %v1681, -inf
    %3803 = vmax.xlane.f32.xlu0 %v3802
    %v3804 = vpop.xlane.xlu0 %3803
    %v3805 = vsel %vm3792, %v1672, -inf
    %3806 = vmax.xlane.f32.xlu0 %v3805
    %v3807 = vpop.xlane.xlu0 %3806
    %v3808 = vsel %vm3792, %v1682, -inf
    %3809 = vmax.xlane.f32.xlu0 %v3808
    %v3810 = vpop.xlane.xlu0 %3809
    %v3811 = vsel %vm3792, %v1679, -inf
    %3812 = vmax.xlane.f32.xlu0 %v3811
    %v3813 = vpop.xlane.xlu0 %3812
    %v3814 = vsel %vm3792, %v1683, -inf
    %3815 = vmax.xlane.f32.xlu0 %v3814
    %v3816 = vpop.xlane.xlu0 %3815
    %v3817 = vsel %vm3792, %v1724, -inf
    %3818 = vmax.xlane.f32.xlu0 %v3817
    %v3819 = vpop.xlane.xlu0 %3818
    %v3820 = vsel %vm3792, %v1748, -inf
    %3821 = vmax.xlane.f32.xlu0 %v3820
    %v3822 = vpop.xlane.xlu0 %3821
    %v3823 = vsel %vm3792, %v1731, -inf
    %3824 = vmax.xlane.f32.xlu0 %v3823
    %v3825 = vpop.xlane.xlu0 %3824
    %v3826 = vsel %vm3792, %v1749, -inf
    %3827 = vmax.xlane.f32.xlu0 %v3826
    %v3828 = vpop.xlane.xlu0 %3827
    %v3829 = vsel %vm3792, %v1740, -inf
    %3830 = vmax.xlane.f32.xlu0 %v3829
    %v3831 = vpop.xlane.xlu0 %3830
    %v3832 = vsel %vm3792, %v1750, -inf
    %3833 = vmax.xlane.f32.xlu0 %v3832
    %v3834 = vpop.xlane.xlu0 %3833
    %v3835 = vsel %vm3792, %v1747, -inf
    %3836 = vmax.xlane.f32.xlu0 %v3835
    %v3837 = vpop.xlane.xlu0 %3836
    %v3838 = vsel %vm3792, %v1751, -inf
    %3839 = vmax.xlane.f32.xlu0 %v3838
    %v3840 = vpop.xlane.xlu0 %3839
    %v3841 = vsel %vm3792, %v1792, -inf
    %3842 = vmax.xlane.f32.xlu0 %v3841
    %v3843 = vpop.xlane.xlu0 %3842
    %v3844 = vsel %vm3792, %v1816, -inf
    %3845 = vmax.xlane.f32.xlu0 %v3844
    %v3846 = vpop.xlane.xlu0 %3845
    %v3847 = vsel %vm3792, %v1799, -inf
    %3848 = vmax.xlane.f32.xlu0 %v3847
    %v3849 = vpop.xlane.xlu0 %3848
    %v3850 = vsel %vm3792, %v1817, -inf
    %3851 = vmax.xlane.f32.xlu0 %v3850
    %v3852 = vpop.xlane.xlu0 %3851
    %v3853 = vsel %vm3792, %v1808, -inf
    %3854 = vmax.xlane.f32.xlu0 %v3853
    %v3855 = vpop.xlane.xlu0 %3854
    %v3856 = vsel %vm3792, %v1818, -inf
    %3857 = vmax.xlane.f32.xlu0 %v3856
    %v3858 = vpop.xlane.xlu0 %3857
    %v3859 = vsel %vm3792, %v1815, -inf
    %3860 = vmax.xlane.f32.xlu0 %v3859
    %v3861 = vpop.xlane.xlu0 %3860
    %v3862 = vsel %vm3792, %v1819, -inf
    %3863 = vmax.xlane.f32.xlu0 %v3862
    %v3864 = vpop.xlane.xlu0 %3863
    %v3865 = vsel %vm3792, %v1860, -inf
    %3866 = vmax.xlane.f32.xlu0 %v3865
    %v3867 = vpop.xlane.xlu0 %3866
    %v3868 = vsel %vm3792, %v1884, -inf
    %3869 = vmax.xlane.f32.xlu0 %v3868
    %v3870 = vpop.xlane.xlu0 %3869
    %v3871 = vsel %vm3792, %v1867, -inf
    %3872 = vmax.xlane.f32.xlu0 %v3871
    %v3873 = vpop.xlane.xlu0 %3872
    %v3874 = vsel %vm3792, %v1885, -inf
    %3875 = vmax.xlane.f32.xlu0 %v3874
    %v3876 = vpop.xlane.xlu0 %3875
    %v3877 = vsel %vm3792, %v1876, -inf
    %3878 = vmax.xlane.f32.xlu0 %v3877
    %v3879 = vpop.xlane.xlu0 %3878
    %v3880 = vsel %vm3792, %v1886, -inf
    %3881 = vmax.xlane.f32.xlu0 %v3880
    %v3882 = vpop.xlane.xlu0 %3881
    %v3883 = vsel %vm3792, %v1883, -inf
    %3884 = vmax.xlane.f32.xlu0 %v3883
    %v3885 = vpop.xlane.xlu0 %3884
    %v3886 = vsel %vm3792, %v1887, -inf
    %3887 = vmax.xlane.f32.xlu0 %v3886
    %v3888 = vpop.xlane.xlu0 %3887
    %v3889 = vsel %vm3792, %v1928, -inf
    %3890 = vmax.xlane.f32.xlu0 %v3889
    %v3891 = vpop.xlane.xlu0 %3890
    %v3892 = vsel %vm3792, %v1952, -inf
    %3893 = vmax.xlane.f32.xlu0 %v3892
    %v3894 = vpop.xlane.xlu0 %3893
    %v3895 = vsel %vm3792, %v1935, -inf
    %3896 = vmax.xlane.f32.xlu0 %v3895
    %v3897 = vpop.xlane.xlu0 %3896
    %v3898 = vsel %vm3792, %v1953, -inf
    %3899 = vmax.xlane.f32.xlu0 %v3898
    %v3900 = vpop.xlane.xlu0 %3899
    %v3901 = vsel %vm3792, %v1944, -inf
    %3902 = vmax.xlane.f32.xlu0 %v3901
    %v3903 = vpop.xlane.xlu0 %3902
    %v3904 = vsel %vm3792, %v1954, -inf
    %3905 = vmax.xlane.f32.xlu0 %v3904
    %v3906 = vpop.xlane.xlu0 %3905
    %v3907 = vsel %vm3792, %v1951, -inf
    %3908 = vmax.xlane.f32.xlu0 %v3907
    %v3909 = vpop.xlane.xlu0 %3908
    %v3910 = vsel %vm3792, %v1955, -inf
    %3911 = vmax.xlane.f32.xlu0 %v3910
    %v3912 = vpop.xlane.xlu0 %3911
    %v3913 = vsel %vm3792, %v1996, -inf
    %3914 = vmax.xlane.f32.xlu0 %v3913
    %v3915 = vpop.xlane.xlu0 %3914
    %v3916 = vsel %vm3792, %v2020, -inf
    %3917 = vmax.xlane.f32.xlu0 %v3916
    %v3918 = vpop.xlane.xlu0 %3917
    %v3919 = vsel %vm3792, %v2003, -inf
    %3920 = vmax.xlane.f32.xlu0 %v3919
    %v3921 = vpop.xlane.xlu0 %3920
    %v3922 = vsel %vm3792, %v2021, -inf
    %3923 = vmax.xlane.f32.xlu0 %v3922
    %v3924 = vpop.xlane.xlu0 %3923
    %v3925 = vsel %vm3792, %v2012, -inf
    %3926 = vmax.xlane.f32.xlu0 %v3925
    %v3927 = vpop.xlane.xlu0 %3926
    %v3928 = vsel %vm3792, %v2022, -inf
    %3929 = vmax.xlane.f32.xlu0 %v3928
    %v3930 = vpop.xlane.xlu0 %3929
    %v3931 = vsel %vm3792, %v2019, -inf
    %3932 = vmax.xlane.f32.xlu0 %v3931
    %v3933 = vpop.xlane.xlu0 %3932
    %v3934 = vsel %vm3792, %v2023, -inf
    %3935 = vmax.xlane.f32.xlu0 %v3934
    %v3936 = vpop.xlane.xlu0 %3935
    %v3937 = vsel %vm3792, %v2064, -inf
    %3938 = vmax.xlane.f32.xlu0 %v3937
    %v3939 = vpop.xlane.xlu0 %3938
    %v3940 = vsel %vm3792, %v2088, -inf
    %3941 = vmax.xlane.f32.xlu0 %v3940
    %v3942 = vpop.xlane.xlu0 %3941
    %v3943 = vsel %vm3792, %v2071, -inf
    %3944 = vmax.xlane.f32.xlu0 %v3943
    %v3945 = vpop.xlane.xlu0 %3944
    %v3946 = vsel %vm3792, %v2089, -inf
    %3947 = vmax.xlane.f32.xlu0 %v3946
    %v3948 = vpop.xlane.xlu0 %3947
    %v3949 = vsel %vm3792, %v2080, -inf
    %3950 = vmax.xlane.f32.xlu0 %v3949
    %v3951 = vpop.xlane.xlu0 %3950
    %v3952 = vsel %vm3792, %v2090, -inf
    %3953 = vmax.xlane.f32.xlu0 %v3952
    %v3954 = vpop.xlane.xlu0 %3953
    %v3955 = vsel %vm3792, %v2087, -inf
    %3956 = vmax.xlane.f32.xlu0 %v3955
    %v3957 = vpop.xlane.xlu0 %3956
    %v3958 = vsel %vm3792, %v2091, -inf
    %3959 = vmax.xlane.f32.xlu0 %v3958
    %v3960 = vpop.xlane.xlu0 %3959
    %v3961 = vsel %vm3792, %v2132, -inf
    %3962 = vmax.xlane.f32.xlu0 %v3961
    %v3963 = vpop.xlane.xlu0 %3962
    %v3964 = vsel %vm3792, %v2156, -inf
    %3965 = vmax.xlane.f32.xlu0 %v3964
    %v3966 = vpop.xlane.xlu0 %3965
    %v3967 = vsel %vm3792, %v2139, -inf
    %3968 = vmax.xlane.f32.xlu0 %v3967
    %v3969 = vpop.xlane.xlu0 %3968
    %v3970 = vsel %vm3792, %v2157, -inf
    %3971 = vmax.xlane.f32.xlu0 %v3970
    %v3972 = vpop.xlane.xlu0 %3971
    %v3973 = vsel %vm3792, %v2148, -inf
    %3974 = vmax.xlane.f32.xlu0 %v3973
    %v3975 = vpop.xlane.xlu0 %3974
    %v3976 = vsel %vm3792, %v2158, -inf
    %3977 = vmax.xlane.f32.xlu0 %v3976
    %v3978 = vpop.xlane.xlu0 %3977
    %v3979 = vsel %vm3792, %v2155, -inf
    %3980 = vmax.xlane.f32.xlu0 %v3979
    %v3981 = vpop.xlane.xlu0 %3980
    %v3982 = vsel %vm3792, %v2159, -inf
    %3983 = vmax.xlane.f32.xlu0 %v3982
    %v3984 = vpop.xlane.xlu0 %3983
    %v3985 = vsel %vm3792, %v2200, -inf
    %3986 = vmax.xlane.f32.xlu0 %v3985
    %v3987 = vpop.xlane.xlu0 %3986
    %v3988 = vsel %vm3792, %v2224, -inf
    %3989 = vmax.xlane.f32.xlu0 %v3988
    %v3990 = vpop.xlane.xlu0 %3989
    %v3991 = vsel %vm3792, %v2207, -inf
    %3992 = vmax.xlane.f32.xlu0 %v3991
    %v3993 = vpop.xlane.xlu0 %3992
    %v3994 = vsel %vm3792, %v2225, -inf
    %3995 = vmax.xlane.f32.xlu0 %v3994
    %v3996 = vpop.xlane.xlu0 %3995
    %v3997 = vsel %vm3792, %v2216, -inf
    %3998 = vmax.xlane.f32.xlu0 %v3997
    %v3999 = vpop.xlane.xlu0 %3998
    %v4000 = vsel %vm3792, %v2226, -inf
    %4001 = vmax.xlane.f32.xlu0 %v4000
    %v4002 = vpop.xlane.xlu0 %4001
    %v4003 = vsel %vm3792, %v2223, -inf
    %4004 = vmax.xlane.f32.xlu0 %v4003
    %v4005 = vpop.xlane.xlu0 %4004
    %v4006 = vsel %vm3792, %v2227, -inf
    %4007 = vmax.xlane.f32.xlu0 %v4006
    %v4008 = vpop.xlane.xlu0 %4007
    %v4009 = vsel %vm3792, %v2268, -inf
    %4010 = vmax.xlane.f32.xlu0 %v4009
    %v4011 = vpop.xlane.xlu0 %4010
    %v4012 = vsel %vm3792, %v2292, -inf
    %4013 = vmax.xlane.f32.xlu0 %v4012
    %v4014 = vpop.xlane.xlu0 %4013
    %v4015 = vsel %vm3792, %v2275, -inf
    %4016 = vmax.xlane.f32.xlu0 %v4015
    %v4017 = vpop.xlane.xlu0 %4016
    %v4018 = vsel %vm3792, %v2293, -inf
    %4019 = vmax.xlane.f32.xlu0 %v4018
    %v4020 = vpop.xlane.xlu0 %4019
    %v4021 = vsel %vm3792, %v2284, -inf
    %4022 = vmax.xlane.f32.xlu0 %v4021
    %v4023 = vpop.xlane.xlu0 %4022
    %v4024 = vsel %vm3792, %v2294, -inf
    %4025 = vmax.xlane.f32.xlu0 %v4024
    %v4026 = vpop.xlane.xlu0 %4025
    %v4027 = vsel %vm3792, %v2291, -inf
    %4028 = vmax.xlane.f32.xlu0 %v4027
    %v4029 = vpop.xlane.xlu0 %4028
    %v4030 = vsel %vm3792, %v2295, -inf
    %4031 = vmax.xlane.f32.xlu0 %v4030
    %v4032 = vpop.xlane.xlu0 %4031
    %v4033 = vsel %vm3792, %v2336, -inf
    %4034 = vmax.xlane.f32.xlu0 %v4033
    %v4035 = vpop.xlane.xlu0 %4034
    %v4036 = vsel %vm3792, %v2360, -inf
    %4037 = vmax.xlane.f32.xlu0 %v4036
    %v4038 = vpop.xlane.xlu0 %4037
    %v4039 = vsel %vm3792, %v2343, -inf
    %4040 = vmax.xlane.f32.xlu0 %v4039
    %v4041 = vpop.xlane.xlu0 %4040
    %v4042 = vsel %vm3792, %v2361, -inf
    %4043 = vmax.xlane.f32.xlu0 %v4042
    %v4044 = vpop.xlane.xlu0 %4043
    %v4045 = vsel %vm3792, %v2352, -inf
    %4046 = vmax.xlane.f32.xlu0 %v4045
    %v4047 = vpop.xlane.xlu0 %4046
    %v4048 = vsel %vm3792, %v2362, -inf
    %4049 = vmax.xlane.f32.xlu0 %v4048
    %v4050 = vpop.xlane.xlu0 %4049
    %v4051 = vsel %vm3792, %v2359, -inf
    %4052 = vmax.xlane.f32.xlu0 %v4051
    %v4053 = vpop.xlane.xlu0 %4052
    %v4054 = vsel %vm3792, %v2363, -inf
    %4055 = vmax.xlane.f32.xlu0 %v4054
    %v4056 = vpop.xlane.xlu0 %4055
    %v4057 = vsel %vm3792, %v2404, -inf
    %4058 = vmax.xlane.f32.xlu0 %v4057
    %v4059 = vpop.xlane.xlu0 %4058
    %v4060 = vsel %vm3792, %v2428, -inf
    %4061 = vmax.xlane.f32.xlu0 %v4060
    %v4062 = vpop.xlane.xlu0 %4061
    %v4063 = vsel %vm3792, %v2411, -inf
    %4064 = vmax.xlane.f32.xlu0 %v4063
    %v4065 = vpop.xlane.xlu0 %4064
    %v4066 = vsel %vm3792, %v2429, -inf
    %4067 = vmax.xlane.f32.xlu0 %v4066
    %v4068 = vpop.xlane.xlu0 %4067
    %v4069 = vsel %vm3792, %v2420, -inf
    %4070 = vmax.xlane.f32.xlu0 %v4069
    %v4071 = vpop.xlane.xlu0 %4070
    %v4072 = vsel %vm3792, %v2430, -inf
    %4073 = vmax.xlane.f32.xlu0 %v4072
    %v4074 = vpop.xlane.xlu0 %4073
    %v4075 = vsel %vm3792, %v2427, -inf
    %4076 = vmax.xlane.f32.xlu0 %v4075
    %v4077 = vpop.xlane.xlu0 %4076
    %v4078 = vsel %vm3792, %v2431, -inf
    %4079 = vmax.xlane.f32.xlu0 %v4078
    %v4080 = vpop.xlane.xlu0 %4079
    %v4081 = vsel %vm3792, %v2472, -inf
    %4082 = vmax.xlane.f32.xlu0 %v4081
    %v4083 = vpop.xlane.xlu0 %4082
    %v4084 = vsel %vm3792, %v2496, -inf
    %4085 = vmax.xlane.f32.xlu0 %v4084
    %v4086 = vpop.xlane.xlu0 %4085
    %v4087 = vsel %vm3792, %v2479, -inf
    %4088 = vmax.xlane.f32.xlu0 %v4087
    %v4089 = vpop.xlane.xlu0 %4088
    %v4090 = vsel %vm3792, %v2497, -inf
    %4091 = vmax.xlane.f32.xlu0 %v4090
    %v4092 = vpop.xlane.xlu0 %4091
    %v4093 = vsel %vm3792, %v2488, -inf
    %4094 = vmax.xlane.f32.xlu0 %v4093
    %v4095 = vpop.xlane.xlu0 %4094
    %v4096 = vsel %vm3792, %v2498, -inf
    %4097 = vmax.xlane.f32.xlu0 %v4096
    %v4098 = vpop.xlane.xlu0 %4097
    %v4099 = vsel %vm3792, %v2495, -inf
    %4100 = vmax.xlane.f32.xlu0 %v4099
    %v4101 = vpop.xlane.xlu0 %4100
    %v4102 = vsel %vm3792, %v2499, -inf
    %4103 = vmax.xlane.f32.xlu0 %v4102
    %v4104 = vpop.xlane.xlu0 %4103
    %v4105 = vsel %vm3792, %v2540, -inf
    %4106 = vmax.xlane.f32.xlu0 %v4105
    %v4107 = vpop.xlane.xlu0 %4106
    %v4108 = vsel %vm3792, %v2564, -inf
    %4109 = vmax.xlane.f32.xlu0 %v4108
    %v4110 = vpop.xlane.xlu0 %4109
    %v4111 = vsel %vm3792, %v2547, -inf
    %4112 = vmax.xlane.f32.xlu0 %v4111
    %v4113 = vpop.xlane.xlu0 %4112
    %v4114 = vsel %vm3792, %v2565, -inf
    %4115 = vmax.xlane.f32.xlu0 %v4114
    %v4116 = vpop.xlane.xlu0 %4115
    %v4117 = vsel %vm3792, %v2556, -inf
    %4118 = vmax.xlane.f32.xlu0 %v4117
    %v4119 = vpop.xlane.xlu0 %4118
    %v4120 = vsel %vm3792, %v2566, -inf
    %4121 = vmax.xlane.f32.xlu0 %v4120
    %v4122 = vpop.xlane.xlu0 %4121
    %v4123 = vsel %vm3792, %v2563, -inf
    %4124 = vmax.xlane.f32.xlu0 %v4123
    %v4125 = vpop.xlane.xlu0 %4124
    %v4126 = vsel %vm3792, %v2567, -inf
    %4127 = vmax.xlane.f32.xlu0 %v4126
    %v4128 = vpop.xlane.xlu0 %4127
    %v4129 = vsel %vm3792, %v2608, -inf
    %4130 = vmax.xlane.f32.xlu0 %v4129
    %v4131 = vpop.xlane.xlu0 %4130
    %v4132 = vsel %vm3792, %v2632, -inf
    %4133 = vmax.xlane.f32.xlu0 %v4132
    %v4134 = vpop.xlane.xlu0 %4133
    %v4135 = vsel %vm3792, %v2615, -inf
    %4136 = vmax.xlane.f32.xlu0 %v4135
    %v4137 = vpop.xlane.xlu0 %4136
    %v4138 = vsel %vm3792, %v2633, -inf
    %4139 = vmax.xlane.f32.xlu0 %v4138
    %v4140 = vpop.xlane.xlu0 %4139
    %v4141 = vsel %vm3792, %v2624, -inf
    %4142 = vmax.xlane.f32.xlu0 %v4141
    %v4143 = vpop.xlane.xlu0 %4142
    %v4144 = vsel %vm3792, %v2634, -inf
    %4145 = vmax.xlane.f32.xlu0 %v4144
    %v4146 = vpop.xlane.xlu0 %4145
    %v4147 = vsel %vm3792, %v2631, -inf
    %4148 = vmax.xlane.f32.xlu0 %v4147
    %v4149 = vpop.xlane.xlu0 %4148
    %v4150 = vsel %vm3792, %v2635, -inf
    %4151 = vmax.xlane.f32.xlu0 %v4150
    %v4152 = vpop.xlane.xlu0 %4151
    %v4153 = vsel %vm3792, %v2676, -inf
    %4154 = vmax.xlane.f32.xlu0 %v4153
    %v4155 = vpop.xlane.xlu0 %4154
    %v4156 = vsel %vm3792, %v2700, -inf
    %4157 = vmax.xlane.f32.xlu0 %v4156
    %v4158 = vpop.xlane.xlu0 %4157
    %v4159 = vsel %vm3792, %v2683, -inf
    %4160 = vmax.xlane.f32.xlu0 %v4159
    %v4161 = vpop.xlane.xlu0 %4160
    %v4162 = vsel %vm3792, %v2701, -inf
    %4163 = vmax.xlane.f32.xlu0 %v4162
    %v4164 = vpop.xlane.xlu0 %4163
    %v4165 = vsel %vm3792, %v2692, -inf
    %4166 = vmax.xlane.f32.xlu0 %v4165
    %v4167 = vpop.xlane.xlu0 %4166
    %v4168 = vsel %vm3792, %v2702, -inf
    %4169 = vmax.xlane.f32.xlu0 %v4168
    %v4170 = vpop.xlane.xlu0 %4169
    %v4171 = vsel %vm3792, %v2699, -inf
    %4172 = vmax.xlane.f32.xlu0 %v4171
    %v4173 = vpop.xlane.xlu0 %4172
    %v4174 = vsel %vm3792, %v2703, -inf
    %4175 = vmax.xlane.f32.xlu0 %v4174
    %v4176 = vpop.xlane.xlu0 %4175
    %v4177 = vsel %vm3792, %v2744, -inf
    %4178 = vmax.xlane.f32.xlu0 %v4177
    %v4179 = vpop.xlane.xlu0 %4178
    %v4180 = vsel %vm3792, %v2768, -inf
    %4181 = vmax.xlane.f32.xlu0 %v4180
    %v4182 = vpop.xlane.xlu0 %4181
    %v4183 = vsel %vm3792, %v2751, -inf
    %4184 = vmax.xlane.f32.xlu0 %v4183
    %v4185 = vpop.xlane.xlu0 %4184
    %v4186 = vsel %vm3792, %v2769, -inf
    %4187 = vmax.xlane.f32.xlu0 %v4186
    %v4188 = vpop.xlane.xlu0 %4187
    %v4189 = vsel %vm3792, %v2760, -inf
    %4190 = vmax.xlane.f32.xlu0 %v4189
    %v4191 = vpop.xlane.xlu0 %4190
    %v4192 = vsel %vm3792, %v2770, -inf
    %4193 = vmax.xlane.f32.xlu0 %v4192
    %v4194 = vpop.xlane.xlu0 %4193
    %v4195 = vsel %vm3792, %v2767, -inf
    %4196 = vmax.xlane.f32.xlu0 %v4195
    %v4197 = vpop.xlane.xlu0 %4196
    %v4198 = vsel %vm3792, %v2771, -inf
    %4199 = vmax.xlane.f32.xlu0 %v4198
    %v4200 = vpop.xlane.xlu0 %4199
    %v4201 = vsel %vm3792, %v2812, -inf
    %4202 = vmax.xlane.f32.xlu0 %v4201
    %v4203 = vpop.xlane.xlu0 %4202
    %v4204 = vsel %vm3792, %v2836, -inf
    %4205 = vmax.xlane.f32.xlu0 %v4204
    %v4206 = vpop.xlane.xlu0 %4205
    %v4207 = vsel %vm3792, %v2819, -inf
    %4208 = vmax.xlane.f32.xlu0 %v4207
    %v4209 = vpop.xlane.xlu0 %4208
    %v4210 = vsel %vm3792, %v2837, -inf
    %4211 = vmax.xlane.f32.xlu0 %v4210
    %v4212 = vpop.xlane.xlu0 %4211
    %v4213 = vsel %vm3792, %v2828, -inf
    %4214 = vmax.xlane.f32.xlu0 %v4213
    %v4215 = vpop.xlane.xlu0 %4214
    %v4216 = vsel %vm3792, %v2838, -inf
    %4217 = vmax.xlane.f32.xlu0 %v4216
    %v4218 = vpop.xlane.xlu0 %4217
    %v4219 = vsel %vm3792, %v2835, -inf
    %4220 = vmax.xlane.f32.xlu0 %v4219
    %v4221 = vpop.xlane.xlu0 %4220
    %v4222 = vsel %vm3792, %v2839, -inf
    %4223 = vmax.xlane.f32.xlu0 %v4222
    %v4224 = vpop.xlane.xlu0 %4223
    %v4225 = vsel %vm3792, %v2880, -inf
    %4226 = vmax.xlane.f32.xlu0 %v4225
    %v4227 = vpop.xlane.xlu0 %4226
    %v4228 = vsel %vm3792, %v2904, -inf
    %4229 = vmax.xlane.f32.xlu0 %v4228
    %v4230 = vpop.xlane.xlu0 %4229
    %v4231 = vsel %vm3792, %v2887, -inf
    %4232 = vmax.xlane.f32.xlu0 %v4231
    %v4233 = vpop.xlane.xlu0 %4232
    %v4234 = vsel %vm3792, %v2905, -inf
    %4235 = vmax.xlane.f32.xlu0 %v4234
    %v4236 = vpop.xlane.xlu0 %4235
    %v4237 = vsel %vm3792, %v2896, -inf
    %4238 = vmax.xlane.f32.xlu0 %v4237
    %v4239 = vpop.xlane.xlu0 %4238
    %v4240 = vsel %vm3792, %v2906, -inf
    %4241 = vmax.xlane.f32.xlu0 %v4240
    %v4242 = vpop.xlane.xlu0 %4241
    %v4243 = vsel %vm3792, %v2903, -inf
    %4244 = vmax.xlane.f32.xlu0 %v4243
    %v4245 = vpop.xlane.xlu0 %4244
    %v4246 = vsel %vm3792, %v2907, -inf
    %4247 = vmax.xlane.f32.xlu0 %v4246
    %v4248 = vpop.xlane.xlu0 %4247
    %v4249 = vsel %vm3792, %v2948, -inf
    %4250 = vmax.xlane.f32.xlu0 %v4249
    %v4251 = vpop.xlane.xlu0 %4250
    %v4252 = vsel %vm3792, %v2972, -inf
    %4253 = vmax.xlane.f32.xlu0 %v4252
    %v4254 = vpop.xlane.xlu0 %4253
    %v4255 = vsel %vm3792, %v2955, -inf
    %4256 = vmax.xlane.f32.xlu0 %v4255
    %v4257 = vpop.xlane.xlu0 %4256
    %v4258 = vsel %vm3792, %v2973, -inf
    %4259 = vmax.xlane.f32.xlu0 %v4258
    %v4260 = vpop.xlane.xlu0 %4259
    %v4261 = vsel %vm3792, %v2964, -inf
    %4262 = vmax.xlane.f32.xlu0 %v4261
    %v4263 = vpop.xlane.xlu0 %4262
    %v4264 = vsel %vm3792, %v2974, -inf
    %4265 = vmax.xlane.f32.xlu0 %v4264
    %v4266 = vpop.xlane.xlu0 %4265
    %v4267 = vsel %vm3792, %v2971, -inf
    %4268 = vmax.xlane.f32.xlu0 %v4267
    %v4269 = vpop.xlane.xlu0 %4268
    %v4270 = vsel %vm3792, %v2975, -inf
    %4271 = vmax.xlane.f32.xlu0 %v4270
    %v4272 = vpop.xlane.xlu0 %4271
    %v4273 = vsel %vm3792, %v3016, -inf
    %4274 = vmax.xlane.f32.xlu0 %v4273
    %v4275 = vpop.xlane.xlu0 %4274
    %v4276 = vsel %vm3792, %v3040, -inf
    %4277 = vmax.xlane.f32.xlu0 %v4276
    %v4278 = vpop.xlane.xlu0 %4277
    %v4279 = vsel %vm3792, %v3023, -inf
    %4280 = vmax.xlane.f32.xlu0 %v4279
    %v4281 = vpop.xlane.xlu0 %4280
    %v4282 = vsel %vm3792, %v3041, -inf
    %4283 = vmax.xlane.f32.xlu0 %v4282
    %v4284 = vpop.xlane.xlu0 %4283
    %v4285 = vsel %vm3792, %v3032, -inf
    %4286 = vmax.xlane.f32.xlu0 %v4285
    %v4287 = vpop.xlane.xlu0 %4286
    %v4288 = vsel %vm3792, %v3042, -inf
    %4289 = vmax.xlane.f32.xlu0 %v4288
    %v4290 = vpop.xlane.xlu0 %4289
    %v4291 = vsel %vm3792, %v3039, -inf
    %4292 = vmax.xlane.f32.xlu0 %v4291
    %v4293 = vpop.xlane.xlu0 %4292
    %v4294 = vsel %vm3792, %v3043, -inf
    %4295 = vmax.xlane.f32.xlu0 %v4294
    %v4296 = vpop.xlane.xlu0 %4295
    %v4297 = vsel %vm3792, %v3084, -inf
    %4298 = vmax.xlane.f32.xlu0 %v4297
    %v4299 = vpop.xlane.xlu0 %4298
    %v4300 = vsel %vm3792, %v3108, -inf
    %4301 = vmax.xlane.f32.xlu0 %v4300
    %v4302 = vpop.xlane.xlu0 %4301
    %v4303 = vsel %vm3792, %v3091, -inf
    %4304 = vmax.xlane.f32.xlu0 %v4303
    %v4305 = vpop.xlane.xlu0 %4304
    %v4306 = vsel %vm3792, %v3109, -inf
    %4307 = vmax.xlane.f32.xlu0 %v4306
    %v4308 = vpop.xlane.xlu0 %4307
    %v4309 = vsel %vm3792, %v3100, -inf
    %4310 = vmax.xlane.f32.xlu0 %v4309
    %v4311 = vpop.xlane.xlu0 %4310
    %v4312 = vsel %vm3792, %v3110, -inf
    %4313 = vmax.xlane.f32.xlu0 %v4312
    %v4314 = vpop.xlane.xlu0 %4313
    %v4315 = vsel %vm3792, %v3107, -inf
    %4316 = vmax.xlane.f32.xlu0 %v4315
    %v4317 = vpop.xlane.xlu0 %4316
    %v4318 = vsel %vm3792, %v3111, -inf
    %4319 = vmax.xlane.f32.xlu0 %v4318
    %v4320 = vpop.xlane.xlu0 %4319
    %v4321 = vsel %vm3792, %v3152, -inf
    %4322 = vmax.xlane.f32.xlu0 %v4321
    %v4323 = vpop.xlane.xlu0 %4322
    %v4324 = vsel %vm3792, %v3176, -inf
    %4325 = vmax.xlane.f32.xlu0 %v4324
    %v4326 = vpop.xlane.xlu0 %4325
    %v4327 = vsel %vm3792, %v3159, -inf
    %4328 = vmax.xlane.f32.xlu0 %v4327
    %v4329 = vpop.xlane.xlu0 %4328
    %v4330 = vsel %vm3792, %v3177, -inf
    %4331 = vmax.xlane.f32.xlu0 %v4330
    %v4332 = vpop.xlane.xlu0 %4331
    %v4333 = vsel %vm3792, %v3168, -inf
    %4334 = vmax.xlane.f32.xlu0 %v4333
    %v4335 = vpop.xlane.xlu0 %4334
    %v4336 = vsel %vm3792, %v3178, -inf
    %4337 = vmax.xlane.f32.xlu0 %v4336
    %v4338 = vpop.xlane.xlu0 %4337
    %v4339 = vsel %vm3792, %v3175, -inf
    %4340 = vmax.xlane.f32.xlu0 %v4339
    %v4341 = vpop.xlane.xlu0 %4340
    %v4342 = vsel %vm3792, %v3179, -inf
    %4343 = vmax.xlane.f32.xlu0 %v4342
    %v4344 = vpop.xlane.xlu0 %4343
    %v4345 = vsel %vm3792, %v3220, -inf
    %4346 = vmax.xlane.f32.xlu0 %v4345
    %v4347 = vpop.xlane.xlu0 %4346
    %v4348 = vsel %vm3792, %v3244, -inf
    %4349 = vmax.xlane.f32.xlu0 %v4348
    %v4350 = vpop.xlane.xlu0 %4349
    %v4351 = vsel %vm3792, %v3227, -inf
    %4352 = vmax.xlane.f32.xlu0 %v4351
    %v4353 = vpop.xlane.xlu0 %4352
    %v4354 = vsel %vm3792, %v3245, -inf
    %4355 = vmax.xlane.f32.xlu0 %v4354
    %v4356 = vpop.xlane.xlu0 %4355
    %v4357 = vsel %vm3792, %v3236, -inf
    %4358 = vmax.xlane.f32.xlu0 %v4357
    %v4359 = vpop.xlane.xlu0 %4358
    %v4360 = vsel %vm3792, %v3246, -inf
    %4361 = vmax.xlane.f32.xlu0 %v4360
    %v4362 = vpop.xlane.xlu0 %4361
    %v4363 = vsel %vm3792, %v3243, -inf
    %4364 = vmax.xlane.f32.xlu0 %v4363
    %v4365 = vpop.xlane.xlu0 %4364
    %v4366 = vsel %vm3792, %v3247, -inf
    %4367 = vmax.xlane.f32.xlu0 %v4366
    %v4368 = vpop.xlane.xlu0 %4367
    %v4369 = vsel %vm3792, %v3288, -inf
    %4370 = vmax.xlane.f32.xlu0 %v4369
    %v4371 = vpop.xlane.xlu0 %4370
    %v4372 = vsel %vm3792, %v3312, -inf
    %4373 = vmax.xlane.f32.xlu0 %v4372
    %v4374 = vpop.xlane.xlu0 %4373
    %v4375 = vsel %vm3792, %v3295, -inf
    %4376 = vmax.xlane.f32.xlu0 %v4375
    %v4377 = vpop.xlane.xlu0 %4376
    %v4378 = vsel %vm3792, %v3313, -inf
    %4379 = vmax.xlane.f32.xlu0 %v4378
    %v4380 = vpop.xlane.xlu0 %4379
    %v4381 = vsel %vm3792, %v3304, -inf
    %4382 = vmax.xlane.f32.xlu0 %v4381
    %v4383 = vpop.xlane.xlu0 %4382
    %v4384 = vsel %vm3792, %v3314, -inf
    %4385 = vmax.xlane.f32.xlu0 %v4384
    %v4386 = vpop.xlane.xlu0 %4385
    %v4387 = vsel %vm3792, %v3311, -inf
    %4388 = vmax.xlane.f32.xlu0 %v4387
    %v4389 = vpop.xlane.xlu0 %4388
    %v4390 = vsel %vm3792, %v3315, -inf
    %4391 = vmax.xlane.f32.xlu0 %v4390
    %v4392 = vpop.xlane.xlu0 %4391
    %v4393 = vsel %vm3792, %v3356, -inf
    %4394 = vmax.xlane.f32.xlu0 %v4393
    %v4395 = vpop.xlane.xlu0 %4394
    %v4396 = vsel %vm3792, %v3380, -inf
    %4397 = vmax.xlane.f32.xlu0 %v4396
    %v4398 = vpop.xlane.xlu0 %4397
    %v4399 = vsel %vm3792, %v3363, -inf
    %4400 = vmax.xlane.f32.xlu0 %v4399
    %v4401 = vpop.xlane.xlu0 %4400
    %v4402 = vsel %vm3792, %v3381, -inf
    %4403 = vmax.xlane.f32.xlu0 %v4402
    %v4404 = vpop.xlane.xlu0 %4403
    %v4405 = vsel %vm3792, %v3372, -inf
    %4406 = vmax.xlane.f32.xlu0 %v4405
    %v4407 = vpop.xlane.xlu0 %4406
    %v4408 = vsel %vm3792, %v3382, -inf
    %4409 = vmax.xlane.f32.xlu0 %v4408
    %v4410 = vpop.xlane.xlu0 %4409
    %v4411 = vsel %vm3792, %v3379, -inf
    %4412 = vmax.xlane.f32.xlu0 %v4411
    %v4413 = vpop.xlane.xlu0 %4412
    %v4414 = vsel %vm3792, %v3383, -inf
    %4415 = vmax.xlane.f32.xlu0 %v4414
    %v4416 = vpop.xlane.xlu0 %4415
    %v4417 = vsel %vm3792, %v3424, -inf
    %4418 = vmax.xlane.f32.xlu0 %v4417
    %v4419 = vpop.xlane.xlu0 %4418
    %v4420 = vsel %vm3792, %v3448, -inf
    %4421 = vmax.xlane.f32.xlu0 %v4420
    %v4422 = vpop.xlane.xlu0 %4421
    %v4423 = vsel %vm3792, %v3431, -inf
    %4424 = vmax.xlane.f32.xlu0 %v4423
    %v4425 = vpop.xlane.xlu0 %4424
    %v4426 = vsel %vm3792, %v3449, -inf
    %4427 = vmax.xlane.f32.xlu0 %v4426
    %v4428 = vpop.xlane.xlu0 %4427
    %v4429 = vsel %vm3792, %v3440, -inf
    %4430 = vmax.xlane.f32.xlu0 %v4429
    %v4431 = vpop.xlane.xlu0 %4430
    %v4432 = vsel %vm3792, %v3450, -inf
    %4433 = vmax.xlane.f32.xlu0 %v4432
    %v4434 = vpop.xlane.xlu0 %4433
    %v4435 = vsel %vm3792, %v3447, -inf
    %4436 = vmax.xlane.f32.xlu0 %v4435
    %v4437 = vpop.xlane.xlu0 %4436
    %v4438 = vsel %vm3792, %v3451, -inf
    %4439 = vmax.xlane.f32.xlu0 %v4438
    %v4440 = vpop.xlane.xlu0 %4439
    %v4441 = vsel %vm3792, %v3492, -inf
    %4442 = vmax.xlane.f32.xlu0 %v4441
    %v4443 = vpop.xlane.xlu0 %4442
    %v4444 = vsel %vm3792, %v3516, -inf
    %4445 = vmax.xlane.f32.xlu0 %v4444
    %v4446 = vpop.xlane.xlu0 %4445
    %v4447 = vsel %vm3792, %v3499, -inf
    %4448 = vmax.xlane.f32.xlu0 %v4447
    %v4449 = vpop.xlane.xlu0 %4448
    %v4450 = vsel %vm3792, %v3517, -inf
    %4451 = vmax.xlane.f32.xlu0 %v4450
    %v4452 = vpop.xlane.xlu0 %4451
    %v4453 = vsel %vm3792, %v3508, -inf
    %4454 = vmax.xlane.f32.xlu0 %v4453
    %v4455 = vpop.xlane.xlu0 %4454
    %v4456 = vsel %vm3792, %v3518, -inf
    %4457 = vmax.xlane.f32.xlu0 %v4456
    %v4458 = vpop.xlane.xlu0 %4457
    %v4459 = vsel %vm3792, %v3515, -inf
    %4460 = vmax.xlane.f32.xlu0 %v4459
    %v4461 = vpop.xlane.xlu0 %4460
    %v4462 = vsel %vm3792, %v3519, -inf
    %4463 = vmax.xlane.f32.xlu0 %v4462
    %v4464 = vpop.xlane.xlu0 %4463
    %v4465 = vsel %vm3792, %v3560, -inf
    %4466 = vmax.xlane.f32.xlu0 %v4465
    %v4467 = vpop.xlane.xlu0 %4466
    %v4468 = vsel %vm3792, %v3584, -inf
    %4469 = vmax.xlane.f32.xlu0 %v4468
    %v4470 = vpop.xlane.xlu0 %4469
    %v4471 = vsel %vm3792, %v3567, -inf
    %4472 = vmax.xlane.f32.xlu0 %v4471
    %v4473 = vpop.xlane.xlu0 %4472
    %v4474 = vsel %vm3792, %v3585, -inf
    %4475 = vmax.xlane.f32.xlu0 %v4474
    %v4476 = vpop.xlane.xlu0 %4475
    %v4477 = vsel %vm3792, %v3576, -inf
    %4478 = vmax.xlane.f32.xlu0 %v4477
    %v4479 = vpop.xlane.xlu0 %4478
    %v4480 = vsel %vm3792, %v3586, -inf
    %4481 = vmax.xlane.f32.xlu0 %v4480
    %v4482 = vpop.xlane.xlu0 %4481
    %v4483 = vsel %vm3792, %v3583, -inf
    %4484 = vmax.xlane.f32.xlu0 %v4483
    %v4485 = vpop.xlane.xlu0 %4484
    %v4486 = vsel %vm3792, %v3587, -inf
    %4487 = vmax.xlane.f32.xlu0 %v4486
    %v4488 = vpop.xlane.xlu0 %4487
    %v4489 = vsel %vm3792, %v3628, -inf
    %4490 = vmax.xlane.f32.xlu0 %v4489
    %v4491 = vpop.xlane.xlu0 %4490
    %v4492 = vsel %vm3792, %v3652, -inf
    %4493 = vmax.xlane.f32.xlu0 %v4492
    %v4494 = vpop.xlane.xlu0 %4493
    %v4495 = vsel %vm3792, %v3635, -inf
    %4496 = vmax.xlane.f32.xlu0 %v4495
    %v4497 = vpop.xlane.xlu0 %4496
    %v4498 = vsel %vm3792, %v3653, -inf
    %4499 = vmax.xlane.f32.xlu0 %v4498
    %v4500 = vpop.xlane.xlu0 %4499
    %v4501 = vsel %vm3792, %v3644, -inf
    %4502 = vmax.xlane.f32.xlu0 %v4501
    %v4503 = vpop.xlane.xlu0 %4502
    %v4504 = vsel %vm3792, %v3654, -inf
    %4505 = vmax.xlane.f32.xlu0 %v4504
    %v4506 = vpop.xlane.xlu0 %4505
    %v4507 = vsel %vm3792, %v3651, -inf
    %4508 = vmax.xlane.f32.xlu0 %v4507
    %v4509 = vpop.xlane.xlu0 %4508
    %v4510 = vsel %vm3792, %v3655, -inf
    %4511 = vmax.xlane.f32.xlu0 %v4510
    %v4512 = vpop.xlane.xlu0 %4511
    %v4513 = vsel %vm3792, %v3696, -inf
    %4514 = vmax.xlane.f32.xlu0 %v4513
    %v4515 = vpop.xlane.xlu0 %4514
    %v4516 = vsel %vm3792, %v3720, -inf
    %4517 = vmax.xlane.f32.xlu0 %v4516
    %v4518 = vpop.xlane.xlu0 %4517
    %v4519 = vsel %vm3792, %v3703, -inf
    %4520 = vmax.xlane.f32.xlu0 %v4519
    %v4521 = vpop.xlane.xlu0 %4520
    %v4522 = vsel %vm3792, %v3721, -inf
    %4523 = vmax.xlane.f32.xlu0 %v4522
    %v4524 = vpop.xlane.xlu0 %4523
    %v4525 = vsel %vm3792, %v3712, -inf
    %4526 = vmax.xlane.f32.xlu0 %v4525
    %v4527 = vpop.xlane.xlu0 %4526
    %v4528 = vsel %vm3792, %v3722, -inf
    %4529 = vmax.xlane.f32.xlu0 %v4528
    %v4530 = vpop.xlane.xlu0 %4529
    %v4531 = vsel %vm3792, %v3719, -inf
    %4532 = vmax.xlane.f32.xlu0 %v4531
    %v4533 = vpop.xlane.xlu0 %4532
    %v4534 = vsel %vm3792, %v3723, -inf
    %4535 = vmax.xlane.f32.xlu0 %v4534
    %v4536 = vpop.xlane.xlu0 %4535
    %v4537 = vsel %vm3792, %v3764, -inf
    %4538 = vmax.xlane.f32.xlu0 %v4537
    %v4539 = vpop.xlane.xlu0 %4538
    %v4540 = vsel %vm3792, %v3788, -inf
    %4541 = vmax.xlane.f32.xlu0 %v4540
    %v4542 = vpop.xlane.xlu0 %4541
    %v4543 = vsel %vm3792, %v3771, -inf
    %4544 = vmax.xlane.f32.xlu0 %v4543
    %v4545 = vpop.xlane.xlu0 %4544
    %v4546 = vsel %vm3792, %v3789, -inf
    %4547 = vmax.xlane.f32.xlu0 %v4546
    %v4548 = vpop.xlane.xlu0 %4547
    %v4549 = vsel %vm3792, %v3780, -inf
    %4550 = vmax.xlane.f32.xlu0 %v4549
    %v4551 = vpop.xlane.xlu0 %4550
    %v4552 = vsel %vm3792, %v3790, -inf
    %4553 = vmax.xlane.f32.xlu0 %v4552
    %v4554 = vpop.xlane.xlu0 %4553
    %v4555 = vsel %vm3792, %v3787, -inf
    %4556 = vmax.xlane.f32.xlu0 %v4555
    %v4557 = vpop.xlane.xlu0 %4556
    %v4558 = vsel %vm3792, %v3791, -inf
    %4559 = vmax.xlane.f32.xlu0 %v4558
    %v4560 = vpop.xlane.xlu0 %4559
    %v4561 = vsub.f32 %v1656, %v3795
    %v4562 = vsub.f32 %v1680, %v3798
    %v4563 = vsub.f32 %v1663, %v3801
    %v4564 = vsub.f32 %v1681, %v3804
    %v4565 = vsub.f32 %v1672, %v3807
    %v4566 = vsub.f32 %v1682, %v3810
    %v4567 = vsub.f32 %v1679, %v3813
    %v4568 = vsub.f32 %v1683, %v3816
    %v4569 = vsub.f32 %v1724, %v3819
    %v4570 = vsub.f32 %v1748, %v3822
    %v4571 = vsub.f32 %v1731, %v3825
    %v4572 = vsub.f32 %v1749, %v3828
    %v4573 = vsub.f32 %v1740, %v3831
    %v4574 = vsub.f32 %v1750, %v3834
    %v4575 = vsub.f32 %v1747, %v3837
    %v4576 = vsub.f32 %v1751, %v3840
    %v4577 = vsub.f32 %v1792, %v3843
    %v4578 = vsub.f32 %v1816, %v3846
    %v4579 = vsub.f32 %v1799, %v3849
    %v4580 = vsub.f32 %v1817, %v3852
    %v4581 = vsub.f32 %v1808, %v3855
    %v4582 = vsub.f32 %v1818, %v3858
    %v4583 = vsub.f32 %v1815, %v3861
    %v4584 = vsub.f32 %v1819, %v3864
    %v4585 = vsub.f32 %v1860, %v3867
    %v4586 = vsub.f32 %v1884, %v3870
    %v4587 = vsub.f32 %v1867, %v3873
    %v4588 = vsub.f32 %v1885, %v3876
    %v4589 = vsub.f32 %v1876, %v3879
    %v4590 = vsub.f32 %v1886, %v3882
    %v4591 = vsub.f32 %v1883, %v3885
    %v4592 = vsub.f32 %v1887, %v3888
    %v4593 = vsub.f32 %v1928, %v3891
    %v4594 = vsub.f32 %v1952, %v3894
    %v4595 = vsub.f32 %v1935, %v3897
    %v4596 = vsub.f32 %v1953, %v3900
    %v4597 = vsub.f32 %v1944, %v3903
    %v4598 = vsub.f32 %v1954, %v3906
    %v4599 = vsub.f32 %v1951, %v3909
    %v4600 = vsub.f32 %v1955, %v3912
    %v4601 = vsub.f32 %v1996, %v3915
    %v4602 = vsub.f32 %v2020, %v3918
    %v4603 = vsub.f32 %v2003, %v3921
    %v4604 = vsub.f32 %v2021, %v3924
    %v4605 = vsub.f32 %v2012, %v3927
    %v4606 = vsub.f32 %v2022, %v3930
    %v4607 = vsub.f32 %v2019, %v3933
    %v4608 = vsub.f32 %v2023, %v3936
    %v4609 = vsub.f32 %v2064, %v3939
    %v4610 = vsub.f32 %v2088, %v3942
    %v4611 = vsub.f32 %v2071, %v3945
    %v4612 = vsub.f32 %v2089, %v3948
    %v4613 = vsub.f32 %v2080, %v3951
    %v4614 = vsub.f32 %v2090, %v3954
    %v4615 = vsub.f32 %v2087, %v3957
    %v4616 = vsub.f32 %v2091, %v3960
    %v4617 = vsub.f32 %v2132, %v3963
    %v4618 = vsub.f32 %v2156, %v3966
    %v4619 = vsub.f32 %v2139, %v3969
    %v4620 = vsub.f32 %v2157, %v3972
    %v4621 = vsub.f32 %v2148, %v3975
    %v4622 = vsub.f32 %v2158, %v3978
    %v4623 = vsub.f32 %v2155, %v3981
    %v4624 = vsub.f32 %v2159, %v3984
    %v4625 = vsub.f32 %v2200, %v3987
    %v4626 = vsub.f32 %v2224, %v3990
    %v4627 = vsub.f32 %v2207, %v3993
    %v4628 = vsub.f32 %v2225, %v3996
    %v4629 = vsub.f32 %v2216, %v3999
    %v4630 = vsub.f32 %v2226, %v4002
    %v4631 = vsub.f32 %v2223, %v4005
    %v4632 = vsub.f32 %v2227, %v4008
    %v4633 = vsub.f32 %v2268, %v4011
    %v4634 = vsub.f32 %v2292, %v4014
    %v4635 = vsub.f32 %v2275, %v4017
    %v4636 = vsub.f32 %v2293, %v4020
    %v4637 = vsub.f32 %v2284, %v4023
    %v4638 = vsub.f32 %v2294, %v4026
    %v4639 = vsub.f32 %v2291, %v4029
    %v4640 = vsub.f32 %v2295, %v4032
    %v4641 = vsub.f32 %v2336, %v4035
    %v4642 = vsub.f32 %v2360, %v4038
    %v4643 = vsub.f32 %v2343, %v4041
    %v4644 = vsub.f32 %v2361, %v4044
    %v4645 = vsub.f32 %v2352, %v4047
    %v4646 = vsub.f32 %v2362, %v4050
    %v4647 = vsub.f32 %v2359, %v4053
    %v4648 = vsub.f32 %v2363, %v4056
    %v4649 = vsub.f32 %v2404, %v4059
    %v4650 = vsub.f32 %v2428, %v4062
    %v4651 = vsub.f32 %v2411, %v4065
    %v4652 = vsub.f32 %v2429, %v4068
    %v4653 = vsub.f32 %v2420, %v4071
    %v4654 = vsub.f32 %v2430, %v4074
    %v4655 = vsub.f32 %v2427, %v4077
    %v4656 = vsub.f32 %v2431, %v4080
    %v4657 = vsub.f32 %v2472, %v4083
    %v4658 = vsub.f32 %v2496, %v4086
    %v4659 = vsub.f32 %v2479, %v4089
    %v4660 = vsub.f32 %v2497, %v4092
    %v4661 = vsub.f32 %v2488, %v4095
    %v4662 = vsub.f32 %v2498, %v4098
    %v4663 = vsub.f32 %v2495, %v4101
    %v4664 = vsub.f32 %v2499, %v4104
    %v4665 = vsub.f32 %v2540, %v4107
    %v4666 = vsub.f32 %v2564, %v4110
    %v4667 = vsub.f32 %v2547, %v4113
    %v4668 = vsub.f32 %v2565, %v4116
    %v4669 = vsub.f32 %v2556, %v4119
    %v4670 = vsub.f32 %v2566, %v4122
    %v4671 = vsub.f32 %v2563, %v4125
    %v4672 = vsub.f32 %v2567, %v4128
    %v4673 = vsub.f32 %v2608, %v4131
    %v4674 = vsub.f32 %v2632, %v4134
    %v4675 = vsub.f32 %v2615, %v4137
    %v4676 = vsub.f32 %v2633, %v4140
    %v4677 = vsub.f32 %v2624, %v4143
    %v4678 = vsub.f32 %v2634, %v4146
    %v4679 = vsub.f32 %v2631, %v4149
    %v4680 = vsub.f32 %v2635, %v4152
    %v4681 = vsub.f32 %v2676, %v4155
    %v4682 = vsub.f32 %v2700, %v4158
    %v4683 = vsub.f32 %v2683, %v4161
    %v4684 = vsub.f32 %v2701, %v4164
    %v4685 = vsub.f32 %v2692, %v4167
    %v4686 = vsub.f32 %v2702, %v4170
    %v4687 = vsub.f32 %v2699, %v4173
    %v4688 = vsub.f32 %v2703, %v4176
    %v4689 = vsub.f32 %v2744, %v4179
    %v4690 = vsub.f32 %v2768, %v4182
    %v4691 = vsub.f32 %v2751, %v4185
    %v4692 = vsub.f32 %v2769, %v4188
    %v4693 = vsub.f32 %v2760, %v4191
    %v4694 = vsub.f32 %v2770, %v4194
    %v4695 = vsub.f32 %v2767, %v4197
    %v4696 = vsub.f32 %v2771, %v4200
    %v4697 = vsub.f32 %v2812, %v4203
    %v4698 = vsub.f32 %v2836, %v4206
    %v4699 = vsub.f32 %v2819, %v4209
    %v4700 = vsub.f32 %v2837, %v4212
    %v4701 = vsub.f32 %v2828, %v4215
    %v4702 = vsub.f32 %v2838, %v4218
    %v4703 = vsub.f32 %v2835, %v4221
    %v4704 = vsub.f32 %v2839, %v4224
    %v4705 = vsub.f32 %v2880, %v4227
    %v4706 = vsub.f32 %v2904, %v4230
    %v4707 = vsub.f32 %v2887, %v4233
    %v4708 = vsub.f32 %v2905, %v4236
    %v4709 = vsub.f32 %v2896, %v4239
    %v4710 = vsub.f32 %v2906, %v4242
    %v4711 = vsub.f32 %v2903, %v4245
    %v4712 = vsub.f32 %v2907, %v4248
    %v4713 = vsub.f32 %v2948, %v4251
    %v4714 = vsub.f32 %v2972, %v4254
    %v4715 = vsub.f32 %v2955, %v4257
    %v4716 = vsub.f32 %v2973, %v4260
    %v4717 = vsub.f32 %v2964, %v4263
    %v4718 = vsub.f32 %v2974, %v4266
    %v4719 = vsub.f32 %v2971, %v4269
    %v4720 = vsub.f32 %v2975, %v4272
    %v4721 = vsub.f32 %v3016, %v4275
    %v4722 = vsub.f32 %v3040, %v4278
    %v4723 = vsub.f32 %v3023, %v4281
    %v4724 = vsub.f32 %v3041, %v4284
    %v4725 = vsub.f32 %v3032, %v4287
    %v4726 = vsub.f32 %v3042, %v4290
    %v4727 = vsub.f32 %v3039, %v4293
    %v4728 = vsub.f32 %v3043, %v4296
    %v4729 = vsub.f32 %v3084, %v4299
    %v4730 = vsub.f32 %v3108, %v4302
    %v4731 = vsub.f32 %v3091, %v4305
    %v4732 = vsub.f32 %v3109, %v4308
    %v4733 = vsub.f32 %v3100, %v4311
    %v4734 = vsub.f32 %v3110, %v4314
    %v4735 = vsub.f32 %v3107, %v4317
    %v4736 = vsub.f32 %v3111, %v4320
    %v4737 = vsub.f32 %v3152, %v4323
    %v4738 = vsub.f32 %v3176, %v4326
    %v4739 = vsub.f32 %v3159, %v4329
    %v4740 = vsub.f32 %v3177, %v4332
    %v4741 = vsub.f32 %v3168, %v4335
    %v4742 = vsub.f32 %v3178, %v4338
    %v4743 = vsub.f32 %v3175, %v4341
    %v4744 = vsub.f32 %v3179, %v4344
    %v4745 = vsub.f32 %v3220, %v4347
    %v4746 = vsub.f32 %v3244, %v4350
    %v4747 = vsub.f32 %v3227, %v4353
    %v4748 = vsub.f32 %v3245, %v4356
    %v4749 = vsub.f32 %v3236, %v4359
    %v4750 = vsub.f32 %v3246, %v4362
    %v4751 = vsub.f32 %v3243, %v4365
    %v4752 = vsub.f32 %v3247, %v4368
    %v4753 = vsub.f32 %v3288, %v4371
    %v4754 = vsub.f32 %v3312, %v4374
    %v4755 = vsub.f32 %v3295, %v4377
    %v4756 = vsub.f32 %v3313, %v4380
    %v4757 = vsub.f32 %v3304, %v4383
    %v4758 = vsub.f32 %v3314, %v4386
    %v4759 = vsub.f32 %v3311, %v4389
    %v4760 = vsub.f32 %v3315, %v4392
    %v4761 = vsub.f32 %v3356, %v4395
    %v4762 = vsub.f32 %v3380, %v4398
    %v4763 = vsub.f32 %v3363, %v4401
    %v4764 = vsub.f32 %v3381, %v4404
    %v4765 = vsub.f32 %v3372, %v4407
    %v4766 = vsub.f32 %v3382, %v4410
    %v4767 = vsub.f32 %v3379, %v4413
    %v4768 = vsub.f32 %v3383, %v4416
    %v4769 = vsub.f32 %v3424, %v4419
    %v4770 = vsub.f32 %v3448, %v4422
    %v4771 = vsub.f32 %v3431, %v4425
    %v4772 = vsub.f32 %v3449, %v4428
    %v4773 = vsub.f32 %v3440, %v4431
    %v4774 = vsub.f32 %v3450, %v4434
    %v4775 = vsub.f32 %v3447, %v4437
    %v4776 = vsub.f32 %v3451, %v4440
    %v4777 = vsub.f32 %v3492, %v4443
    %v4778 = vsub.f32 %v3516, %v4446
    %v4779 = vsub.f32 %v3499, %v4449
    %v4780 = vsub.f32 %v3517, %v4452
    %v4781 = vsub.f32 %v3508, %v4455
    %v4782 = vsub.f32 %v3518, %v4458
    %v4783 = vsub.f32 %v3515, %v4461
    %v4784 = vsub.f32 %v3519, %v4464
    %v4785 = vsub.f32 %v3560, %v4467
    %v4786 = vsub.f32 %v3584, %v4470
    %v4787 = vsub.f32 %v3567, %v4473
    %v4788 = vsub.f32 %v3585, %v4476
    %v4789 = vsub.f32 %v3576, %v4479
    %v4790 = vsub.f32 %v3586, %v4482
    %v4791 = vsub.f32 %v3583, %v4485
    %v4792 = vsub.f32 %v3587, %v4488
    %v4793 = vsub.f32 %v3628, %v4491
    %v4794 = vsub.f32 %v3652, %v4494
    %v4795 = vsub.f32 %v3635, %v4497
    %v4796 = vsub.f32 %v3653, %v4500
    %v4797 = vsub.f32 %v3644, %v4503
    %v4798 = vsub.f32 %v3654, %v4506
    %v4799 = vsub.f32 %v3651, %v4509
    %v4800 = vsub.f32 %v3655, %v4512
    %v4801 = vsub.f32 %v3696, %v4515
    %v4802 = vsub.f32 %v3720, %v4518
    %v4803 = vsub.f32 %v3703, %v4521
    %v4804 = vsub.f32 %v3721, %v4524
    %v4805 = vsub.f32 %v3712, %v4527
    %v4806 = vsub.f32 %v3722, %v4530
    %v4807 = vsub.f32 %v3719, %v4533
    %v4808 = vsub.f32 %v3723, %v4536
    %v4809 = vsub.f32 %v3764, %v4539
    %v4810 = vsub.f32 %v3788, %v4542
    %v4811 = vsub.f32 %v3771, %v4545
    %v4812 = vsub.f32 %v3789, %v4548
    %v4813 = vsub.f32 %v3780, %v4551
    %v4814 = vsub.f32 %v3790, %v4554
    %v4815 = vsub.f32 %v3787, %v4557
    %v4816 = vsub.f32 %v3791, %v4560
    %v4817 = vmul.f32 %v4561, 1.442695
    %v4818 = vpow.pop %v4817
    %v4819 = vmul.f32 %v4562, 1.442695
    %v4820 = vpow.pop %v4819
    %v4821 = vmul.f32 %v4563, 1.442695
    %v4822 = vpow.pop %v4821
    %v4823 = vmul.f32 %v4564, 1.442695
    %v4824 = vpow.pop %v4823
    %v4825 = vmul.f32 %v4565, 1.442695
    %v4826 = vpow.pop %v4825
    %v4827 = vmul.f32 %v4566, 1.442695
    %v4828 = vpow.pop %v4827
    %v4829 = vmul.f32 %v4567, 1.442695
    %v4830 = vpow.pop %v4829
    %v4831 = vmul.f32 %v4568, 1.442695
    %v4832 = vpow.pop %v4831
    %v4833 = vmul.f32 %v4569, 1.442695
    %v4834 = vpow.pop %v4833
    %v4835 = vmul.f32 %v4570, 1.442695
    %v4836 = vpow.pop %v4835
    %v4837 = vmul.f32 %v4571, 1.442695
    %v4838 = vpow.pop %v4837
    %v4839 = vmul.f32 %v4572, 1.442695
    %v4840 = vpow.pop %v4839
    %v4841 = vmul.f32 %v4573, 1.442695
    %v4842 = vpow.pop %v4841
    %v4843 = vmul.f32 %v4574, 1.442695
    %v4844 = vpow.pop %v4843
    %v4845 = vmul.f32 %v4575, 1.442695
    %v4846 = vpow.pop %v4845
    %v4847 = vmul.f32 %v4576, 1.442695
    %v4848 = vpow.pop %v4847
    %v4849 = vmul.f32 %v4577, 1.442695
    %v4850 = vpow.pop %v4849
    %v4851 = vmul.f32 %v4578, 1.442695
    %v4852 = vpow.pop %v4851
    %v4853 = vmul.f32 %v4579, 1.442695
    %v4854 = vpow.pop %v4853
    %v4855 = vmul.f32 %v4580, 1.442695
    %v4856 = vpow.pop %v4855
    %v4857 = vmul.f32 %v4581, 1.442695
    %v4858 = vpow.pop %v4857
    %v4859 = vmul.f32 %v4582, 1.442695
    %v4860 = vpow.pop %v4859
    %v4861 = vmul.f32 %v4583, 1.442695
    %v4862 = vpow.pop %v4861
    %v4863 = vmul.f32 %v4584, 1.442695
    %v4864 = vpow.pop %v4863
    %v4865 = vmul.f32 %v4585, 1.442695
    %v4866 = vpow.pop %v4865
    %v4867 = vmul.f32 %v4586, 1.442695
    %v4868 = vpow.pop %v4867
    %v4869 = vmul.f32 %v4587, 1.442695
    %v4870 = vpow.pop %v4869
    %v4871 = vmul.f32 %v4588, 1.442695
    %v4872 = vpow.pop %v4871
    %v4873 = vmul.f32 %v4589, 1.442695
    %v4874 = vpow.pop %v4873
    %v4875 = vmul.f32 %v4590, 1.442695
    %v4876 = vpow.pop %v4875
    %v4877 = vmul.f32 %v4591, 1.442695
    %v4878 = vpow.pop %v4877
    %v4879 = vmul.f32 %v4592, 1.442695
    %v4880 = vpow.pop %v4879
    %v4881 = vmul.f32 %v4593, 1.442695
    %v4882 = vpow.pop %v4881
    %v4883 = vmul.f32 %v4594, 1.442695
    %v4884 = vpow.pop %v4883
    %v4885 = vmul.f32 %v4595, 1.442695
    %v4886 = vpow.pop %v4885
    %v4887 = vmul.f32 %v4596, 1.442695
    %v4888 = vpow.pop %v4887
    %v4889 = vmul.f32 %v4597, 1.442695
    %v4890 = vpow.pop %v4889
    %v4891 = vmul.f32 %v4598, 1.442695
    %v4892 = vpow.pop %v4891
    %v4893 = vmul.f32 %v4599, 1.442695
    %v4894 = vpow.pop %v4893
    %v4895 = vmul.f32 %v4600, 1.442695
    %v4896 = vpow.pop %v4895
    %v4897 = vmul.f32 %v4601, 1.442695
    %v4898 = vpow.pop %v4897
    %v4899 = vmul.f32 %v4602, 1.442695
    %v4900 = vpow.pop %v4899
    %v4901 = vmul.f32 %v4603, 1.442695
    %v4902 = vpow.pop %v4901
    %v4903 = vmul.f32 %v4604, 1.442695
    %v4904 = vpow.pop %v4903
    %v4905 = vmul.f32 %v4605, 1.442695
    %v4906 = vpow.pop %v4905
    %v4907 = vmul.f32 %v4606, 1.442695
    %v4908 = vpow.pop %v4907
    %v4909 = vmul.f32 %v4607, 1.442695
    %v4910 = vpow.pop %v4909
    %v4911 = vmul.f32 %v4608, 1.442695
    %v4912 = vpow.pop %v4911
    %v4913 = vmul.f32 %v4609, 1.442695
    %v4914 = vpow.pop %v4913
    %v4915 = vmul.f32 %v4610, 1.442695
    %v4916 = vpow.pop %v4915
    %v4917 = vmul.f32 %v4611, 1.442695
    %v4918 = vpow.pop %v4917
    %v4919 = vmul.f32 %v4612, 1.442695
    %v4920 = vpow.pop %v4919
    %v4921 = vmul.f32 %v4613, 1.442695
    %v4922 = vpow.pop %v4921
    %v4923 = vmul.f32 %v4614, 1.442695
    %v4924 = vpow.pop %v4923
    %v4925 = vmul.f32 %v4615, 1.442695
    %v4926 = vpow.pop %v4925
    %v4927 = vmul.f32 %v4616, 1.442695
    %v4928 = vpow.pop %v4927
    %v4929 = vmul.f32 %v4617, 1.442695
    %v4930 = vpow.pop %v4929
    %v4931 = vmul.f32 %v4618, 1.442695
    %v4932 = vpow.pop %v4931
    %v4933 = vmul.f32 %v4619, 1.442695
    %v4934 = vpow.pop %v4933
    %v4935 = vmul.f32 %v4620, 1.442695
    %v4936 = vpow.pop %v4935
    %v4937 = vmul.f32 %v4621, 1.442695
    %v4938 = vpow.pop %v4937
    %v4939 = vmul.f32 %v4622, 1.442695
    %v4940 = vpow.pop %v4939
    %v4941 = vmul.f32 %v4623, 1.442695
    %v4942 = vpow.pop %v4941
    %v4943 = vmul.f32 %v4624, 1.442695
    %v4944 = vpow.pop %v4943
    %v4945 = vmul.f32 %v4625, 1.442695
    %v4946 = vpow.pop %v4945
    %v4947 = vmul.f32 %v4626, 1.442695
    %v4948 = vpow.pop %v4947
    %v4949 = vmul.f32 %v4627, 1.442695
    %v4950 = vpow.pop %v4949
    %v4951 = vmul.f32 %v4628, 1.442695
    %v4952 = vpow.pop %v4951
    %v4953 = vmul.f32 %v4629, 1.442695
    %v4954 = vpow.pop %v4953
    %v4955 = vmul.f32 %v4630, 1.442695
    %v4956 = vpow.pop %v4955
    %v4957 = vmul.f32 %v4631, 1.442695
    %v4958 = vpow.pop %v4957
    %v4959 = vmul.f32 %v4632, 1.442695
    %v4960 = vpow.pop %v4959
    %v4961 = vmul.f32 %v4633, 1.442695
    %v4962 = vpow.pop %v4961
    %v4963 = vmul.f32 %v4634, 1.442695
    %v4964 = vpow.pop %v4963
    %v4965 = vmul.f32 %v4635, 1.442695
    %v4966 = vpow.pop %v4965
    %v4967 = vmul.f32 %v4636, 1.442695
    %v4968 = vpow.pop %v4967
    %v4969 = vmul.f32 %v4637, 1.442695
    %v4970 = vpow.pop %v4969
    %v4971 = vmul.f32 %v4638, 1.442695
    %v4972 = vpow.pop %v4971
    %v4973 = vmul.f32 %v4639, 1.442695
    %v4974 = vpow.pop %v4973
    %v4975 = vmul.f32 %v4640, 1.442695
    %v4976 = vpow.pop %v4975
    %v4977 = vmul.f32 %v4641, 1.442695
    %v4978 = vpow.pop %v4977
    %v4979 = vmul.f32 %v4642, 1.442695
    %v4980 = vpow.pop %v4979
    %v4981 = vmul.f32 %v4643, 1.442695
    %v4982 = vpow.pop %v4981
    %v4983 = vmul.f32 %v4644, 1.442695
    %v4984 = vpow.pop %v4983
    %v4985 = vmul.f32 %v4645, 1.442695
    %v4986 = vpow.pop %v4985
    %v4987 = vmul.f32 %v4646, 1.442695
    %v4988 = vpow.pop %v4987
    %v4989 = vmul.f32 %v4647, 1.442695
    %v4990 = vpow.pop %v4989
    %v4991 = vmul.f32 %v4648, 1.442695
    %v4992 = vpow.pop %v4991
    %v4993 = vmul.f32 %v4649, 1.442695
    %v4994 = vpow.pop %v4993
    %v4995 = vmul.f32 %v4650, 1.442695
    %v4996 = vpow.pop %v4995
    %v4997 = vmul.f32 %v4651, 1.442695
    %v4998 = vpow.pop %v4997
    %v4999 = vmul.f32 %v4652, 1.442695
    %v5000 = vpow.pop %v4999
    %v5001 = vmul.f32 %v4653, 1.442695
    %v5002 = vpow.pop %v5001
    %v5003 = vmul.f32 %v4654, 1.442695
    %v5004 = vpow.pop %v5003
    %v5005 = vmul.f32 %v4655, 1.442695
    %v5006 = vpow.pop %v5005
    %v5007 = vmul.f32 %v4656, 1.442695
    %v5008 = vpow.pop %v5007
    %v5009 = vmul.f32 %v4657, 1.442695
    %v5010 = vpow.pop %v5009
    %v5011 = vmul.f32 %v4658, 1.442695
    %v5012 = vpow.pop %v5011
    %v5013 = vmul.f32 %v4659, 1.442695
    %v5014 = vpow.pop %v5013
    %v5015 = vmul.f32 %v4660, 1.442695
    %v5016 = vpow.pop %v5015
    %v5017 = vmul.f32 %v4661, 1.442695
    %v5018 = vpow.pop %v5017
    %v5019 = vmul.f32 %v4662, 1.442695
    %v5020 = vpow.pop %v5019
    %v5021 = vmul.f32 %v4663, 1.442695
    %v5022 = vpow.pop %v5021
    %v5023 = vmul.f32 %v4664, 1.442695
    %v5024 = vpow.pop %v5023
    %v5025 = vmul.f32 %v4665, 1.442695
    %v5026 = vpow.pop %v5025
    %v5027 = vmul.f32 %v4666, 1.442695
    %v5028 = vpow.pop %v5027
    %v5029 = vmul.f32 %v4667, 1.442695
    %v5030 = vpow.pop %v5029
    %v5031 = vmul.f32 %v4668, 1.442695
    %v5032 = vpow.pop %v5031
    %v5033 = vmul.f32 %v4669, 1.442695
    %v5034 = vpow.pop %v5033
    %v5035 = vmul.f32 %v4670, 1.442695
    %v5036 = vpow.pop %v5035
    %v5037 = vmul.f32 %v4671, 1.442695
    %v5038 = vpow.pop %v5037
    %v5039 = vmul.f32 %v4672, 1.442695
    %v5040 = vpow.pop %v5039
    %v5041 = vmul.f32 %v4673, 1.442695
    %v5042 = vpow.pop %v5041
    %v5043 = vmul.f32 %v4674, 1.442695
    %v5044 = vpow.pop %v5043
    %v5045 = vmul.f32 %v4675, 1.442695
    %v5046 = vpow.pop %v5045
    %v5047 = vmul.f32 %v4676, 1.442695
    %v5048 = vpow.pop %v5047
    %v5049 = vmul.f32 %v4677, 1.442695
    %v5050 = vpow.pop %v5049
    %v5051 = vmul.f32 %v4678, 1.442695
    %v5052 = vpow.pop %v5051
    %v5053 = vmul.f32 %v4679, 1.442695
    %v5054 = vpow.pop %v5053
    %v5055 = vmul.f32 %v4680, 1.442695
    %v5056 = vpow.pop %v5055
    %v5057 = vmul.f32 %v4681, 1.442695
    %v5058 = vpow.pop %v5057
    %v5059 = vmul.f32 %v4682, 1.442695
    %v5060 = vpow.pop %v5059
    %v5061 = vmul.f32 %v4683, 1.442695
    %v5062 = vpow.pop %v5061
    %v5063 = vmul.f32 %v4684, 1.442695
    %v5064 = vpow.pop %v5063
    %v5065 = vmul.f32 %v4685, 1.442695
    %v5066 = vpow.pop %v5065
    %v5067 = vmul.f32 %v4686, 1.442695
    %v5068 = vpow.pop %v5067
    %v5069 = vmul.f32 %v4687, 1.442695
    %v5070 = vpow.pop %v5069
    %v5071 = vmul.f32 %v4688, 1.442695
    %v5072 = vpow.pop %v5071
    %v5073 = vmul.f32 %v4689, 1.442695
    %v5074 = vpow.pop %v5073
    %v5075 = vmul.f32 %v4690, 1.442695
    %v5076 = vpow.pop %v5075
    %v5077 = vmul.f32 %v4691, 1.442695
    %v5078 = vpow.pop %v5077
    %v5079 = vmul.f32 %v4692, 1.442695
    %v5080 = vpow.pop %v5079
    %v5081 = vmul.f32 %v4693, 1.442695
    %v5082 = vpow.pop %v5081
    %v5083 = vmul.f32 %v4694, 1.442695
    %v5084 = vpow.pop %v5083
    %v5085 = vmul.f32 %v4695, 1.442695
    %v5086 = vpow.pop %v5085
    %v5087 = vmul.f32 %v4696, 1.442695
    %v5088 = vpow.pop %v5087
    %v5089 = vmul.f32 %v4697, 1.442695
    %v5090 = vpow.pop %v5089
    %v5091 = vmul.f32 %v4698, 1.442695
    %v5092 = vpow.pop %v5091
    %v5093 = vmul.f32 %v4699, 1.442695
    %v5094 = vpow.pop %v5093
    %v5095 = vmul.f32 %v4700, 1.442695
    %v5096 = vpow.pop %v5095
    %v5097 = vmul.f32 %v4701, 1.442695
    %v5098 = vpow.pop %v5097
    %v5099 = vmul.f32 %v4702, 1.442695
    %v5100 = vpow.pop %v5099
    %v5101 = vmul.f32 %v4703, 1.442695
    %v5102 = vpow.pop %v5101
    %v5103 = vmul.f32 %v4704, 1.442695
    %v5104 = vpow.pop %v5103
    %v5105 = vmul.f32 %v4705, 1.442695
    %v5106 = vpow.pop %v5105
    %v5107 = vmul.f32 %v4706, 1.442695
    %v5108 = vpow.pop %v5107
    %v5109 = vmul.f32 %v4707, 1.442695
    %v5110 = vpow.pop %v5109
    %v5111 = vmul.f32 %v4708, 1.442695
    %v5112 = vpow.pop %v5111
    %v5113 = vmul.f32 %v4709, 1.442695
    %v5114 = vpow.pop %v5113
    %v5115 = vmul.f32 %v4710, 1.442695
    %v5116 = vpow.pop %v5115
    %v5117 = vmul.f32 %v4711, 1.442695
    %v5118 = vpow.pop %v5117
    %v5119 = vmul.f32 %v4712, 1.442695
    %v5120 = vpow.pop %v5119
    %v5121 = vmul.f32 %v4713, 1.442695
    %v5122 = vpow.pop %v5121
    %v5123 = vmul.f32 %v4714, 1.442695
    %v5124 = vpow.pop %v5123
    %v5125 = vmul.f32 %v4715, 1.442695
    %v5126 = vpow.pop %v5125
    %v5127 = vmul.f32 %v4716, 1.442695
    %v5128 = vpow.pop %v5127
    %v5129 = vmul.f32 %v4717, 1.442695
    %v5130 = vpow.pop %v5129
    %v5131 = vmul.f32 %v4718, 1.442695
    %v5132 = vpow.pop %v5131
    %v5133 = vmul.f32 %v4719, 1.442695
    %v5134 = vpow.pop %v5133
    %v5135 = vmul.f32 %v4720, 1.442695
    %v5136 = vpow.pop %v5135
    %v5137 = vmul.f32 %v4721, 1.442695
    %v5138 = vpow.pop %v5137
    %v5139 = vmul.f32 %v4722, 1.442695
    %v5140 = vpow.pop %v5139
    %v5141 = vmul.f32 %v4723, 1.442695
    %v5142 = vpow.pop %v5141
    %v5143 = vmul.f32 %v4724, 1.442695
    %v5144 = vpow.pop %v5143
    %v5145 = vmul.f32 %v4725, 1.442695
    %v5146 = vpow.pop %v5145
    %v5147 = vmul.f32 %v4726, 1.442695
    %v5148 = vpow.pop %v5147
    %v5149 = vmul.f32 %v4727, 1.442695
    %v5150 = vpow.pop %v5149
    %v5151 = vmul.f32 %v4728, 1.442695
    %v5152 = vpow.pop %v5151
    %v5153 = vmul.f32 %v4729, 1.442695
    %v5154 = vpow.pop %v5153
    %v5155 = vmul.f32 %v4730, 1.442695
    %v5156 = vpow.pop %v5155
    %v5157 = vmul.f32 %v4731, 1.442695
    %v5158 = vpow.pop %v5157
    %v5159 = vmul.f32 %v4732, 1.442695
    %v5160 = vpow.pop %v5159
    %v5161 = vmul.f32 %v4733, 1.442695
    %v5162 = vpow.pop %v5161
    %v5163 = vmul.f32 %v4734, 1.442695
    %v5164 = vpow.pop %v5163
    %v5165 = vmul.f32 %v4735, 1.442695
    %v5166 = vpow.pop %v5165
    %v5167 = vmul.f32 %v4736, 1.442695
    %v5168 = vpow.pop %v5167
    %v5169 = vmul.f32 %v4737, 1.442695
    %v5170 = vpow.pop %v5169
    %v5171 = vmul.f32 %v4738, 1.442695
    %v5172 = vpow.pop %v5171
    %v5173 = vmul.f32 %v4739, 1.442695
    %v5174 = vpow.pop %v5173
    %v5175 = vmul.f32 %v4740, 1.442695
    %v5176 = vpow.pop %v5175
    %v5177 = vmul.f32 %v4741, 1.442695
    %v5178 = vpow.pop %v5177
    %v5179 = vmul.f32 %v4742, 1.442695
    %v5180 = vpow.pop %v5179
    %v5181 = vmul.f32 %v4743, 1.442695
    %v5182 = vpow.pop %v5181
    %v5183 = vmul.f32 %v4744, 1.442695
    %v5184 = vpow.pop %v5183
    %v5185 = vmul.f32 %v4745, 1.442695
    %v5186 = vpow.pop %v5185
    %v5187 = vmul.f32 %v4746, 1.442695
    %v5188 = vpow.pop %v5187
    %v5189 = vmul.f32 %v4747, 1.442695
    %v5190 = vpow.pop %v5189
    %v5191 = vmul.f32 %v4748, 1.442695
    %v5192 = vpow.pop %v5191
    %v5193 = vmul.f32 %v4749, 1.442695
    %v5194 = vpow.pop %v5193
    %v5195 = vmul.f32 %v4750, 1.442695
    %v5196 = vpow.pop %v5195
    %v5197 = vmul.f32 %v4751, 1.442695
    %v5198 = vpow.pop %v5197
    %v5199 = vmul.f32 %v4752, 1.442695
    %v5200 = vpow.pop %v5199
    %v5201 = vmul.f32 %v4753, 1.442695
    %v5202 = vpow.pop %v5201
    %v5203 = vmul.f32 %v4754, 1.442695
    %v5204 = vpow.pop %v5203
    %v5205 = vmul.f32 %v4755, 1.442695
    %v5206 = vpow.pop %v5205
    %v5207 = vmul.f32 %v4756, 1.442695
    %v5208 = vpow.pop %v5207
    %v5209 = vmul.f32 %v4757, 1.442695
    %v5210 = vpow.pop %v5209
    %v5211 = vmul.f32 %v4758, 1.442695
    %v5212 = vpow.pop %v5211
    %v5213 = vmul.f32 %v4759, 1.442695
    %v5214 = vpow.pop %v5213
    %v5215 = vmul.f32 %v4760, 1.442695
    %v5216 = vpow.pop %v5215
    %v5217 = vmul.f32 %v4761, 1.442695
    %v5218 = vpow.pop %v5217
    %v5219 = vmul.f32 %v4762, 1.442695
    %v5220 = vpow.pop %v5219
    %v5221 = vmul.f32 %v4763, 1.442695
    %v5222 = vpow.pop %v5221
    %v5223 = vmul.f32 %v4764, 1.442695
    %v5224 = vpow.pop %v5223
    %v5225 = vmul.f32 %v4765, 1.442695
    %v5226 = vpow.pop %v5225
    %v5227 = vmul.f32 %v4766, 1.442695
    %v5228 = vpow.pop %v5227
    %v5229 = vmul.f32 %v4767, 1.442695
    %v5230 = vpow.pop %v5229
    %v5231 = vmul.f32 %v4768, 1.442695
    %v5232 = vpow.pop %v5231
    %v5233 = vmul.f32 %v4769, 1.442695
    %v5234 = vpow.pop %v5233
    %v5235 = vmul.f32 %v4770, 1.442695
    %v5236 = vpow.pop %v5235
    %v5237 = vmul.f32 %v4771, 1.442695
    %v5238 = vpow.pop %v5237
    %v5239 = vmul.f32 %v4772, 1.442695
    %v5240 = vpow.pop %v5239
    %v5241 = vmul.f32 %v4773, 1.442695
    %v5242 = vpow.pop %v5241
    %v5243 = vmul.f32 %v4774, 1.442695
    %v5244 = vpow.pop %v5243
    %v5245 = vmul.f32 %v4775, 1.442695
    %v5246 = vpow.pop %v5245
    %v5247 = vmul.f32 %v4776, 1.442695
    %v5248 = vpow.pop %v5247
    %v5249 = vmul.f32 %v4777, 1.442695
    %v5250 = vpow.pop %v5249
    %v5251 = vmul.f32 %v4778, 1.442695
    %v5252 = vpow.pop %v5251
    %v5253 = vmul.f32 %v4779, 1.442695
    %v5254 = vpow.pop %v5253
    %v5255 = vmul.f32 %v4780, 1.442695
    %v5256 = vpow.pop %v5255
    %v5257 = vmul.f32 %v4781, 1.442695
    %v5258 = vpow.pop %v5257
    %v5259 = vmul.f32 %v4782, 1.442695
    %v5260 = vpow.pop %v5259
    %v5261 = vmul.f32 %v4783, 1.442695
    %v5262 = vpow.pop %v5261
    %v5263 = vmul.f32 %v4784, 1.442695
    %v5264 = vpow.pop %v5263
    %v5265 = vmul.f32 %v4785, 1.442695
    %v5266 = vpow.pop %v5265
    %v5267 = vmul.f32 %v4786, 1.442695
    %v5268 = vpow.pop %v5267
    %v5269 = vmul.f32 %v4787, 1.442695
    %v5270 = vpow.pop %v5269
    %v5271 = vmul.f32 %v4788, 1.442695
    %v5272 = vpow.pop %v5271
    %v5273 = vmul.f32 %v4789, 1.442695
    %v5274 = vpow.pop %v5273
    %v5275 = vmul.f32 %v4790, 1.442695
    %v5276 = vpow.pop %v5275
    %v5277 = vmul.f32 %v4791, 1.442695
    %v5278 = vpow.pop %v5277
    %v5279 = vmul.f32 %v4792, 1.442695
    %v5280 = vpow.pop %v5279
    %v5281 = vmul.f32 %v4793, 1.442695
    %v5282 = vpow.pop %v5281
    %v5283 = vmul.f32 %v4794, 1.442695
    %v5284 = vpow.pop %v5283
    %v5285 = vmul.f32 %v4795, 1.442695
    %v5286 = vpow.pop %v5285
    %v5287 = vmul.f32 %v4796, 1.442695
    %v5288 = vpow.pop %v5287
    %v5289 = vmul.f32 %v4797, 1.442695
    %v5290 = vpow.pop %v5289
    %v5291 = vmul.f32 %v4798, 1.442695
    %v5292 = vpow.pop %v5291
    %v5293 = vmul.f32 %v4799, 1.442695
    %v5294 = vpow.pop %v5293
    %v5295 = vmul.f32 %v4800, 1.442695
    %v5296 = vpow.pop %v5295
    %v5297 = vmul.f32 %v4801, 1.442695
    %v5298 = vpow.pop %v5297
    %v5299 = vmul.f32 %v4802, 1.442695
    %v5300 = vpow.pop %v5299
    %v5301 = vmul.f32 %v4803, 1.442695
    %v5302 = vpow.pop %v5301
    %v5303 = vmul.f32 %v4804, 1.442695
    %v5304 = vpow.pop %v5303
    %v5305 = vmul.f32 %v4805, 1.442695
    %v5306 = vpow.pop %v5305
    %v5307 = vmul.f32 %v4806, 1.442695
    %v5308 = vpow.pop %v5307
    %v5309 = vmul.f32 %v4807, 1.442695
    %v5310 = vpow.pop %v5309
    %v5311 = vmul.f32 %v4808, 1.442695
    %v5312 = vpow.pop %v5311
    %v5313 = vmul.f32 %v4809, 1.442695
    %v5314 = vpow.pop %v5313
    %v5315 = vmul.f32 %v4810, 1.442695
    %v5316 = vpow.pop %v5315
    %v5317 = vmul.f32 %v4811, 1.442695
    %v5318 = vpow.pop %v5317
    %v5319 = vmul.f32 %v4812, 1.442695
    %v5320 = vpow.pop %v5319
    %v5321 = vmul.f32 %v4813, 1.442695
    %v5322 = vpow.pop %v5321
    %v5323 = vmul.f32 %v4814, 1.442695
    %v5324 = vpow.pop %v5323
    %v5325 = vmul.f32 %v4815, 1.442695
    %v5326 = vpow.pop %v5325
    %v5327 = vmul.f32 %v4816, 1.442695
    %v5328 = vpow.pop %v5327
    %v5329 = vsel %vm3792, %v4818, 0.0
    %5330 = vadd.xlane.f32.xlu0 %v5329
    %v5331 = vpop.xlane.xlu0 %5330
    %v5332 = vsel %vm3792, %v4820, 0.0
    %5333 = vadd.xlane.f32.xlu0 %v5332
    %v5334 = vpop.xlane.xlu0 %5333
    %v5335 = vsel %vm3792, %v4822, 0.0
    %5336 = vadd.xlane.f32.xlu0 %v5335
    %v5337 = vpop.xlane.xlu0 %5336
    %v5338 = vsel %vm3792, %v4824, 0.0
    %5339 = vadd.xlane.f32.xlu0 %v5338
    %v5340 = vpop.xlane.xlu0 %5339
    %v5341 = vsel %vm3792, %v4826, 0.0
    %5342 = vadd.xlane.f32.xlu0 %v5341
    %v5343 = vpop.xlane.xlu0 %5342
    %v5344 = vsel %vm3792, %v4828, 0.0
    %5345 = vadd.xlane.f32.xlu0 %v5344
    %v5346 = vpop.xlane.xlu0 %5345
    %v5347 = vsel %vm3792, %v4830, 0.0
    %5348 = vadd.xlane.f32.xlu0 %v5347
    %v5349 = vpop.xlane.xlu0 %5348
    %v5350 = vsel %vm3792, %v4832, 0.0
    %5351 = vadd.xlane.f32.xlu0 %v5350
    %v5352 = vpop.xlane.xlu0 %5351
    %v5353 = vsel %vm3792, %v4834, 0.0
    %5354 = vadd.xlane.f32.xlu0 %v5353
    %v5355 = vpop.xlane.xlu0 %5354
    %v5356 = vsel %vm3792, %v4836, 0.0
    %5357 = vadd.xlane.f32.xlu0 %v5356
    %v5358 = vpop.xlane.xlu0 %5357
    %v5359 = vsel %vm3792, %v4838, 0.0
    %5360 = vadd.xlane.f32.xlu0 %v5359
    %v5361 = vpop.xlane.xlu0 %5360
    %v5362 = vsel %vm3792, %v4840, 0.0
    %5363 = vadd.xlane.f32.xlu0 %v5362
    %v5364 = vpop.xlane.xlu0 %5363
    %v5365 = vsel %vm3792, %v4842, 0.0
    %5366 = vadd.xlane.f32.xlu0 %v5365
    %v5367 = vpop.xlane.xlu0 %5366
    %v5368 = vsel %vm3792, %v4844, 0.0
    %5369 = vadd.xlane.f32.xlu0 %v5368
    %v5370 = vpop.xlane.xlu0 %5369
    %v5371 = vsel %vm3792, %v4846, 0.0
    %5372 = vadd.xlane.f32.xlu0 %v5371
    %v5373 = vpop.xlane.xlu0 %5372
    %v5374 = vsel %vm3792, %v4848, 0.0
    %5375 = vadd.xlane.f32.xlu0 %v5374
    %v5376 = vpop.xlane.xlu0 %5375
    %v5377 = vsel %vm3792, %v4850, 0.0
    %5378 = vadd.xlane.f32.xlu0 %v5377
    %v5379 = vpop.xlane.xlu0 %5378
    %v5380 = vsel %vm3792, %v4852, 0.0
    %5381 = vadd.xlane.f32.xlu0 %v5380
    %v5382 = vpop.xlane.xlu0 %5381
    %v5383 = vsel %vm3792, %v4854, 0.0
    %5384 = vadd.xlane.f32.xlu0 %v5383
    %v5385 = vpop.xlane.xlu0 %5384
    %v5386 = vsel %vm3792, %v4856, 0.0
    %5387 = vadd.xlane.f32.xlu0 %v5386
    %v5388 = vpop.xlane.xlu0 %5387
    %v5389 = vsel %vm3792, %v4858, 0.0
    %5390 = vadd.xlane.f32.xlu0 %v5389
    %v5391 = vpop.xlane.xlu0 %5390
    %v5392 = vsel %vm3792, %v4860, 0.0
    %5393 = vadd.xlane.f32.xlu0 %v5392
    %v5394 = vpop.xlane.xlu0 %5393
    %v5395 = vsel %vm3792, %v4862, 0.0
    %5396 = vadd.xlane.f32.xlu0 %v5395
    %v5397 = vpop.xlane.xlu0 %5396
    %v5398 = vsel %vm3792, %v4864, 0.0
    %5399 = vadd.xlane.f32.xlu0 %v5398
    %v5400 = vpop.xlane.xlu0 %5399
    %v5401 = vsel %vm3792, %v4866, 0.0
    %5402 = vadd.xlane.f32.xlu0 %v5401
    %v5403 = vpop.xlane.xlu0 %5402
    %v5404 = vsel %vm3792, %v4868, 0.0
    %5405 = vadd.xlane.f32.xlu0 %v5404
    %v5406 = vpop.xlane.xlu0 %5405
    %v5407 = vsel %vm3792, %v4870, 0.0
    %5408 = vadd.xlane.f32.xlu0 %v5407
    %v5409 = vpop.xlane.xlu0 %5408
    %v5410 = vsel %vm3792, %v4872, 0.0
    %5411 = vadd.xlane.f32.xlu0 %v5410
    %v5412 = vpop.xlane.xlu0 %5411
    %v5413 = vsel %vm3792, %v4874, 0.0
    %5414 = vadd.xlane.f32.xlu0 %v5413
    %v5415 = vpop.xlane.xlu0 %5414
    %v5416 = vsel %vm3792, %v4876, 0.0
    %5417 = vadd.xlane.f32.xlu0 %v5416
    %v5418 = vpop.xlane.xlu0 %5417
    %v5419 = vsel %vm3792, %v4878, 0.0
    %5420 = vadd.xlane.f32.xlu0 %v5419
    %v5421 = vpop.xlane.xlu0 %5420
    %v5422 = vsel %vm3792, %v4880, 0.0
    %5423 = vadd.xlane.f32.xlu0 %v5422
    %v5424 = vpop.xlane.xlu0 %5423
    %v5425 = vsel %vm3792, %v4882, 0.0
    %5426 = vadd.xlane.f32.xlu0 %v5425
    %v5427 = vpop.xlane.xlu0 %5426
    %v5428 = vsel %vm3792, %v4884, 0.0
    %5429 = vadd.xlane.f32.xlu0 %v5428
    %v5430 = vpop.xlane.xlu0 %5429
    %v5431 = vsel %vm3792, %v4886, 0.0
    %5432 = vadd.xlane.f32.xlu0 %v5431
    %v5433 = vpop.xlane.xlu0 %5432
    %v5434 = vsel %vm3792, %v4888, 0.0
    %5435 = vadd.xlane.f32.xlu0 %v5434
    %v5436 = vpop.xlane.xlu0 %5435
    %v5437 = vsel %vm3792, %v4890, 0.0
    %5438 = vadd.xlane.f32.xlu0 %v5437
    %v5439 = vpop.xlane.xlu0 %5438
    %v5440 = vsel %vm3792, %v4892, 0.0
    %5441 = vadd.xlane.f32.xlu0 %v5440
    %v5442 = vpop.xlane.xlu0 %5441
    %v5443 = vsel %vm3792, %v4894, 0.0
    %5444 = vadd.xlane.f32.xlu0 %v5443
    %v5445 = vpop.xlane.xlu0 %5444
    %v5446 = vsel %vm3792, %v4896, 0.0
    %5447 = vadd.xlane.f32.xlu0 %v5446
    %v5448 = vpop.xlane.xlu0 %5447
    %v5449 = vsel %vm3792, %v4898, 0.0
    %5450 = vadd.xlane.f32.xlu0 %v5449
    %v5451 = vpop.xlane.xlu0 %5450
    %v5452 = vsel %vm3792, %v4900, 0.0
    %5453 = vadd.xlane.f32.xlu0 %v5452
    %v5454 = vpop.xlane.xlu0 %5453
    %v5455 = vsel %vm3792, %v4902, 0.0
    %5456 = vadd.xlane.f32.xlu0 %v5455
    %v5457 = vpop.xlane.xlu0 %5456
    %v5458 = vsel %vm3792, %v4904, 0.0
    %5459 = vadd.xlane.f32.xlu0 %v5458
    %v5460 = vpop.xlane.xlu0 %5459
    %v5461 = vsel %vm3792, %v4906, 0.0
    %5462 = vadd.xlane.f32.xlu0 %v5461
    %v5463 = vpop.xlane.xlu0 %5462
    %v5464 = vsel %vm3792, %v4908, 0.0
    %5465 = vadd.xlane.f32.xlu0 %v5464
    %v5466 = vpop.xlane.xlu0 %5465
    %v5467 = vsel %vm3792, %v4910, 0.0
    %5468 = vadd.xlane.f32.xlu0 %v5467
    %v5469 = vpop.xlane.xlu0 %5468
    %v5470 = vsel %vm3792, %v4912, 0.0
    %5471 = vadd.xlane.f32.xlu0 %v5470
    %v5472 = vpop.xlane.xlu0 %5471
    %v5473 = vsel %vm3792, %v4914, 0.0
    %5474 = vadd.xlane.f32.xlu0 %v5473
    %v5475 = vpop.xlane.xlu0 %5474
    %v5476 = vsel %vm3792, %v4916, 0.0
    %5477 = vadd.xlane.f32.xlu0 %v5476
    %v5478 = vpop.xlane.xlu0 %5477
    %v5479 = vsel %vm3792, %v4918, 0.0
    %5480 = vadd.xlane.f32.xlu0 %v5479
    %v5481 = vpop.xlane.xlu0 %5480
    %v5482 = vsel %vm3792, %v4920, 0.0
    %5483 = vadd.xlane.f32.xlu0 %v5482
    %v5484 = vpop.xlane.xlu0 %5483
    %v5485 = vsel %vm3792, %v4922, 0.0
    %5486 = vadd.xlane.f32.xlu0 %v5485
    %v5487 = vpop.xlane.xlu0 %5486
    %v5488 = vsel %vm3792, %v4924, 0.0
    %5489 = vadd.xlane.f32.xlu0 %v5488
    %v5490 = vpop.xlane.xlu0 %5489
    %v5491 = vsel %vm3792, %v4926, 0.0
    %5492 = vadd.xlane.f32.xlu0 %v5491
    %v5493 = vpop.xlane.xlu0 %5492
    %v5494 = vsel %vm3792, %v4928, 0.0
    %5495 = vadd.xlane.f32.xlu0 %v5494
    %v5496 = vpop.xlane.xlu0 %5495
    %v5497 = vsel %vm3792, %v4930, 0.0
    %5498 = vadd.xlane.f32.xlu0 %v5497
    %v5499 = vpop.xlane.xlu0 %5498
    %v5500 = vsel %vm3792, %v4932, 0.0
    %5501 = vadd.xlane.f32.xlu0 %v5500
    %v5502 = vpop.xlane.xlu0 %5501
    %v5503 = vsel %vm3792, %v4934, 0.0
    %5504 = vadd.xlane.f32.xlu0 %v5503
    %v5505 = vpop.xlane.xlu0 %5504
    %v5506 = vsel %vm3792, %v4936, 0.0
    %5507 = vadd.xlane.f32.xlu0 %v5506
    %v5508 = vpop.xlane.xlu0 %5507
    %v5509 = vsel %vm3792, %v4938, 0.0
    %5510 = vadd.xlane.f32.xlu0 %v5509
    %v5511 = vpop.xlane.xlu0 %5510
    %v5512 = vsel %vm3792, %v4940, 0.0
    %5513 = vadd.xlane.f32.xlu0 %v5512
    %v5514 = vpop.xlane.xlu0 %5513
    %v5515 = vsel %vm3792, %v4942, 0.0
    %5516 = vadd.xlane.f32.xlu0 %v5515
    %v5517 = vpop.xlane.xlu0 %5516
    %v5518 = vsel %vm3792, %v4944, 0.0
    %5519 = vadd.xlane.f32.xlu0 %v5518
    %v5520 = vpop.xlane.xlu0 %5519
    %v5521 = vsel %vm3792, %v4946, 0.0
    %5522 = vadd.xlane.f32.xlu0 %v5521
    %v5523 = vpop.xlane.xlu0 %5522
    %v5524 = vsel %vm3792, %v4948, 0.0
    %5525 = vadd.xlane.f32.xlu0 %v5524
    %v5526 = vpop.xlane.xlu0 %5525
    %v5527 = vsel %vm3792, %v4950, 0.0
    %5528 = vadd.xlane.f32.xlu0 %v5527
    %v5529 = vpop.xlane.xlu0 %5528
    %v5530 = vsel %vm3792, %v4952, 0.0
    %5531 = vadd.xlane.f32.xlu0 %v5530
    %v5532 = vpop.xlane.xlu0 %5531
    %v5533 = vsel %vm3792, %v4954, 0.0
    %5534 = vadd.xlane.f32.xlu0 %v5533
    %v5535 = vpop.xlane.xlu0 %5534
    %v5536 = vsel %vm3792, %v4956, 0.0
    %5537 = vadd.xlane.f32.xlu0 %v5536
    %v5538 = vpop.xlane.xlu0 %5537
    %v5539 = vsel %vm3792, %v4958, 0.0
    %5540 = vadd.xlane.f32.xlu0 %v5539
    %v5541 = vpop.xlane.xlu0 %5540
    %v5542 = vsel %vm3792, %v4960, 0.0
    %5543 = vadd.xlane.f32.xlu0 %v5542
    %v5544 = vpop.xlane.xlu0 %5543
    %v5545 = vsel %vm3792, %v4962, 0.0
    %5546 = vadd.xlane.f32.xlu0 %v5545
    %v5547 = vpop.xlane.xlu0 %5546
    %v5548 = vsel %vm3792, %v4964, 0.0
    %5549 = vadd.xlane.f32.xlu0 %v5548
    %v5550 = vpop.xlane.xlu0 %5549
    %v5551 = vsel %vm3792, %v4966, 0.0
    %5552 = vadd.xlane.f32.xlu0 %v5551
    %v5553 = vpop.xlane.xlu0 %5552
    %v5554 = vsel %vm3792, %v4968, 0.0
    %5555 = vadd.xlane.f32.xlu0 %v5554
    %v5556 = vpop.xlane.xlu0 %5555
    %v5557 = vsel %vm3792, %v4970, 0.0
    %5558 = vadd.xlane.f32.xlu0 %v5557
    %v5559 = vpop.xlane.xlu0 %5558
    %v5560 = vsel %vm3792, %v4972, 0.0
    %5561 = vadd.xlane.f32.xlu0 %v5560
    %v5562 = vpop.xlane.xlu0 %5561
    %v5563 = vsel %vm3792, %v4974, 0.0
    %5564 = vadd.xlane.f32.xlu0 %v5563
    %v5565 = vpop.xlane.xlu0 %5564
    %v5566 = vsel %vm3792, %v4976, 0.0
    %5567 = vadd.xlane.f32.xlu0 %v5566
    %v5568 = vpop.xlane.xlu0 %5567
    %v5569 = vsel %vm3792, %v4978, 0.0
    %5570 = vadd.xlane.f32.xlu0 %v5569
    %v5571 = vpop.xlane.xlu0 %5570
    %v5572 = vsel %vm3792, %v4980, 0.0
    %5573 = vadd.xlane.f32.xlu0 %v5572
    %v5574 = vpop.xlane.xlu0 %5573
    %v5575 = vsel %vm3792, %v4982, 0.0
    %5576 = vadd.xlane.f32.xlu0 %v5575
    %v5577 = vpop.xlane.xlu0 %5576
    %v5578 = vsel %vm3792, %v4984, 0.0
    %5579 = vadd.xlane.f32.xlu0 %v5578
    %v5580 = vpop.xlane.xlu0 %5579
    %v5581 = vsel %vm3792, %v4986, 0.0
    %5582 = vadd.xlane.f32.xlu0 %v5581
    %v5583 = vpop.xlane.xlu0 %5582
    %v5584 = vsel %vm3792, %v4988, 0.0
    %5585 = vadd.xlane.f32.xlu0 %v5584
    %v5586 = vpop.xlane.xlu0 %5585
    %v5587 = vsel %vm3792, %v4990, 0.0
    %5588 = vadd.xlane.f32.xlu0 %v5587
    %v5589 = vpop.xlane.xlu0 %5588
    %v5590 = vsel %vm3792, %v4992, 0.0
    %5591 = vadd.xlane.f32.xlu0 %v5590
    %v5592 = vpop.xlane.xlu0 %5591
    %v5593 = vsel %vm3792, %v4994, 0.0
    %5594 = vadd.xlane.f32.xlu0 %v5593
    %v5595 = vpop.xlane.xlu0 %5594
    %v5596 = vsel %vm3792, %v4996, 0.0
    %5597 = vadd.xlane.f32.xlu0 %v5596
    %v5598 = vpop.xlane.xlu0 %5597
    %v5599 = vsel %vm3792, %v4998, 0.0
    %5600 = vadd.xlane.f32.xlu0 %v5599
    %v5601 = vpop.xlane.xlu0 %5600
    %v5602 = vsel %vm3792, %v5000, 0.0
    %5603 = vadd.xlane.f32.xlu0 %v5602
    %v5604 = vpop.xlane.xlu0 %5603
    %v5605 = vsel %vm3792, %v5002, 0.0
    %5606 = vadd.xlane.f32.xlu0 %v5605
    %v5607 = vpop.xlane.xlu0 %5606
    %v5608 = vsel %vm3792, %v5004, 0.0
    %5609 = vadd.xlane.f32.xlu0 %v5608
    %v5610 = vpop.xlane.xlu0 %5609
    %v5611 = vsel %vm3792, %v5006, 0.0
    %5612 = vadd.xlane.f32.xlu0 %v5611
    %v5613 = vpop.xlane.xlu0 %5612
    %v5614 = vsel %vm3792, %v5008, 0.0
    %5615 = vadd.xlane.f32.xlu0 %v5614
    %v5616 = vpop.xlane.xlu0 %5615
    %v5617 = vsel %vm3792, %v5010, 0.0
    %5618 = vadd.xlane.f32.xlu0 %v5617
    %v5619 = vpop.xlane.xlu0 %5618
    %v5620 = vsel %vm3792, %v5012, 0.0
    %5621 = vadd.xlane.f32.xlu0 %v5620
    %v5622 = vpop.xlane.xlu0 %5621
    %v5623 = vsel %vm3792, %v5014, 0.0
    %5624 = vadd.xlane.f32.xlu0 %v5623
    %v5625 = vpop.xlane.xlu0 %5624
    %v5626 = vsel %vm3792, %v5016, 0.0
    %5627 = vadd.xlane.f32.xlu0 %v5626
    %v5628 = vpop.xlane.xlu0 %5627
    %v5629 = vsel %vm3792, %v5018, 0.0
    %5630 = vadd.xlane.f32.xlu0 %v5629
    %v5631 = vpop.xlane.xlu0 %5630
    %v5632 = vsel %vm3792, %v5020, 0.0
    %5633 = vadd.xlane.f32.xlu0 %v5632
    %v5634 = vpop.xlane.xlu0 %5633
    %v5635 = vsel %vm3792, %v5022, 0.0
    %5636 = vadd.xlane.f32.xlu0 %v5635
    %v5637 = vpop.xlane.xlu0 %5636
    %v5638 = vsel %vm3792, %v5024, 0.0
    %5639 = vadd.xlane.f32.xlu0 %v5638
    %v5640 = vpop.xlane.xlu0 %5639
    %v5641 = vsel %vm3792, %v5026, 0.0
    %5642 = vadd.xlane.f32.xlu0 %v5641
    %v5643 = vpop.xlane.xlu0 %5642
    %v5644 = vsel %vm3792, %v5028, 0.0
    %5645 = vadd.xlane.f32.xlu0 %v5644
    %v5646 = vpop.xlane.xlu0 %5645
    %v5647 = vsel %vm3792, %v5030, 0.0
    %5648 = vadd.xlane.f32.xlu0 %v5647
    %v5649 = vpop.xlane.xlu0 %5648
    %v5650 = vsel %vm3792, %v5032, 0.0
    %5651 = vadd.xlane.f32.xlu0 %v5650
    %v5652 = vpop.xlane.xlu0 %5651
    %v5653 = vsel %vm3792, %v5034, 0.0
    %5654 = vadd.xlane.f32.xlu0 %v5653
    %v5655 = vpop.xlane.xlu0 %5654
    %v5656 = vsel %vm3792, %v5036, 0.0
    %5657 = vadd.xlane.f32.xlu0 %v5656
    %v5658 = vpop.xlane.xlu0 %5657
    %v5659 = vsel %vm3792, %v5038, 0.0
    %5660 = vadd.xlane.f32.xlu0 %v5659
    %v5661 = vpop.xlane.xlu0 %5660
    %v5662 = vsel %vm3792, %v5040, 0.0
    %5663 = vadd.xlane.f32.xlu0 %v5662
    %v5664 = vpop.xlane.xlu0 %5663
    %v5665 = vsel %vm3792, %v5042, 0.0
    %5666 = vadd.xlane.f32.xlu0 %v5665
    %v5667 = vpop.xlane.xlu0 %5666
    %v5668 = vsel %vm3792, %v5044, 0.0
    %5669 = vadd.xlane.f32.xlu0 %v5668
    %v5670 = vpop.xlane.xlu0 %5669
    %v5671 = vsel %vm3792, %v5046, 0.0
    %5672 = vadd.xlane.f32.xlu0 %v5671
    %v5673 = vpop.xlane.xlu0 %5672
    %v5674 = vsel %vm3792, %v5048, 0.0
    %5675 = vadd.xlane.f32.xlu0 %v5674
    %v5676 = vpop.xlane.xlu0 %5675
    %v5677 = vsel %vm3792, %v5050, 0.0
    %5678 = vadd.xlane.f32.xlu0 %v5677
    %v5679 = vpop.xlane.xlu0 %5678
    %v5680 = vsel %vm3792, %v5052, 0.0
    %5681 = vadd.xlane.f32.xlu0 %v5680
    %v5682 = vpop.xlane.xlu0 %5681
    %v5683 = vsel %vm3792, %v5054, 0.0
    %5684 = vadd.xlane.f32.xlu0 %v5683
    %v5685 = vpop.xlane.xlu0 %5684
    %v5686 = vsel %vm3792, %v5056, 0.0
    %5687 = vadd.xlane.f32.xlu0 %v5686
    %v5688 = vpop.xlane.xlu0 %5687
    %v5689 = vsel %vm3792, %v5058, 0.0
    %5690 = vadd.xlane.f32.xlu0 %v5689
    %v5691 = vpop.xlane.xlu0 %5690
    %v5692 = vsel %vm3792, %v5060, 0.0
    %5693 = vadd.xlane.f32.xlu0 %v5692
    %v5694 = vpop.xlane.xlu0 %5693
    %v5695 = vsel %vm3792, %v5062, 0.0
    %5696 = vadd.xlane.f32.xlu0 %v5695
    %v5697 = vpop.xlane.xlu0 %5696
    %v5698 = vsel %vm3792, %v5064, 0.0
    %5699 = vadd.xlane.f32.xlu0 %v5698
    %v5700 = vpop.xlane.xlu0 %5699
    %v5701 = vsel %vm3792, %v5066, 0.0
    %5702 = vadd.xlane.f32.xlu0 %v5701
    %v5703 = vpop.xlane.xlu0 %5702
    %v5704 = vsel %vm3792, %v5068, 0.0
    %5705 = vadd.xlane.f32.xlu0 %v5704
    %v5706 = vpop.xlane.xlu0 %5705
    %v5707 = vsel %vm3792, %v5070, 0.0
    %5708 = vadd.xlane.f32.xlu0 %v5707
    %v5709 = vpop.xlane.xlu0 %5708
    %v5710 = vsel %vm3792, %v5072, 0.0
    %5711 = vadd.xlane.f32.xlu0 %v5710
    %v5712 = vpop.xlane.xlu0 %5711
    %v5713 = vsel %vm3792, %v5074, 0.0
    %5714 = vadd.xlane.f32.xlu0 %v5713
    %v5715 = vpop.xlane.xlu0 %5714
    %v5716 = vsel %vm3792, %v5076, 0.0
    %5717 = vadd.xlane.f32.xlu0 %v5716
    %v5718 = vpop.xlane.xlu0 %5717
    %v5719 = vsel %vm3792, %v5078, 0.0
    %5720 = vadd.xlane.f32.xlu0 %v5719
    %v5721 = vpop.xlane.xlu0 %5720
    %v5722 = vsel %vm3792, %v5080, 0.0
    %5723 = vadd.xlane.f32.xlu0 %v5722
    %v5724 = vpop.xlane.xlu0 %5723
    %v5725 = vsel %vm3792, %v5082, 0.0
    %5726 = vadd.xlane.f32.xlu0 %v5725
    %v5727 = vpop.xlane.xlu0 %5726
    %v5728 = vsel %vm3792, %v5084, 0.0
    %5729 = vadd.xlane.f32.xlu0 %v5728
    %v5730 = vpop.xlane.xlu0 %5729
    %v5731 = vsel %vm3792, %v5086, 0.0
    %5732 = vadd.xlane.f32.xlu0 %v5731
    %v5733 = vpop.xlane.xlu0 %5732
    %v5734 = vsel %vm3792, %v5088, 0.0
    %5735 = vadd.xlane.f32.xlu0 %v5734
    %v5736 = vpop.xlane.xlu0 %5735
    %v5737 = vsel %vm3792, %v5090, 0.0
    %5738 = vadd.xlane.f32.xlu0 %v5737
    %v5739 = vpop.xlane.xlu0 %5738
    %v5740 = vsel %vm3792, %v5092, 0.0
    %5741 = vadd.xlane.f32.xlu0 %v5740
    %v5742 = vpop.xlane.xlu0 %5741
    %v5743 = vsel %vm3792, %v5094, 0.0
    %5744 = vadd.xlane.f32.xlu0 %v5743
    %v5745 = vpop.xlane.xlu0 %5744
    %v5746 = vsel %vm3792, %v5096, 0.0
    %5747 = vadd.xlane.f32.xlu0 %v5746
    %v5748 = vpop.xlane.xlu0 %5747
    %v5749 = vsel %vm3792, %v5098, 0.0
    %5750 = vadd.xlane.f32.xlu0 %v5749
    %v5751 = vpop.xlane.xlu0 %5750
    %v5752 = vsel %vm3792, %v5100, 0.0
    %5753 = vadd.xlane.f32.xlu0 %v5752
    %v5754 = vpop.xlane.xlu0 %5753
    %v5755 = vsel %vm3792, %v5102, 0.0
    %5756 = vadd.xlane.f32.xlu0 %v5755
    %v5757 = vpop.xlane.xlu0 %5756
    %v5758 = vsel %vm3792, %v5104, 0.0
    %5759 = vadd.xlane.f32.xlu0 %v5758
    %v5760 = vpop.xlane.xlu0 %5759
    %v5761 = vsel %vm3792, %v5106, 0.0
    %5762 = vadd.xlane.f32.xlu0 %v5761
    %v5763 = vpop.xlane.xlu0 %5762
    %v5764 = vsel %vm3792, %v5108, 0.0
    %5765 = vadd.xlane.f32.xlu0 %v5764
    %v5766 = vpop.xlane.xlu0 %5765
    %v5767 = vsel %vm3792, %v5110, 0.0
    %5768 = vadd.xlane.f32.xlu0 %v5767
    %v5769 = vpop.xlane.xlu0 %5768
    %v5770 = vsel %vm3792, %v5112, 0.0
    %5771 = vadd.xlane.f32.xlu0 %v5770
    %v5772 = vpop.xlane.xlu0 %5771
    %v5773 = vsel %vm3792, %v5114, 0.0
    %5774 = vadd.xlane.f32.xlu0 %v5773
    %v5775 = vpop.xlane.xlu0 %5774
    %v5776 = vsel %vm3792, %v5116, 0.0
    %5777 = vadd.xlane.f32.xlu0 %v5776
    %v5778 = vpop.xlane.xlu0 %5777
    %v5779 = vsel %vm3792, %v5118, 0.0
    %5780 = vadd.xlane.f32.xlu0 %v5779
    %v5781 = vpop.xlane.xlu0 %5780
    %v5782 = vsel %vm3792, %v5120, 0.0
    %5783 = vadd.xlane.f32.xlu0 %v5782
    %v5784 = vpop.xlane.xlu0 %5783
    %v5785 = vsel %vm3792, %v5122, 0.0
    %5786 = vadd.xlane.f32.xlu0 %v5785
    %v5787 = vpop.xlane.xlu0 %5786
    %v5788 = vsel %vm3792, %v5124, 0.0
    %5789 = vadd.xlane.f32.xlu0 %v5788
    %v5790 = vpop.xlane.xlu0 %5789
    %v5791 = vsel %vm3792, %v5126, 0.0
    %5792 = vadd.xlane.f32.xlu0 %v5791
    %v5793 = vpop.xlane.xlu0 %5792
    %v5794 = vsel %vm3792, %v5128, 0.0
    %5795 = vadd.xlane.f32.xlu0 %v5794
    %v5796 = vpop.xlane.xlu0 %5795
    %v5797 = vsel %vm3792, %v5130, 0.0
    %5798 = vadd.xlane.f32.xlu0 %v5797
    %v5799 = vpop.xlane.xlu0 %5798
    %v5800 = vsel %vm3792, %v5132, 0.0
    %5801 = vadd.xlane.f32.xlu0 %v5800
    %v5802 = vpop.xlane.xlu0 %5801
    %v5803 = vsel %vm3792, %v5134, 0.0
    %5804 = vadd.xlane.f32.xlu0 %v5803
    %v5805 = vpop.xlane.xlu0 %5804
    %v5806 = vsel %vm3792, %v5136, 0.0
    %5807 = vadd.xlane.f32.xlu0 %v5806
    %v5808 = vpop.xlane.xlu0 %5807
    %v5809 = vsel %vm3792, %v5138, 0.0
    %5810 = vadd.xlane.f32.xlu0 %v5809
    %v5811 = vpop.xlane.xlu0 %5810
    %v5812 = vsel %vm3792, %v5140, 0.0
    %5813 = vadd.xlane.f32.xlu0 %v5812
    %v5814 = vpop.xlane.xlu0 %5813
    %v5815 = vsel %vm3792, %v5142, 0.0
    %5816 = vadd.xlane.f32.xlu0 %v5815
    %v5817 = vpop.xlane.xlu0 %5816
    %v5818 = vsel %vm3792, %v5144, 0.0
    %5819 = vadd.xlane.f32.xlu0 %v5818
    %v5820 = vpop.xlane.xlu0 %5819
    %v5821 = vsel %vm3792, %v5146, 0.0
    %5822 = vadd.xlane.f32.xlu0 %v5821
    %v5823 = vpop.xlane.xlu0 %5822
    %v5824 = vsel %vm3792, %v5148, 0.0
    %5825 = vadd.xlane.f32.xlu0 %v5824
    %v5826 = vpop.xlane.xlu0 %5825
    %v5827 = vsel %vm3792, %v5150, 0.0
    %5828 = vadd.xlane.f32.xlu0 %v5827
    %v5829 = vpop.xlane.xlu0 %5828
    %v5830 = vsel %vm3792, %v5152, 0.0
    %5831 = vadd.xlane.f32.xlu0 %v5830
    %v5832 = vpop.xlane.xlu0 %5831
    %v5833 = vsel %vm3792, %v5154, 0.0
    %5834 = vadd.xlane.f32.xlu0 %v5833
    %v5835 = vpop.xlane.xlu0 %5834
    %v5836 = vsel %vm3792, %v5156, 0.0
    %5837 = vadd.xlane.f32.xlu0 %v5836
    %v5838 = vpop.xlane.xlu0 %5837
    %v5839 = vsel %vm3792, %v5158, 0.0
    %5840 = vadd.xlane.f32.xlu0 %v5839
    %v5841 = vpop.xlane.xlu0 %5840
    %v5842 = vsel %vm3792, %v5160, 0.0
    %5843 = vadd.xlane.f32.xlu0 %v5842
    %v5844 = vpop.xlane.xlu0 %5843
    %v5845 = vsel %vm3792, %v5162, 0.0
    %5846 = vadd.xlane.f32.xlu0 %v5845
    %v5847 = vpop.xlane.xlu0 %5846
    %v5848 = vsel %vm3792, %v5164, 0.0
    %5849 = vadd.xlane.f32.xlu0 %v5848
    %v5850 = vpop.xlane.xlu0 %5849
    %v5851 = vsel %vm3792, %v5166, 0.0
    %5852 = vadd.xlane.f32.xlu0 %v5851
    %v5853 = vpop.xlane.xlu0 %5852
    %v5854 = vsel %vm3792, %v5168, 0.0
    %5855 = vadd.xlane.f32.xlu0 %v5854
    %v5856 = vpop.xlane.xlu0 %5855
    %v5857 = vsel %vm3792, %v5170, 0.0
    %5858 = vadd.xlane.f32.xlu0 %v5857
    %v5859 = vpop.xlane.xlu0 %5858
    %v5860 = vsel %vm3792, %v5172, 0.0
    %5861 = vadd.xlane.f32.xlu0 %v5860
    %v5862 = vpop.xlane.xlu0 %5861
    %v5863 = vsel %vm3792, %v5174, 0.0
    %5864 = vadd.xlane.f32.xlu0 %v5863
    %v5865 = vpop.xlane.xlu0 %5864
    %v5866 = vsel %vm3792, %v5176, 0.0
    %5867 = vadd.xlane.f32.xlu0 %v5866
    %v5868 = vpop.xlane.xlu0 %5867
    %v5869 = vsel %vm3792, %v5178, 0.0
    %5870 = vadd.xlane.f32.xlu0 %v5869
    %v5871 = vpop.xlane.xlu0 %5870
    %v5872 = vsel %vm3792, %v5180, 0.0
    %5873 = vadd.xlane.f32.xlu0 %v5872
    %v5874 = vpop.xlane.xlu0 %5873
    %v5875 = vsel %vm3792, %v5182, 0.0
    %5876 = vadd.xlane.f32.xlu0 %v5875
    %v5877 = vpop.xlane.xlu0 %5876
    %v5878 = vsel %vm3792, %v5184, 0.0
    %5879 = vadd.xlane.f32.xlu0 %v5878
    %v5880 = vpop.xlane.xlu0 %5879
    %v5881 = vsel %vm3792, %v5186, 0.0
    %5882 = vadd.xlane.f32.xlu0 %v5881
    %v5883 = vpop.xlane.xlu0 %5882
    %v5884 = vsel %vm3792, %v5188, 0.0
    %5885 = vadd.xlane.f32.xlu0 %v5884
    %v5886 = vpop.xlane.xlu0 %5885
    %v5887 = vsel %vm3792, %v5190, 0.0
    %5888 = vadd.xlane.f32.xlu0 %v5887
    %v5889 = vpop.xlane.xlu0 %5888
    %v5890 = vsel %vm3792, %v5192, 0.0
    %5891 = vadd.xlane.f32.xlu0 %v5890
    %v5892 = vpop.xlane.xlu0 %5891
    %v5893 = vsel %vm3792, %v5194, 0.0
    %5894 = vadd.xlane.f32.xlu0 %v5893
    %v5895 = vpop.xlane.xlu0 %5894
    %v5896 = vsel %vm3792, %v5196, 0.0
    %5897 = vadd.xlane.f32.xlu0 %v5896
    %v5898 = vpop.xlane.xlu0 %5897
    %v5899 = vsel %vm3792, %v5198, 0.0
    %5900 = vadd.xlane.f32.xlu0 %v5899
    %v5901 = vpop.xlane.xlu0 %5900
    %v5902 = vsel %vm3792, %v5200, 0.0
    %5903 = vadd.xlane.f32.xlu0 %v5902
    %v5904 = vpop.xlane.xlu0 %5903
    %v5905 = vsel %vm3792, %v5202, 0.0
    %5906 = vadd.xlane.f32.xlu0 %v5905
    %v5907 = vpop.xlane.xlu0 %5906
    %v5908 = vsel %vm3792, %v5204, 0.0
    %5909 = vadd.xlane.f32.xlu0 %v5908
    %v5910 = vpop.xlane.xlu0 %5909
    %v5911 = vsel %vm3792, %v5206, 0.0
    %5912 = vadd.xlane.f32.xlu0 %v5911
    %v5913 = vpop.xlane.xlu0 %5912
    %v5914 = vsel %vm3792, %v5208, 0.0
    %5915 = vadd.xlane.f32.xlu0 %v5914
    %v5916 = vpop.xlane.xlu0 %5915
    %v5917 = vsel %vm3792, %v5210, 0.0
    %5918 = vadd.xlane.f32.xlu0 %v5917
    %v5919 = vpop.xlane.xlu0 %5918
    %v5920 = vsel %vm3792, %v5212, 0.0
    %5921 = vadd.xlane.f32.xlu0 %v5920
    %v5922 = vpop.xlane.xlu0 %5921
    %v5923 = vsel %vm3792, %v5214, 0.0
    %5924 = vadd.xlane.f32.xlu0 %v5923
    %v5925 = vpop.xlane.xlu0 %5924
    %v5926 = vsel %vm3792, %v5216, 0.0
    %5927 = vadd.xlane.f32.xlu0 %v5926
    %v5928 = vpop.xlane.xlu0 %5927
    %v5929 = vsel %vm3792, %v5218, 0.0
    %5930 = vadd.xlane.f32.xlu0 %v5929
    %v5931 = vpop.xlane.xlu0 %5930
    %v5932 = vsel %vm3792, %v5220, 0.0
    %5933 = vadd.xlane.f32.xlu0 %v5932
    %v5934 = vpop.xlane.xlu0 %5933
    %v5935 = vsel %vm3792, %v5222, 0.0
    %5936 = vadd.xlane.f32.xlu0 %v5935
    %v5937 = vpop.xlane.xlu0 %5936
    %v5938 = vsel %vm3792, %v5224, 0.0
    %5939 = vadd.xlane.f32.xlu0 %v5938
    %v5940 = vpop.xlane.xlu0 %5939
    %v5941 = vsel %vm3792, %v5226, 0.0
    %5942 = vadd.xlane.f32.xlu0 %v5941
    %v5943 = vpop.xlane.xlu0 %5942
    %v5944 = vsel %vm3792, %v5228, 0.0
    %5945 = vadd.xlane.f32.xlu0 %v5944
    %v5946 = vpop.xlane.xlu0 %5945
    %v5947 = vsel %vm3792, %v5230, 0.0
    %5948 = vadd.xlane.f32.xlu0 %v5947
    %v5949 = vpop.xlane.xlu0 %5948
    %v5950 = vsel %vm3792, %v5232, 0.0
    %5951 = vadd.xlane.f32.xlu0 %v5950
    %v5952 = vpop.xlane.xlu0 %5951
    %v5953 = vsel %vm3792, %v5234, 0.0
    %5954 = vadd.xlane.f32.xlu0 %v5953
    %v5955 = vpop.xlane.xlu0 %5954
    %v5956 = vsel %vm3792, %v5236, 0.0
    %5957 = vadd.xlane.f32.xlu0 %v5956
    %v5958 = vpop.xlane.xlu0 %5957
    %v5959 = vsel %vm3792, %v5238, 0.0
    %5960 = vadd.xlane.f32.xlu0 %v5959
    %v5961 = vpop.xlane.xlu0 %5960
    %v5962 = vsel %vm3792, %v5240, 0.0
    %5963 = vadd.xlane.f32.xlu0 %v5962
    %v5964 = vpop.xlane.xlu0 %5963
    %v5965 = vsel %vm3792, %v5242, 0.0
    %5966 = vadd.xlane.f32.xlu0 %v5965
    %v5967 = vpop.xlane.xlu0 %5966
    %v5968 = vsel %vm3792, %v5244, 0.0
    %5969 = vadd.xlane.f32.xlu0 %v5968
    %v5970 = vpop.xlane.xlu0 %5969
    %v5971 = vsel %vm3792, %v5246, 0.0
    %5972 = vadd.xlane.f32.xlu0 %v5971
    %v5973 = vpop.xlane.xlu0 %5972
    %v5974 = vsel %vm3792, %v5248, 0.0
    %5975 = vadd.xlane.f32.xlu0 %v5974
    %v5976 = vpop.xlane.xlu0 %5975
    %v5977 = vsel %vm3792, %v5250, 0.0
    %5978 = vadd.xlane.f32.xlu0 %v5977
    %v5979 = vpop.xlane.xlu0 %5978
    %v5980 = vsel %vm3792, %v5252, 0.0
    %5981 = vadd.xlane.f32.xlu0 %v5980
    %v5982 = vpop.xlane.xlu0 %5981
    %v5983 = vsel %vm3792, %v5254, 0.0
    %5984 = vadd.xlane.f32.xlu0 %v5983
    %v5985 = vpop.xlane.xlu0 %5984
    %v5986 = vsel %vm3792, %v5256, 0.0
    %5987 = vadd.xlane.f32.xlu0 %v5986
    %v5988 = vpop.xlane.xlu0 %5987
    %v5989 = vsel %vm3792, %v5258, 0.0
    %5990 = vadd.xlane.f32.xlu0 %v5989
    %v5991 = vpop.xlane.xlu0 %5990
    %v5992 = vsel %vm3792, %v5260, 0.0
    %5993 = vadd.xlane.f32.xlu0 %v5992
    %v5994 = vpop.xlane.xlu0 %5993
    %v5995 = vsel %vm3792, %v5262, 0.0
    %5996 = vadd.xlane.f32.xlu0 %v5995
    %v5997 = vpop.xlane.xlu0 %5996
    %v5998 = vsel %vm3792, %v5264, 0.0
    %5999 = vadd.xlane.f32.xlu0 %v5998
    %v6000 = vpop.xlane.xlu0 %5999
    %v6001 = vsel %vm3792, %v5266, 0.0
    %6002 = vadd.xlane.f32.xlu0 %v6001
    %v6003 = vpop.xlane.xlu0 %6002
    %v6004 = vsel %vm3792, %v5268, 0.0
    %6005 = vadd.xlane.f32.xlu0 %v6004
    %v6006 = vpop.xlane.xlu0 %6005
    %v6007 = vsel %vm3792, %v5270, 0.0
    %6008 = vadd.xlane.f32.xlu0 %v6007
    %v6009 = vpop.xlane.xlu0 %6008
    %v6010 = vsel %vm3792, %v5272, 0.0
    %6011 = vadd.xlane.f32.xlu0 %v6010
    %v6012 = vpop.xlane.xlu0 %6011
    %v6013 = vsel %vm3792, %v5274, 0.0
    %6014 = vadd.xlane.f32.xlu0 %v6013
    %v6015 = vpop.xlane.xlu0 %6014
    %v6016 = vsel %vm3792, %v5276, 0.0
    %6017 = vadd.xlane.f32.xlu0 %v6016
    %v6018 = vpop.xlane.xlu0 %6017
    %v6019 = vsel %vm3792, %v5278, 0.0
    %6020 = vadd.xlane.f32.xlu0 %v6019
    %v6021 = vpop.xlane.xlu0 %6020
    %v6022 = vsel %vm3792, %v5280, 0.0
    %6023 = vadd.xlane.f32.xlu0 %v6022
    %v6024 = vpop.xlane.xlu0 %6023
    %v6025 = vsel %vm3792, %v5282, 0.0
    %6026 = vadd.xlane.f32.xlu0 %v6025
    %v6027 = vpop.xlane.xlu0 %6026
    %v6028 = vsel %vm3792, %v5284, 0.0
    %6029 = vadd.xlane.f32.xlu0 %v6028
    %v6030 = vpop.xlane.xlu0 %6029
    %v6031 = vsel %vm3792, %v5286, 0.0
    %6032 = vadd.xlane.f32.xlu0 %v6031
    %v6033 = vpop.xlane.xlu0 %6032
    %v6034 = vsel %vm3792, %v5288, 0.0
    %6035 = vadd.xlane.f32.xlu0 %v6034
    %v6036 = vpop.xlane.xlu0 %6035
    %v6037 = vsel %vm3792, %v5290, 0.0
    %6038 = vadd.xlane.f32.xlu0 %v6037
    %v6039 = vpop.xlane.xlu0 %6038
    %v6040 = vsel %vm3792, %v5292, 0.0
    %6041 = vadd.xlane.f32.xlu0 %v6040
    %v6042 = vpop.xlane.xlu0 %6041
    %v6043 = vsel %vm3792, %v5294, 0.0
    %6044 = vadd.xlane.f32.xlu0 %v6043
    %v6045 = vpop.xlane.xlu0 %6044
    %v6046 = vsel %vm3792, %v5296, 0.0
    %6047 = vadd.xlane.f32.xlu0 %v6046
    %v6048 = vpop.xlane.xlu0 %6047
    %v6049 = vsel %vm3792, %v5298, 0.0
    %6050 = vadd.xlane.f32.xlu0 %v6049
    %v6051 = vpop.xlane.xlu0 %6050
    %v6052 = vsel %vm3792, %v5300, 0.0
    %6053 = vadd.xlane.f32.xlu0 %v6052
    %v6054 = vpop.xlane.xlu0 %6053
    %v6055 = vsel %vm3792, %v5302, 0.0
    %6056 = vadd.xlane.f32.xlu0 %v6055
    %v6057 = vpop.xlane.xlu0 %6056
    %v6058 = vsel %vm3792, %v5304, 0.0
    %6059 = vadd.xlane.f32.xlu0 %v6058
    %v6060 = vpop.xlane.xlu0 %6059
    %v6061 = vsel %vm3792, %v5306, 0.0
    %6062 = vadd.xlane.f32.xlu0 %v6061
    %v6063 = vpop.xlane.xlu0 %6062
    %v6064 = vsel %vm3792, %v5308, 0.0
    %6065 = vadd.xlane.f32.xlu0 %v6064
    %v6066 = vpop.xlane.xlu0 %6065
    %v6067 = vsel %vm3792, %v5310, 0.0
    %6068 = vadd.xlane.f32.xlu0 %v6067
    %v6069 = vpop.xlane.xlu0 %6068
    %v6070 = vsel %vm3792, %v5312, 0.0
    %6071 = vadd.xlane.f32.xlu0 %v6070
    %v6072 = vpop.xlane.xlu0 %6071
    %v6073 = vsel %vm3792, %v5314, 0.0
    %6074 = vadd.xlane.f32.xlu0 %v6073
    %v6075 = vpop.xlane.xlu0 %6074
    %v6076 = vsel %vm3792, %v5316, 0.0
    %6077 = vadd.xlane.f32.xlu0 %v6076
    %v6078 = vpop.xlane.xlu0 %6077
    %v6079 = vsel %vm3792, %v5318, 0.0
    %6080 = vadd.xlane.f32.xlu0 %v6079
    %v6081 = vpop.xlane.xlu0 %6080
    %v6082 = vsel %vm3792, %v5320, 0.0
    %6083 = vadd.xlane.f32.xlu0 %v6082
    %v6084 = vpop.xlane.xlu0 %6083
    %v6085 = vsel %vm3792, %v5322, 0.0
    %6086 = vadd.xlane.f32.xlu0 %v6085
    %v6087 = vpop.xlane.xlu0 %6086
    %v6088 = vsel %vm3792, %v5324, 0.0
    %6089 = vadd.xlane.f32.xlu0 %v6088
    %v6090 = vpop.xlane.xlu0 %6089
    %v6091 = vsel %vm3792, %v5326, 0.0
    %6092 = vadd.xlane.f32.xlu0 %v6091
    %v6093 = vpop.xlane.xlu0 %6092
    %v6094 = vsel %vm3792, %v5328, 0.0
    %6095 = vadd.xlane.f32.xlu0 %v6094
    %v6096 = vpop.xlane.xlu0 %6095
    %v6097 = vrcp.pop %v5331
    %v6098 = vrcp.pop %v5334
    %v6099 = vrcp.pop %v5337
    %v6100 = vrcp.pop %v5340
    %v6101 = vrcp.pop %v5343
    %v6102 = vrcp.pop %v5346
    %v6103 = vrcp.pop %v5349
    %v6104 = vrcp.pop %v5352
    %v6105 = vrcp.pop %v5355
    %v6106 = vrcp.pop %v5358
    %v6107 = vrcp.pop %v5361
    %v6108 = vrcp.pop %v5364
    %v6109 = vrcp.pop %v5367
    %v6110 = vrcp.pop %v5370
    %v6111 = vrcp.pop %v5373
    %v6112 = vrcp.pop %v5376
    %v6113 = vrcp.pop %v5379
    %v6114 = vrcp.pop %v5382
    %v6115 = vrcp.pop %v5385
    %v6116 = vrcp.pop %v5388
    %v6117 = vrcp.pop %v5391
    %v6118 = vrcp.pop %v5394
    %v6119 = vrcp.pop %v5397
    %v6120 = vrcp.pop %v5400
    %v6121 = vrcp.pop %v5403
    %v6122 = vrcp.pop %v5406
    %v6123 = vrcp.pop %v5409
    %v6124 = vrcp.pop %v5412
    %v6125 = vrcp.pop %v5415
    %v6126 = vrcp.pop %v5418
    %v6127 = vrcp.pop %v5421
    %v6128 = vrcp.pop %v5424
    %v6129 = vrcp.pop %v5427
    %v6130 = vrcp.pop %v5430
    %v6131 = vrcp.pop %v5433
    %v6132 = vrcp.pop %v5436
    %v6133 = vrcp.pop %v5439
    %v6134 = vrcp.pop %v5442
    %v6135 = vrcp.pop %v5445
    %v6136 = vrcp.pop %v5448
    %v6137 = vrcp.pop %v5451
    %v6138 = vrcp.pop %v5454
    %v6139 = vrcp.pop %v5457
    %v6140 = vrcp.pop %v5460
    %v6141 = vrcp.pop %v5463
    %v6142 = vrcp.pop %v5466
    %v6143 = vrcp.pop %v5469
    %v6144 = vrcp.pop %v5472
    %v6145 = vrcp.pop %v5475
    %v6146 = vrcp.pop %v5478
    %v6147 = vrcp.pop %v5481
    %v6148 = vrcp.pop %v5484
    %v6149 = vrcp.pop %v5487
    %v6150 = vrcp.pop %v5490
    %v6151 = vrcp.pop %v5493
    %v6152 = vrcp.pop %v5496
    %v6153 = vrcp.pop %v5499
    %v6154 = vrcp.pop %v5502
    %v6155 = vrcp.pop %v5505
    %v6156 = vrcp.pop %v5508
    %v6157 = vrcp.pop %v5511
    %v6158 = vrcp.pop %v5514
    %v6159 = vrcp.pop %v5517
    %v6160 = vrcp.pop %v5520
    %v6161 = vrcp.pop %v5523
    %v6162 = vrcp.pop %v5526
    %v6163 = vrcp.pop %v5529
    %v6164 = vrcp.pop %v5532
    %v6165 = vrcp.pop %v5535
    %v6166 = vrcp.pop %v5538
    %v6167 = vrcp.pop %v5541
    %v6168 = vrcp.pop %v5544
    %v6169 = vrcp.pop %v5547
    %v6170 = vrcp.pop %v5550
    %v6171 = vrcp.pop %v5553
    %v6172 = vrcp.pop %v5556
    %v6173 = vrcp.pop %v5559
    %v6174 = vrcp.pop %v5562
    %v6175 = vrcp.pop %v5565
    %v6176 = vrcp.pop %v5568
    %v6177 = vrcp.pop %v5571
    %v6178 = vrcp.pop %v5574
    %v6179 = vrcp.pop %v5577
    %v6180 = vrcp.pop %v5580
    %v6181 = vrcp.pop %v5583
    %v6182 = vrcp.pop %v5586
    %v6183 = vrcp.pop %v5589
    %v6184 = vrcp.pop %v5592
    %v6185 = vrcp.pop %v5595
    %v6186 = vrcp.pop %v5598
    %v6187 = vrcp.pop %v5601
    %v6188 = vrcp.pop %v5604
    %v6189 = vrcp.pop %v5607
    %v6190 = vrcp.pop %v5610
    %v6191 = vrcp.pop %v5613
    %v6192 = vrcp.pop %v5616
    %v6193 = vrcp.pop %v5619
    %v6194 = vrcp.pop %v5622
    %v6195 = vrcp.pop %v5625
    %v6196 = vrcp.pop %v5628
    %v6197 = vrcp.pop %v5631
    %v6198 = vrcp.pop %v5634
    %v6199 = vrcp.pop %v5637
    %v6200 = vrcp.pop %v5640
    %v6201 = vrcp.pop %v5643
    %v6202 = vrcp.pop %v5646
    %v6203 = vrcp.pop %v5649
    %v6204 = vrcp.pop %v5652
    %v6205 = vrcp.pop %v5655
    %v6206 = vrcp.pop %v5658
    %v6207 = vrcp.pop %v5661
    %v6208 = vrcp.pop %v5664
    %v6209 = vrcp.pop %v5667
    %v6210 = vrcp.pop %v5670
    %v6211 = vrcp.pop %v5673
    %v6212 = vrcp.pop %v5676
    %v6213 = vrcp.pop %v5679
    %v6214 = vrcp.pop %v5682
    %v6215 = vrcp.pop %v5685
    %v6216 = vrcp.pop %v5688
    %v6217 = vrcp.pop %v5691
    %v6218 = vrcp.pop %v5694
    %v6219 = vrcp.pop %v5697
    %v6220 = vrcp.pop %v5700
    %v6221 = vrcp.pop %v5703
    %v6222 = vrcp.pop %v5706
    %v6223 = vrcp.pop %v5709
    %v6224 = vrcp.pop %v5712
    %v6225 = vrcp.pop %v5715
    %v6226 = vrcp.pop %v5718
    %v6227 = vrcp.pop %v5721
    %v6228 = vrcp.pop %v5724
    %v6229 = vrcp.pop %v5727
    %v6230 = vrcp.pop %v5730
    %v6231 = vrcp.pop %v5733
    %v6232 = vrcp.pop %v5736
    %v6233 = vrcp.pop %v5739
    %v6234 = vrcp.pop %v5742
    %v6235 = vrcp.pop %v5745
    %v6236 = vrcp.pop %v5748
    %v6237 = vrcp.pop %v5751
    %v6238 = vrcp.pop %v5754
    %v6239 = vrcp.pop %v5757
    %v6240 = vrcp.pop %v5760
    %v6241 = vrcp.pop %v5763
    %v6242 = vrcp.pop %v5766
    %v6243 = vrcp.pop %v5769
    %v6244 = vrcp.pop %v5772
    %v6245 = vrcp.pop %v5775
    %v6246 = vrcp.pop %v5778
    %v6247 = vrcp.pop %v5781
    %v6248 = vrcp.pop %v5784
    %v6249 = vrcp.pop %v5787
    %v6250 = vrcp.pop %v5790
    %v6251 = vrcp.pop %v5793
    %v6252 = vrcp.pop %v5796
    %v6253 = vrcp.pop %v5799
    %v6254 = vrcp.pop %v5802
    %v6255 = vrcp.pop %v5805
    %v6256 = vrcp.pop %v5808
    %v6257 = vrcp.pop %v5811
    %v6258 = vrcp.pop %v5814
    %v6259 = vrcp.pop %v5817
    %v6260 = vrcp.pop %v5820
    %v6261 = vrcp.pop %v5823
    %v6262 = vrcp.pop %v5826
    %v6263 = vrcp.pop %v5829
    %v6264 = vrcp.pop %v5832
    %v6265 = vrcp.pop %v5835
    %v6266 = vrcp.pop %v5838
    %v6267 = vrcp.pop %v5841
    %v6268 = vrcp.pop %v5844
    %v6269 = vrcp.pop %v5847
    %v6270 = vrcp.pop %v5850
    %v6271 = vrcp.pop %v5853
    %v6272 = vrcp.pop %v5856
    %v6273 = vrcp.pop %v5859
    %v6274 = vrcp.pop %v5862
    %v6275 = vrcp.pop %v5865
    %v6276 = vrcp.pop %v5868
    %v6277 = vrcp.pop %v5871
    %v6278 = vrcp.pop %v5874
    %v6279 = vrcp.pop %v5877
    %v6280 = vrcp.pop %v5880
    %v6281 = vrcp.pop %v5883
    %v6282 = vrcp.pop %v5886
    %v6283 = vrcp.pop %v5889
    %v6284 = vrcp.pop %v5892
    %v6285 = vrcp.pop %v5895
    %v6286 = vrcp.pop %v5898
    %v6287 = vrcp.pop %v5901
    %v6288 = vrcp.pop %v5904
    %v6289 = vrcp.pop %v5907
    %v6290 = vrcp.pop %v5910
    %v6291 = vrcp.pop %v5913
    %v6292 = vrcp.pop %v5916
    %v6293 = vrcp.pop %v5919
    %v6294 = vrcp.pop %v5922
    %v6295 = vrcp.pop %v5925
    %v6296 = vrcp.pop %v5928
    %v6297 = vrcp.pop %v5931
    %v6298 = vrcp.pop %v5934
    %v6299 = vrcp.pop %v5937
    %v6300 = vrcp.pop %v5940
    %v6301 = vrcp.pop %v5943
    %v6302 = vrcp.pop %v5946
    %v6303 = vrcp.pop %v5949
    %v6304 = vrcp.pop %v5952
    %v6305 = vrcp.pop %v5955
    %v6306 = vrcp.pop %v5958
    %v6307 = vrcp.pop %v5961
    %v6308 = vrcp.pop %v5964
    %v6309 = vrcp.pop %v5967
    %v6310 = vrcp.pop %v5970
    %v6311 = vrcp.pop %v5973
    %v6312 = vrcp.pop %v5976
    %v6313 = vrcp.pop %v5979
    %v6314 = vrcp.pop %v5982
    %v6315 = vrcp.pop %v5985
    %v6316 = vrcp.pop %v5988
    %v6317 = vrcp.pop %v5991
    %v6318 = vrcp.pop %v5994
    %v6319 = vrcp.pop %v5997
    %v6320 = vrcp.pop %v6000
    %v6321 = vrcp.pop %v6003
    %v6322 = vrcp.pop %v6006
    %v6323 = vrcp.pop %v6009
    %v6324 = vrcp.pop %v6012
    %v6325 = vrcp.pop %v6015
    %v6326 = vrcp.pop %v6018
    %v6327 = vrcp.pop %v6021
    %v6328 = vrcp.pop %v6024
    %v6329 = vrcp.pop %v6027
    %v6330 = vrcp.pop %v6030
    %v6331 = vrcp.pop %v6033
    %v6332 = vrcp.pop %v6036
    %v6333 = vrcp.pop %v6039
    %v6334 = vrcp.pop %v6042
    %v6335 = vrcp.pop %v6045
    %v6336 = vrcp.pop %v6048
    %v6337 = vrcp.pop %v6051
    %v6338 = vrcp.pop %v6054
    %v6339 = vrcp.pop %v6057
    %v6340 = vrcp.pop %v6060
    %v6341 = vrcp.pop %v6063
    %v6342 = vrcp.pop %v6066
    %v6343 = vrcp.pop %v6069
    %v6344 = vrcp.pop %v6072
    %v6345 = vrcp.pop %v6075
    %v6346 = vrcp.pop %v6078
    %v6347 = vrcp.pop %v6081
    %v6348 = vrcp.pop %v6084
    %v6349 = vrcp.pop %v6087
    %v6350 = vrcp.pop %v6090
    %v6351 = vrcp.pop %v6093
    %v6352 = vrcp.pop %v6096
    %v6353 = vmul.f32 %v4818, %v6097
    %v6354 = vmul.f32 %v4820, %v6098
    %v6355 = vmul.f32 %v4822, %v6099
    %v6356 = vmul.f32 %v4824, %v6100
    %v6357 = vmul.f32 %v4826, %v6101
    %v6358 = vmul.f32 %v4828, %v6102
    %v6359 = vmul.f32 %v4830, %v6103
    %v6360 = vmul.f32 %v4832, %v6104
    %v6361 = vmul.f32 %v4834, %v6105
    %v6362 = vmul.f32 %v4836, %v6106
    %v6363 = vmul.f32 %v4838, %v6107
    %v6364 = vmul.f32 %v4840, %v6108
    %v6365 = vmul.f32 %v4842, %v6109
    %v6366 = vmul.f32 %v4844, %v6110
    %v6367 = vmul.f32 %v4846, %v6111
    %v6368 = vmul.f32 %v4848, %v6112
    %v6369 = vmul.f32 %v4850, %v6113
    %v6370 = vmul.f32 %v4852, %v6114
    %v6371 = vmul.f32 %v4854, %v6115
    %v6372 = vmul.f32 %v4856, %v6116
    %v6373 = vmul.f32 %v4858, %v6117
    %v6374 = vmul.f32 %v4860, %v6118
    %v6375 = vmul.f32 %v4862, %v6119
    %v6376 = vmul.f32 %v4864, %v6120
    %v6377 = vmul.f32 %v4866, %v6121
    %v6378 = vmul.f32 %v4868, %v6122
    %v6379 = vmul.f32 %v4870, %v6123
    %v6380 = vmul.f32 %v4872, %v6124
    %v6381 = vmul.f32 %v4874, %v6125
    %v6382 = vmul.f32 %v4876, %v6126
    %v6383 = vmul.f32 %v4878, %v6127
    %v6384 = vmul.f32 %v4880, %v6128
    %v6385 = vmul.f32 %v4882, %v6129
    %v6386 = vmul.f32 %v4884, %v6130
    %v6387 = vmul.f32 %v4886, %v6131
    %v6388 = vmul.f32 %v4888, %v6132
    %v6389 = vmul.f32 %v4890, %v6133
    %v6390 = vmul.f32 %v4892, %v6134
    %v6391 = vmul.f32 %v4894, %v6135
    %v6392 = vmul.f32 %v4896, %v6136
    %v6393 = vmul.f32 %v4898, %v6137
    %v6394 = vmul.f32 %v4900, %v6138
    %v6395 = vmul.f32 %v4902, %v6139
    %v6396 = vmul.f32 %v4904, %v6140
    %v6397 = vmul.f32 %v4906, %v6141
    %v6398 = vmul.f32 %v4908, %v6142
    %v6399 = vmul.f32 %v4910, %v6143
    %v6400 = vmul.f32 %v4912, %v6144
    %v6401 = vmul.f32 %v4914, %v6145
    %v6402 = vmul.f32 %v4916, %v6146
    %v6403 = vmul.f32 %v4918, %v6147
    %v6404 = vmul.f32 %v4920, %v6148
    %v6405 = vmul.f32 %v4922, %v6149
    %v6406 = vmul.f32 %v4924, %v6150
    %v6407 = vmul.f32 %v4926, %v6151
    %v6408 = vmul.f32 %v4928, %v6152
    %v6409 = vmul.f32 %v4930, %v6153
    %v6410 = vmul.f32 %v4932, %v6154
    %v6411 = vmul.f32 %v4934, %v6155
    %v6412 = vmul.f32 %v4936, %v6156
    %v6413 = vmul.f32 %v4938, %v6157
    %v6414 = vmul.f32 %v4940, %v6158
    %v6415 = vmul.f32 %v4942, %v6159
    %v6416 = vmul.f32 %v4944, %v6160
    %v6417 = vmul.f32 %v4946, %v6161
    %v6418 = vmul.f32 %v4948, %v6162
    %v6419 = vmul.f32 %v4950, %v6163
    %v6420 = vmul.f32 %v4952, %v6164
    %v6421 = vmul.f32 %v4954, %v6165
    %v6422 = vmul.f32 %v4956, %v6166
    %v6423 = vmul.f32 %v4958, %v6167
    %v6424 = vmul.f32 %v4960, %v6168
    %v6425 = vmul.f32 %v4962, %v6169
    %v6426 = vmul.f32 %v4964, %v6170
    %v6427 = vmul.f32 %v4966, %v6171
    %v6428 = vmul.f32 %v4968, %v6172
    %v6429 = vmul.f32 %v4970, %v6173
    %v6430 = vmul.f32 %v4972, %v6174
    %v6431 = vmul.f32 %v4974, %v6175
    %v6432 = vmul.f32 %v4976, %v6176
    %v6433 = vmul.f32 %v4978, %v6177
    %v6434 = vmul.f32 %v4980, %v6178
    %v6435 = vmul.f32 %v4982, %v6179
    %v6436 = vmul.f32 %v4984, %v6180
    %v6437 = vmul.f32 %v4986, %v6181
    %v6438 = vmul.f32 %v4988, %v6182
    %v6439 = vmul.f32 %v4990, %v6183
    %v6440 = vmul.f32 %v4992, %v6184
    %v6441 = vmul.f32 %v4994, %v6185
    %v6442 = vmul.f32 %v4996, %v6186
    %v6443 = vmul.f32 %v4998, %v6187
    %v6444 = vmul.f32 %v5000, %v6188
    %v6445 = vmul.f32 %v5002, %v6189
    %v6446 = vmul.f32 %v5004, %v6190
    %v6447 = vmul.f32 %v5006, %v6191
    %v6448 = vmul.f32 %v5008, %v6192
    %v6449 = vmul.f32 %v5010, %v6193
    %v6450 = vmul.f32 %v5012, %v6194
    %v6451 = vmul.f32 %v5014, %v6195
    %v6452 = vmul.f32 %v5016, %v6196
    %v6453 = vmul.f32 %v5018, %v6197
    %v6454 = vmul.f32 %v5020, %v6198
    %v6455 = vmul.f32 %v5022, %v6199
    %v6456 = vmul.f32 %v5024, %v6200
    %v6457 = vmul.f32 %v5026, %v6201
    %v6458 = vmul.f32 %v5028, %v6202
    %v6459 = vmul.f32 %v5030, %v6203
    %v6460 = vmul.f32 %v5032, %v6204
    %v6461 = vmul.f32 %v5034, %v6205
    %v6462 = vmul.f32 %v5036, %v6206
    %v6463 = vmul.f32 %v5038, %v6207
    %v6464 = vmul.f32 %v5040, %v6208
    %v6465 = vmul.f32 %v5042, %v6209
    %v6466 = vmul.f32 %v5044, %v6210
    %v6467 = vmul.f32 %v5046, %v6211
    %v6468 = vmul.f32 %v5048, %v6212
    %v6469 = vmul.f32 %v5050, %v6213
    %v6470 = vmul.f32 %v5052, %v6214
    %v6471 = vmul.f32 %v5054, %v6215
    %v6472 = vmul.f32 %v5056, %v6216
    %v6473 = vmul.f32 %v5058, %v6217
    %v6474 = vmul.f32 %v5060, %v6218
    %v6475 = vmul.f32 %v5062, %v6219
    %v6476 = vmul.f32 %v5064, %v6220
    %v6477 = vmul.f32 %v5066, %v6221
    %v6478 = vmul.f32 %v5068, %v6222
    %v6479 = vmul.f32 %v5070, %v6223
    %v6480 = vmul.f32 %v5072, %v6224
    %v6481 = vmul.f32 %v5074, %v6225
    %v6482 = vmul.f32 %v5076, %v6226
    %v6483 = vmul.f32 %v5078, %v6227
    %v6484 = vmul.f32 %v5080, %v6228
    %v6485 = vmul.f32 %v5082, %v6229
    %v6486 = vmul.f32 %v5084, %v6230
    %v6487 = vmul.f32 %v5086, %v6231
    %v6488 = vmul.f32 %v5088, %v6232
    %v6489 = vmul.f32 %v5090, %v6233
    %v6490 = vmul.f32 %v5092, %v6234
    %v6491 = vmul.f32 %v5094, %v6235
    %v6492 = vmul.f32 %v5096, %v6236
    %v6493 = vmul.f32 %v5098, %v6237
    %v6494 = vmul.f32 %v5100, %v6238
    %v6495 = vmul.f32 %v5102, %v6239
    %v6496 = vmul.f32 %v5104, %v6240
    %v6497 = vmul.f32 %v5106, %v6241
    %v6498 = vmul.f32 %v5108, %v6242
    %v6499 = vmul.f32 %v5110, %v6243
    %v6500 = vmul.f32 %v5112, %v6244
    %v6501 = vmul.f32 %v5114, %v6245
    %v6502 = vmul.f32 %v5116, %v6246
    %v6503 = vmul.f32 %v5118, %v6247
    %v6504 = vmul.f32 %v5120, %v6248
    %v6505 = vmul.f32 %v5122, %v6249
    %v6506 = vmul.f32 %v5124, %v6250
    %v6507 = vmul.f32 %v5126, %v6251
    %v6508 = vmul.f32 %v5128, %v6252
    %v6509 = vmul.f32 %v5130, %v6253
    %v6510 = vmul.f32 %v5132, %v6254
    %v6511 = vmul.f32 %v5134, %v6255
    %v6512 = vmul.f32 %v5136, %v6256
    %v6513 = vmul.f32 %v5138, %v6257
    %v6514 = vmul.f32 %v5140, %v6258
    %v6515 = vmul.f32 %v5142, %v6259
    %v6516 = vmul.f32 %v5144, %v6260
    %v6517 = vmul.f32 %v5146, %v6261
    %v6518 = vmul.f32 %v5148, %v6262
    %v6519 = vmul.f32 %v5150, %v6263
    %v6520 = vmul.f32 %v5152, %v6264
    %v6521 = vmul.f32 %v5154, %v6265
    %v6522 = vmul.f32 %v5156, %v6266
    %v6523 = vmul.f32 %v5158, %v6267
    %v6524 = vmul.f32 %v5160, %v6268
    %v6525 = vmul.f32 %v5162, %v6269
    %v6526 = vmul.f32 %v5164, %v6270
    %v6527 = vmul.f32 %v5166, %v6271
    %v6528 = vmul.f32 %v5168, %v6272
    %v6529 = vmul.f32 %v5170, %v6273
    %v6530 = vmul.f32 %v5172, %v6274
    %v6531 = vmul.f32 %v5174, %v6275
    %v6532 = vmul.f32 %v5176, %v6276
    %v6533 = vmul.f32 %v5178, %v6277
    %v6534 = vmul.f32 %v5180, %v6278
    %v6535 = vmul.f32 %v5182, %v6279
    %v6536 = vmul.f32 %v5184, %v6280
    %v6537 = vmul.f32 %v5186, %v6281
    %v6538 = vmul.f32 %v5188, %v6282
    %v6539 = vmul.f32 %v5190, %v6283
    %v6540 = vmul.f32 %v5192, %v6284
    %v6541 = vmul.f32 %v5194, %v6285
    %v6542 = vmul.f32 %v5196, %v6286
    %v6543 = vmul.f32 %v5198, %v6287
    %v6544 = vmul.f32 %v5200, %v6288
    %v6545 = vmul.f32 %v5202, %v6289
    %v6546 = vmul.f32 %v5204, %v6290
    %v6547 = vmul.f32 %v5206, %v6291
    %v6548 = vmul.f32 %v5208, %v6292
    %v6549 = vmul.f32 %v5210, %v6293
    %v6550 = vmul.f32 %v5212, %v6294
    %v6551 = vmul.f32 %v5214, %v6295
    %v6552 = vmul.f32 %v5216, %v6296
    %v6553 = vmul.f32 %v5218, %v6297
    %v6554 = vmul.f32 %v5220, %v6298
    %v6555 = vmul.f32 %v5222, %v6299
    %v6556 = vmul.f32 %v5224, %v6300
    %v6557 = vmul.f32 %v5226, %v6301
    %v6558 = vmul.f32 %v5228, %v6302
    %v6559 = vmul.f32 %v5230, %v6303
    %v6560 = vmul.f32 %v5232, %v6304
    %v6561 = vmul.f32 %v5234, %v6305
    %v6562 = vmul.f32 %v5236, %v6306
    %v6563 = vmul.f32 %v5238, %v6307
    %v6564 = vmul.f32 %v5240, %v6308
    %v6565 = vmul.f32 %v5242, %v6309
    %v6566 = vmul.f32 %v5244, %v6310
    %v6567 = vmul.f32 %v5246, %v6311
    %v6568 = vmul.f32 %v5248, %v6312
    %v6569 = vmul.f32 %v5250, %v6313
    %v6570 = vmul.f32 %v5252, %v6314
    %v6571 = vmul.f32 %v5254, %v6315
    %v6572 = vmul.f32 %v5256, %v6316
    %v6573 = vmul.f32 %v5258, %v6317
    %v6574 = vmul.f32 %v5260, %v6318
    %v6575 = vmul.f32 %v5262, %v6319
    %v6576 = vmul.f32 %v5264, %v6320
    %v6577 = vmul.f32 %v5266, %v6321
    %v6578 = vmul.f32 %v5268, %v6322
    %v6579 = vmul.f32 %v5270, %v6323
    %v6580 = vmul.f32 %v5272, %v6324
    %v6581 = vmul.f32 %v5274, %v6325
    %v6582 = vmul.f32 %v5276, %v6326
    %v6583 = vmul.f32 %v5278, %v6327
    %v6584 = vmul.f32 %v5280, %v6328
    %v6585 = vmul.f32 %v5282, %v6329
    %v6586 = vmul.f32 %v5284, %v6330
    %v6587 = vmul.f32 %v5286, %v6331
    %v6588 = vmul.f32 %v5288, %v6332
    %v6589 = vmul.f32 %v5290, %v6333
    %v6590 = vmul.f32 %v5292, %v6334
    %v6591 = vmul.f32 %v5294, %v6335
    %v6592 = vmul.f32 %v5296, %v6336
    %v6593 = vmul.f32 %v5298, %v6337
    %v6594 = vmul.f32 %v5300, %v6338
    %v6595 = vmul.f32 %v5302, %v6339
    %v6596 = vmul.f32 %v5304, %v6340
    %v6597 = vmul.f32 %v5306, %v6341
    %v6598 = vmul.f32 %v5308, %v6342
    %v6599 = vmul.f32 %v5310, %v6343
    %v6600 = vmul.f32 %v5312, %v6344
    %v6601 = vmul.f32 %v5314, %v6345
    %v6602 = vmul.f32 %v5316, %v6346
    %v6603 = vmul.f32 %v5318, %v6347
    %v6604 = vmul.f32 %v5320, %v6348
    %v6605 = vmul.f32 %v5322, %v6349
    %v6606 = vmul.f32 %v5324, %v6350
    %v6607 = vmul.f32 %v5326, %v6351
    %v6608 = vmul.f32 %v5328, %v6352
    %6609 = vst [vmem:[#allocation5] sm:$0xf] %v6353
    %6610 = vst [vmem:[#allocation5 + $0x4] sm:$0xf] %v6354
    %6611 = vst [vmem:[#allocation5 + $0x8] sm:$0xf] %v6355
    %6612 = vst [vmem:[#allocation5 + $0xc] sm:$0xf] %v6356
    %6613 = vst [vmem:[#allocation5 + $0x10] sm:$0xf] %v6357
    %6614 = vst [vmem:[#allocation5 + $0x14] sm:$0xf] %v6358
    %6615 = vst [vmem:[#allocation5 + $0x18] sm:$0xf] %v6359
    %6616 = vst [vmem:[#allocation5 + $0x1c] sm:$0xf] %v6360
    %6617 = vst [vmem:[#allocation5 + $0x20] sm:$0xf] %v6361
    %6618 = vst [vmem:[#allocation5 + $0x24] sm:$0xf] %v6362
    %6619 = vst [vmem:[#allocation5 + $0x28] sm:$0xf] %v6363
    %6620 = vst [vmem:[#allocation5 + $0x2c] sm:$0xf] %v6364
    %6621 = vst [vmem:[#allocation5 + $0x30] sm:$0xf] %v6365
    %6622 = vst [vmem:[#allocation5 + $0x34] sm:$0xf] %v6366
    %6623 = vst [vmem:[#allocation5 + $0x38] sm:$0xf] %v6367
    %6624 = vst [vmem:[#allocation5 + $0x3c] sm:$0xf] %v6368
    %6625 = vst [vmem:[#allocation5 + $0x40] sm:$0xf] %v6369
    %6626 = vst [vmem:[#allocation5 + $0x44] sm:$0xf] %v6370
    %6627 = vst [vmem:[#allocation5 + $0x48] sm:$0xf] %v6371
    %6628 = vst [vmem:[#allocation5 + $0x4c] sm:$0xf] %v6372
    %6629 = vst [vmem:[#allocation5 + $0x50] sm:$0xf] %v6373
    %6630 = vst [vmem:[#allocation5 + $0x54] sm:$0xf] %v6374
    %6631 = vst [vmem:[#allocation5 + $0x58] sm:$0xf] %v6375
    %6632 = vst [vmem:[#allocation5 + $0x5c] sm:$0xf] %v6376
    %6633 = vst [vmem:[#allocation5 + $0x60] sm:$0xf] %v6377
    %6634 = vst [vmem:[#allocation5 + $0x64] sm:$0xf] %v6378
    %6635 = vst [vmem:[#allocation5 + $0x68] sm:$0xf] %v6379
    %6636 = vst [vmem:[#allocation5 + $0x6c] sm:$0xf] %v6380
    %6637 = vst [vmem:[#allocation5 + $0x70] sm:$0xf] %v6381
    %6638 = vst [vmem:[#allocation5 + $0x74] sm:$0xf] %v6382
    %6639 = vst [vmem:[#allocation5 + $0x78] sm:$0xf] %v6383
    %6640 = vst [vmem:[#allocation5 + $0x7c] sm:$0xf] %v6384
    %6641 = vst [vmem:[#allocation5 + $0x80] sm:$0xf] %v6385
    %6642 = vst [vmem:[#allocation5 + $0x84] sm:$0xf] %v6386
    %6643 = vst [vmem:[#allocation5 + $0x88] sm:$0xf] %v6387
    %6644 = vst [vmem:[#allocation5 + $0x8c] sm:$0xf] %v6388
    %6645 = vst [vmem:[#allocation5 + $0x90] sm:$0xf] %v6389
    %6646 = vst [vmem:[#allocation5 + $0x94] sm:$0xf] %v6390
    %6647 = vst [vmem:[#allocation5 + $0x98] sm:$0xf] %v6391
    %6648 = vst [vmem:[#allocation5 + $0x9c] sm:$0xf] %v6392
    %6649 = vst [vmem:[#allocation5 + $0xa0] sm:$0xf] %v6393
    %6650 = vst [vmem:[#allocation5 + $0xa4] sm:$0xf] %v6394
    %6651 = vst [vmem:[#allocation5 + $0xa8] sm:$0xf] %v6395
    %6652 = vst [vmem:[#allocation5 + $0xac] sm:$0xf] %v6396
    %6653 = vst [vmem:[#allocation5 + $0xb0] sm:$0xf] %v6397
    %6654 = vst [vmem:[#allocation5 + $0xb4] sm:$0xf] %v6398
    %6655 = vst [vmem:[#allocation5 + $0xb8] sm:$0xf] %v6399
    %6656 = vst [vmem:[#allocation5 + $0xbc] sm:$0xf] %v6400
    %6657 = vst [vmem:[#allocation5 + $0xc0] sm:$0xf] %v6401
    %6658 = vst [vmem:[#allocation5 + $0xc4] sm:$0xf] %v6402
    %6659 = vst [vmem:[#allocation5 + $0xc8] sm:$0xf] %v6403
    %6660 = vst [vmem:[#allocation5 + $0xcc] sm:$0xf] %v6404
    %6661 = vst [vmem:[#allocation5 + $0xd0] sm:$0xf] %v6405
    %6662 = vst [vmem:[#allocation5 + $0xd4] sm:$0xf] %v6406
    %6663 = vst [vmem:[#allocation5 + $0xd8] sm:$0xf] %v6407
    %6664 = vst [vmem:[#allocation5 + $0xdc] sm:$0xf] %v6408
    %6665 = vst [vmem:[#allocation5 + $0xe0] sm:$0xf] %v6409
    %6666 = vst [vmem:[#allocation5 + $0xe4] sm:$0xf] %v6410
    %6667 = vst [vmem:[#allocation5 + $0xe8] sm:$0xf] %v6411
    %6668 = vst [vmem:[#allocation5 + $0xec] sm:$0xf] %v6412
    %6669 = vst [vmem:[#allocation5 + $0xf0] sm:$0xf] %v6413
    %6670 = vst [vmem:[#allocation5 + $0xf4] sm:$0xf] %v6414
    %6671 = vst [vmem:[#allocation5 + $0xf8] sm:$0xf] %v6415
    %6672 = vst [vmem:[#allocation5 + $0xfc] sm:$0xf] %v6416
    %6673 = vst [vmem:[#allocation5 + $0x100] sm:$0xf] %v6417
    %6674 = vst [vmem:[#allocation5 + $0x104] sm:$0xf] %v6418
    %6675 = vst [vmem:[#allocation5 + $0x108] sm:$0xf] %v6419
    %6676 = vst [vmem:[#allocation5 + $0x10c] sm:$0xf] %v6420
    %6677 = vst [vmem:[#allocation5 + $0x110] sm:$0xf] %v6421
    %6678 = vst [vmem:[#allocation5 + $0x114] sm:$0xf] %v6422
    %6679 = vst [vmem:[#allocation5 + $0x118] sm:$0xf] %v6423
    %6680 = vst [vmem:[#allocation5 + $0x11c] sm:$0xf] %v6424
    %6681 = vst [vmem:[#allocation5 + $0x120] sm:$0xf] %v6425
    %6682 = vst [vmem:[#allocation5 + $0x124] sm:$0xf] %v6426
    %6683 = vst [vmem:[#allocation5 + $0x128] sm:$0xf] %v6427
    %6684 = vst [vmem:[#allocation5 + $0x12c] sm:$0xf] %v6428
    %6685 = vst [vmem:[#allocation5 + $0x130] sm:$0xf] %v6429
    %6686 = vst [vmem:[#allocation5 + $0x134] sm:$0xf] %v6430
    %6687 = vst [vmem:[#allocation5 + $0x138] sm:$0xf] %v6431
    %6688 = vst [vmem:[#allocation5 + $0x13c] sm:$0xf] %v6432
    %6689 = vst [vmem:[#allocation5 + $0x140] sm:$0xf] %v6433
    %6690 = vst [vmem:[#allocation5 + $0x144] sm:$0xf] %v6434
    %6691 = vst [vmem:[#allocation5 + $0x148] sm:$0xf] %v6435
    %6692 = vst [vmem:[#allocation5 + $0x14c] sm:$0xf] %v6436
    %6693 = vst [vmem:[#allocation5 + $0x150] sm:$0xf] %v6437
    %6694 = vst [vmem:[#allocation5 + $0x154] sm:$0xf] %v6438
    %6695 = vst [vmem:[#allocation5 + $0x158] sm:$0xf] %v6439
    %6696 = vst [vmem:[#allocation5 + $0x15c] sm:$0xf] %v6440
    %6697 = vst [vmem:[#allocation5 + $0x160] sm:$0xf] %v6441
    %6698 = vst [vmem:[#allocation5 + $0x164] sm:$0xf] %v6442
    %6699 = vst [vmem:[#allocation5 + $0x168] sm:$0xf] %v6443
    %6700 = vst [vmem:[#allocation5 + $0x16c] sm:$0xf] %v6444
    %6701 = vst [vmem:[#allocation5 + $0x170] sm:$0xf] %v6445
    %6702 = vst [vmem:[#allocation5 + $0x174] sm:$0xf] %v6446
    %6703 = vst [vmem:[#allocation5 + $0x178] sm:$0xf] %v6447
    %6704 = vst [vmem:[#allocation5 + $0x17c] sm:$0xf] %v6448
    %6705 = vst [vmem:[#allocation5 + $0x180] sm:$0xf] %v6449
    %6706 = vst [vmem:[#allocation5 + $0x184] sm:$0xf] %v6450
    %6707 = vst [vmem:[#allocation5 + $0x188] sm:$0xf] %v6451
    %6708 = vst [vmem:[#allocation5 + $0x18c] sm:$0xf] %v6452
    %6709 = vst [vmem:[#allocation5 + $0x190] sm:$0xf] %v6453
    %6710 = vst [vmem:[#allocation5 + $0x194] sm:$0xf] %v6454
    %6711 = vst [vmem:[#allocation5 + $0x198] sm:$0xf] %v6455
    %6712 = vst [vmem:[#allocation5 + $0x19c] sm:$0xf] %v6456
    %6713 = vst [vmem:[#allocation5 + $0x1a0] sm:$0xf] %v6457
    %6714 = vst [vmem:[#allocation5 + $0x1a4] sm:$0xf] %v6458
    %6715 = vst [vmem:[#allocation5 + $0x1a8] sm:$0xf] %v6459
    %6716 = vst [vmem:[#allocation5 + $0x1ac] sm:$0xf] %v6460
    %6717 = vst [vmem:[#allocation5 + $0x1b0] sm:$0xf] %v6461
    %6718 = vst [vmem:[#allocation5 + $0x1b4] sm:$0xf] %v6462
    %6719 = vst [vmem:[#allocation5 + $0x1b8] sm:$0xf] %v6463
    %6720 = vst [vmem:[#allocation5 + $0x1bc] sm:$0xf] %v6464
    %6721 = vst [vmem:[#allocation5 + $0x1c0] sm:$0xf] %v6465
    %6722 = vst [vmem:[#allocation5 + $0x1c4] sm:$0xf] %v6466
    %6723 = vst [vmem:[#allocation5 + $0x1c8] sm:$0xf] %v6467
    %6724 = vst [vmem:[#allocation5 + $0x1cc] sm:$0xf] %v6468
    %6725 = vst [vmem:[#allocation5 + $0x1d0] sm:$0xf] %v6469
    %6726 = vst [vmem:[#allocation5 + $0x1d4] sm:$0xf] %v6470
    %6727 = vst [vmem:[#allocation5 + $0x1d8] sm:$0xf] %v6471
    %6728 = vst [vmem:[#allocation5 + $0x1dc] sm:$0xf] %v6472
    %6729 = vst [vmem:[#allocation5 + $0x1e0] sm:$0xf] %v6473
    %6730 = vst [vmem:[#allocation5 + $0x1e4] sm:$0xf] %v6474
    %6731 = vst [vmem:[#allocation5 + $0x1e8] sm:$0xf] %v6475
    %6732 = vst [vmem:[#allocation5 + $0x1ec] sm:$0xf] %v6476
    %6733 = vst [vmem:[#allocation5 + $0x1f0] sm:$0xf] %v6477
    %6734 = vst [vmem:[#allocation5 + $0x1f4] sm:$0xf] %v6478
    %6735 = vst [vmem:[#allocation5 + $0x1f8] sm:$0xf] %v6479
    %6736 = vst [vmem:[#allocation5 + $0x1fc] sm:$0xf] %v6480
    %6737 = vst [vmem:[#allocation5 + $0x200] sm:$0xf] %v6481
    %6738 = vst [vmem:[#allocation5 + $0x204] sm:$0xf] %v6482
    %6739 = vst [vmem:[#allocation5 + $0x208] sm:$0xf] %v6483
    %6740 = vst [vmem:[#allocation5 + $0x20c] sm:$0xf] %v6484
    %6741 = vst [vmem:[#allocation5 + $0x210] sm:$0xf] %v6485
    %6742 = vst [vmem:[#allocation5 + $0x214] sm:$0xf] %v6486
    %6743 = vst [vmem:[#allocation5 + $0x218] sm:$0xf] %v6487
    %6744 = vst [vmem:[#allocation5 + $0x21c] sm:$0xf] %v6488
    %6745 = vst [vmem:[#allocation5 + $0x220] sm:$0xf] %v6489
    %6746 = vst [vmem:[#allocation5 + $0x224] sm:$0xf] %v6490
    %6747 = vst [vmem:[#allocation5 + $0x228] sm:$0xf] %v6491
    %6748 = vst [vmem:[#allocation5 + $0x22c] sm:$0xf] %v6492
    %6749 = vst [vmem:[#allocation5 + $0x230] sm:$0xf] %v6493
    %6750 = vst [vmem:[#allocation5 + $0x234] sm:$0xf] %v6494
    %6751 = vst [vmem:[#allocation5 + $0x238] sm:$0xf] %v6495
    %6752 = vst [vmem:[#allocation5 + $0x23c] sm:$0xf] %v6496
    %6753 = vst [vmem:[#allocation5 + $0x240] sm:$0xf] %v6497
    %6754 = vst [vmem:[#allocation5 + $0x244] sm:$0xf] %v6498
    %6755 = vst [vmem:[#allocation5 + $0x248] sm:$0xf] %v6499
    %6756 = vst [vmem:[#allocation5 + $0x24c] sm:$0xf] %v6500
    %6757 = vst [vmem:[#allocation5 + $0x250] sm:$0xf] %v6501
    %6758 = vst [vmem:[#allocation5 + $0x254] sm:$0xf] %v6502
    %6759 = vst [vmem:[#allocation5 + $0x258] sm:$0xf] %v6503
    %6760 = vst [vmem:[#allocation5 + $0x25c] sm:$0xf] %v6504
    %6761 = vst [vmem:[#allocation5 + $0x260] sm:$0xf] %v6505
    %6762 = vst [vmem:[#allocation5 + $0x264] sm:$0xf] %v6506
    %6763 = vst [vmem:[#allocation5 + $0x268] sm:$0xf] %v6507
    %6764 = vst [vmem:[#allocation5 + $0x26c] sm:$0xf] %v6508
    %6765 = vst [vmem:[#allocation5 + $0x270] sm:$0xf] %v6509
    %6766 = vst [vmem:[#allocation5 + $0x274] sm:$0xf] %v6510
    %6767 = vst [vmem:[#allocation5 + $0x278] sm:$0xf] %v6511
    %6768 = vst [vmem:[#allocation5 + $0x27c] sm:$0xf] %v6512
    %6769 = vst [vmem:[#allocation5 + $0x280] sm:$0xf] %v6513
    %6770 = vst [vmem:[#allocation5 + $0x284] sm:$0xf] %v6514
    %6771 = vst [vmem:[#allocation5 + $0x288] sm:$0xf] %v6515
    %6772 = vst [vmem:[#allocation5 + $0x28c] sm:$0xf] %v6516
    %6773 = vst [vmem:[#allocation5 + $0x290] sm:$0xf] %v6517
    %6774 = vst [vmem:[#allocation5 + $0x294] sm:$0xf] %v6518
    %6775 = vst [vmem:[#allocation5 + $0x298] sm:$0xf] %v6519
    %6776 = vst [vmem:[#allocation5 + $0x29c] sm:$0xf] %v6520
    %6777 = vst [vmem:[#allocation5 + $0x2a0] sm:$0xf] %v6521
    %6778 = vst [vmem:[#allocation5 + $0x2a4] sm:$0xf] %v6522
    %6779 = vst [vmem:[#allocation5 + $0x2a8] sm:$0xf] %v6523
    %6780 = vst [vmem:[#allocation5 + $0x2ac] sm:$0xf] %v6524
    %6781 = vst [vmem:[#allocation5 + $0x2b0] sm:$0xf] %v6525
    %6782 = vst [vmem:[#allocation5 + $0x2b4] sm:$0xf] %v6526
    %6783 = vst [vmem:[#allocation5 + $0x2b8] sm:$0xf] %v6527
    %6784 = vst [vmem:[#allocation5 + $0x2bc] sm:$0xf] %v6528
    %6785 = vst [vmem:[#allocation5 + $0x2c0] sm:$0xf] %v6529
    %6786 = vst [vmem:[#allocation5 + $0x2c4] sm:$0xf] %v6530
    %6787 = vst [vmem:[#allocation5 + $0x2c8] sm:$0xf] %v6531
    %6788 = vst [vmem:[#allocation5 + $0x2cc] sm:$0xf] %v6532
    %6789 = vst [vmem:[#allocation5 + $0x2d0] sm:$0xf] %v6533
    %6790 = vst [vmem:[#allocation5 + $0x2d4] sm:$0xf] %v6534
    %6791 = vst [vmem:[#allocation5 + $0x2d8] sm:$0xf] %v6535
    %6792 = vst [vmem:[#allocation5 + $0x2dc] sm:$0xf] %v6536
    %6793 = vst [vmem:[#allocation5 + $0x2e0] sm:$0xf] %v6537
    %6794 = vst [vmem:[#allocation5 + $0x2e4] sm:$0xf] %v6538
    %6795 = vst [vmem:[#allocation5 + $0x2e8] sm:$0xf] %v6539
    %6796 = vst [vmem:[#allocation5 + $0x2ec] sm:$0xf] %v6540
    %6797 = vst [vmem:[#allocation5 + $0x2f0] sm:$0xf] %v6541
    %6798 = vst [vmem:[#allocation5 + $0x2f4] sm:$0xf] %v6542
    %6799 = vst [vmem:[#allocation5 + $0x2f8] sm:$0xf] %v6543
    %6800 = vst [vmem:[#allocation5 + $0x2fc] sm:$0xf] %v6544
    %6801 = vst [vmem:[#allocation5 + $0x300] sm:$0xf] %v6545
    %6802 = vst [vmem:[#allocation5 + $0x304] sm:$0xf] %v6546
    %6803 = vst [vmem:[#allocation5 + $0x308] sm:$0xf] %v6547
    %6804 = vst [vmem:[#allocation5 + $0x30c] sm:$0xf] %v6548
    %6805 = vst [vmem:[#allocation5 + $0x310] sm:$0xf] %v6549
    %6806 = vst [vmem:[#allocation5 + $0x314] sm:$0xf] %v6550
    %6807 = vst [vmem:[#allocation5 + $0x318] sm:$0xf] %v6551
    %6808 = vst [vmem:[#allocation5 + $0x31c] sm:$0xf] %v6552
    %6809 = vst [vmem:[#allocation5 + $0x320] sm:$0xf] %v6553
    %6810 = vst [vmem:[#allocation5 + $0x324] sm:$0xf] %v6554
    %6811 = vst [vmem:[#allocation5 + $0x328] sm:$0xf] %v6555
    %6812 = vst [vmem:[#allocation5 + $0x32c] sm:$0xf] %v6556
    %6813 = vst [vmem:[#allocation5 + $0x330] sm:$0xf] %v6557
    %6814 = vst [vmem:[#allocation5 + $0x334] sm:$0xf] %v6558
    %6815 = vst [vmem:[#allocation5 + $0x338] sm:$0xf] %v6559
    %6816 = vst [vmem:[#allocation5 + $0x33c] sm:$0xf] %v6560
    %6817 = vst [vmem:[#allocation5 + $0x340] sm:$0xf] %v6561
    %6818 = vst [vmem:[#allocation5 + $0x344] sm:$0xf] %v6562
    %6819 = vst [vmem:[#allocation5 + $0x348] sm:$0xf] %v6563
    %6820 = vst [vmem:[#allocation5 + $0x34c] sm:$0xf] %v6564
    %6821 = vst [vmem:[#allocation5 + $0x350] sm:$0xf] %v6565
    %6822 = vst [vmem:[#allocation5 + $0x354] sm:$0xf] %v6566
    %6823 = vst [vmem:[#allocation5 + $0x358] sm:$0xf] %v6567
    %6824 = vst [vmem:[#allocation5 + $0x35c] sm:$0xf] %v6568
    %6825 = vst [vmem:[#allocation5 + $0x360] sm:$0xf] %v6569
    %6826 = vst [vmem:[#allocation5 + $0x364] sm:$0xf] %v6570
    %6827 = vst [vmem:[#allocation5 + $0x368] sm:$0xf] %v6571
    %6828 = vst [vmem:[#allocation5 + $0x36c] sm:$0xf] %v6572
    %6829 = vst [vmem:[#allocation5 + $0x370] sm:$0xf] %v6573
    %6830 = vst [vmem:[#allocation5 + $0x374] sm:$0xf] %v6574
    %6831 = vst [vmem:[#allocation5 + $0x378] sm:$0xf] %v6575
    %6832 = vst [vmem:[#allocation5 + $0x37c] sm:$0xf] %v6576
    %6833 = vst [vmem:[#allocation5 + $0x380] sm:$0xf] %v6577
    %6834 = vst [vmem:[#allocation5 + $0x384] sm:$0xf] %v6578
    %6835 = vst [vmem:[#allocation5 + $0x388] sm:$0xf] %v6579
    %6836 = vst [vmem:[#allocation5 + $0x38c] sm:$0xf] %v6580
    %6837 = vst [vmem:[#allocation5 + $0x390] sm:$0xf] %v6581
    %6838 = vst [vmem:[#allocation5 + $0x394] sm:$0xf] %v6582
    %6839 = vst [vmem:[#allocation5 + $0x398] sm:$0xf] %v6583
    %6840 = vst [vmem:[#allocation5 + $0x39c] sm:$0xf] %v6584
    %6841 = vst [vmem:[#allocation5 + $0x3a0] sm:$0xf] %v6585
    %6842 = vst [vmem:[#allocation5 + $0x3a4] sm:$0xf] %v6586
    %6843 = vst [vmem:[#allocation5 + $0x3a8] sm:$0xf] %v6587
    %6844 = vst [vmem:[#allocation5 + $0x3ac] sm:$0xf] %v6588
    %6845 = vst [vmem:[#allocation5 + $0x3b0] sm:$0xf] %v6589
    %6846 = vst [vmem:[#allocation5 + $0x3b4] sm:$0xf] %v6590
    %6847 = vst [vmem:[#allocation5 + $0x3b8] sm:$0xf] %v6591
    %6848 = vst [vmem:[#allocation5 + $0x3bc] sm:$0xf] %v6592
    %6849 = vst [vmem:[#allocation5 + $0x3c0] sm:$0xf] %v6593
    %6850 = vst [vmem:[#allocation5 + $0x3c4] sm:$0xf] %v6594
    %6851 = vst [vmem:[#allocation5 + $0x3c8] sm:$0xf] %v6595
    %6852 = vst [vmem:[#allocation5 + $0x3cc] sm:$0xf] %v6596
    %6853 = vst [vmem:[#allocation5 + $0x3d0] sm:$0xf] %v6597
    %6854 = vst [vmem:[#allocation5 + $0x3d4] sm:$0xf] %v6598
    %6855 = vst [vmem:[#allocation5 + $0x3d8] sm:$0xf] %v6599
    %6856 = vst [vmem:[#allocation5 + $0x3dc] sm:$0xf] %v6600
    %6857 = vst [vmem:[#allocation5 + $0x3e0] sm:$0xf] %v6601
    %6858 = vst [vmem:[#allocation5 + $0x3e4] sm:$0xf] %v6602
    %6859 = vst [vmem:[#allocation5 + $0x3e8] sm:$0xf] %v6603
    %6860 = vst [vmem:[#allocation5 + $0x3ec] sm:$0xf] %v6604
    %6861 = vst [vmem:[#allocation5 + $0x3f0] sm:$0xf] %v6605
    %6862 = vst [vmem:[#allocation5 + $0x3f4] sm:$0xf] %v6606
    %6863 = vst [vmem:[#allocation5 + $0x3f8] sm:$0xf] %v6607
    %6864 = vst [vmem:[#allocation5 + $0x3fc] sm:$0xf] %v6608
    // Predicated region
    $region34: #{tpu_custom_call.1} parent=1 // pred_check
      _
    $region35: #{tpu_custom_call.1} parent=1 // pred_check_branch
      %6866 = sbr.rel (0) target = $region37
    $region36: #{tpu_custom_call.1} parent=1 // pred_region
      %s6868 = ssub.s32 16384, 16384
      %6869 = vsyncadd [#allocation4], %s6868
      %s6870 = sshll.u32 [#allocation5], 4
      %s6871 = int_to_ptr.vmem [resolvable:$true] %s6870
      %6876 = dma.vmem_to_hbm [thread:$0]  %s6871, 16384, %s7, [#allocation4], 64, 64, 4
    $region37: #{tpu_custom_call.1} parent=1 // pred_fallthru
      _
    // Predicated region
    $region38: #{tpu_custom_call.1} parent=1 // pred_check
      _
    $region39: #{tpu_custom_call.1} parent=1 // pred_check_branch
      %6878 = sbr.rel (0) target = $region41
    $region40: #{tpu_custom_call.1} parent=1 // pred_region
      %6879 = dma.done [#allocation4], 16384
    $region41: #{tpu_custom_call.1} parent=1 // pred_fallthru
      _
    %6880 = vsyncpa [#allocation3], 1
    %6881 = vsyncpa [#allocation4], 1

</llo_original>
